<compile_context>
chip_gen: v7x
topology: tpu7x:2x2x1
jax: 0.10.0
libtpu: 0.0.40
codegen_flags: <defaults>
</compile_context>

<pallas_src>
import functools

import jax
import jax.numpy as jnp
from jax import lax
from jax.experimental import pallas as pl
from jax.experimental.pallas import tpu as pltpu


def _gate_pitch(embed_dim):
    """Lane pitch of one packed gate block ([fwd H | bwd H | pad])."""
    return ((2 * embed_dim + 127) // 128) * 128


# ----------------------------------------------------------------------------
# Fused encoder kernel.
# ----------------------------------------------------------------------------
def _encoder_kernel(x0_ref, wih_ref, whh_ref, b_ref, out_ref,
                    gx_scr, xa_scr, xb_scr):
    """Fused multi-layer bidirectional LSTM encoder.

    x0_ref : (T*B, 2H)      layer-0 input, time-major row blocks (B = padded batch).
    wih_ref: (L, 2H, 2*GW)  input->gate weights.  Columns 0:GW are the
                            forward-direction contributions, GW:2GW the backward
                            ones; within each half, gate block g lives at lanes
                            [g*GP, g*GP+2H) in packed [fwd H | bwd H] order,
                            gate order [i | f | o | g].
    whh_ref: (L, SP, GW)    block-diagonal recurrent weights (SP = 128 padded
                            state pitch, same gate layout).
    b_ref  : (L, 1, 2*GW)   biases (fwd biases in the fwd half, bwd in the bwd half).
    out_ref: (B, SP)        final packed state; lanes 0:H = h_fwd(T-1),
                            lanes H:2H = h_bwd(0)  (== PyTorch final_state).
    gx_scr : (T*B, 2*GW)    precomputed input-gate contributions for one layer.
    xa_scr, xb_scr : (T*B, 2H)  ping/pong inter-layer activations.
    """
    TB, FW = x0_ref.shape            # FW == 2H
    L = wih_ref.shape[0]
    SP = whh_ref.shape[1]            # 128: padded state width
    GW = whh_ref.shape[2]            # 4 * GP
    GP = GW // 4                     # 128: padded gate pitch
    H = FW // 2
    B = out_ref.shape[0]             # padded batch (full sublane tile)
    T = TB // B

    bufs = (xa_scr, xb_scr)
    h = jnp.zeros((B, SP), jnp.float32)

    # T*L = 16 here -> full static unroll is fine.  For larger T switch the
    # time loop to lax.fori_loop with a small unroll factor.
    for layer in range(L):                        # static -> unrolled
        in_ref = x0_ref if layer == 0 else bufs[(layer - 1) % 2]

        # Hoisted input projection: one lane-dense MXU call covering every
        # timestep and both directions; bias broadcast once per layer.
        gx_scr[...] = (
            jnp.dot(in_ref[...], wih_ref[layer],
                    preferred_element_type=jnp.float32)
            + b_ref[layer])

        whh = whh_ref[layer]                      # hoisted out of the time loop
        h = jnp.zeros((B, SP), jnp.float32)       # [h_fwd | h_bwd | 0-pad]
        c = jnp.zeros((B, SP), jnp.float32)       # [c_fwd | c_bwd | 0-pad]

        for t in range(T):                        # static -> fully unrolled
            rf = slice(t * B, (t + 1) * B)            # fwd dir uses time t
            rb = slice((T - 1 - t) * B, (T - t) * B)  # bwd dir uses time T-1-t

            # gx loads issued before the recurrent matmul (off the h-chain).
            gf = gx_scr[rf, 0:GW]
            gb = gx_scr[rb, GW:2 * GW]
            gates = (jnp.dot(h, whh, preferred_element_type=jnp.float32)
                     + gf + gb)                                   # (B, GW)

            # Gate order [i | f | o | g]: one contiguous sigmoid + one tanh.
            sig = jax.nn.sigmoid(gates[:, 0:3 * GP])
            g_t = jnp.tanh(gates[:, 3 * GP:4 * GP])
            i_g = sig[:, 0 * GP:1 * GP]
            f_g = sig[:, 1 * GP:2 * GP]
            o_g = sig[:, 2 * GP:3 * GP]

            # Whole-vreg element-wise updates; zero-padded lanes stay zero
            # (sigmoid(0)*0 and 0.5*tanh(0)).
            c = f_g * c + i_g * g_t
            h = o_g * jnp.tanh(c)

            if layer < L - 1:                     # emit next layer's input
                nxt = bufs[layer % 2]
                nxt[rf, 0:H] = h[:, 0:H]          # fwd output belongs to time t
                nxt[rb, H:2 * H] = h[:, H:2 * H]  # bwd output belongs to time T-1-t

    # After the last step of the last layer:
    #   h[:, :H]  = forward hidden at time T-1   (== states[:, -1, :H])
    #   h[:, H:2H]= backward hidden at time 0    (== states[:,  0, H:])
    out_ref[...] = h                              # whole-vreg lane-dense store


# ----------------------------------------------------------------------------
# Forward wrapper (only the embedding gather + a tiny slice in XLA).
# ----------------------------------------------------------------------------
def question_encoder_forward(question, params, *, question_length, embed_dim,
                             num_layers):
    """question: (B, T) int32 token ids -> (B, 2*embed_dim) f32 final state."""
    B, T = question.shape
    assert T == question_length
    H = embed_dim
    H2 = 2 * H
    GP = _gate_pitch(H)
    GW = 4 * GP
    SP = GP
    B_pad = max(8, ((B + 7) // 8) * 8)            # full sublane tile

    # Pad the batch with padding tokens (id 0 -> zero embedding row); the extra
    # rows are independent garbage and are sliced off after the kernel.
    q = question if B_pad == B else jnp.pad(question, ((0, B_pad - B), (0, 0)))

    # Time-major gather straight from the feature-padded table (padded once at
    # init): (T, B_pad) ids -> (T, B_pad, 2H) -> (T*B_pad, 2H).  No float
    # transpose and no per-call jnp.pad.
    x0 = jnp.take(params["embedding_padded"], q.T, axis=0).reshape(T * B_pad, H2)

    out = pl.pallas_call(
        _encoder_kernel,
        out_shape=jax.ShapeDtypeStruct((B_pad, SP), jnp.float32),
        grid=(1,),
        in_specs=[
            pl.BlockSpec((T * B_pad, H2), lambda i: (0, 0)),
            pl.BlockSpec((num_layers, H2, 2 * GW), lambda i: (0, 0, 0)),
            pl.BlockSpec((num_layers, SP, GW), lambda i: (0, 0, 0)),
            pl.BlockSpec((num_layers, 1, 2 * GW), lambda i: (0, 0, 0)),
        ],
        out_specs=pl.BlockSpec((B_pad, SP), lambda i: (0, 0)),
        scratch_shapes=[
            pltpu.VMEM((T * B_pad, 2 * GW), jnp.float32),   # gx (fwd | bwd halves)
            pltpu.VMEM((T * B_pad, H2), jnp.float32),       # inter-layer ping
            pltpu.VMEM((T * B_pad, H2), jnp.float32),       # inter-layer pong
        ],
        compiler_params=pltpu.CompilerParams(
            dimension_semantics=("arbitrary",),
            vmem_limit_bytes=32 * 1024 * 1024),
    )(x0, params["wih"], params["whh"], params["bias"])

    return out[:B, :H2]
    # TODO(synk): inter-layer dropout omitted (eval-mode forward; PyTorch
    # applies LSTM dropout only during training).


# ----------------------------------------------------------------------------
# Parameter construction + packing into the fused vreg-aligned gate layout.
# ----------------------------------------------------------------------------
def _pack_params(raw_lstm, H, num_layers):
    """raw per-(layer,dir) (W_ih (Din,4H), W_hh (H,4H), b (4H,)) ->
       wih (L,2H,2GW), whh (L,SP,GW), bias (L,1,2GW) in the padded gate layout."""
    H2 = 2 * H
    GP = _gate_pitch(H)
    GW = 4 * GP
    SP = GP
    # raw gate order is [i, f, g, o]; packed block order is [i, f, o, g]
    # (sigmoid gates contiguous, tanh gate last).
    gate_pos = {0: 0, 1: 1, 2: 3, 3: 2}

    wih_l, whh_l, b_l = [], [], []
    for layer in range(num_layers):
        w_ih_f, w_hh_f, b_f = raw_lstm[(layer, 0)]
        w_ih_b, w_hh_b, b_b = raw_lstm[(layer, 1)]
        d_in = w_ih_f.shape[0]

        wih = jnp.zeros((H2, 2 * GW), jnp.float32)
        whh = jnp.zeros((SP, GW), jnp.float32)
        bias = jnp.zeros((1, 2 * GW), jnp.float32)
        for g_raw in range(4):
            blk = gate_pos[g_raw]
            src = slice(g_raw * H, (g_raw + 1) * H)
            fdst = slice(blk * GP, blk * GP + H)               # fwd lanes in block
            bdst_in = slice(blk * GP + H, blk * GP + 2 * H)    # bwd lanes in block
            bdst = slice(GW + blk * GP + H, GW + blk * GP + 2 * H)

            # Input->gate weights: fwd contributions in cols 0:GW, bwd in GW:2GW.
            wih = wih.at[0:d_in, fdst].set(w_ih_f[:, src])
            wih = wih.at[0:d_in, bdst].set(w_ih_b[:, src])
            # Block-diagonal recurrent weights: h rows 0:H feed fwd lanes,
            # rows H:2H feed bwd lanes; padded rows/lanes stay zero.
            whh = whh.at[0:H, fdst].set(w_hh_f[:, src])
            whh = whh.at[H:H2, bdst_in].set(w_hh_b[:, src])
            # Biases: fwd biases in the fwd half, bwd biases in the bwd half
            # (each added exactly once per step via gx).
            bias = bias.at[0, fdst].set(b_f[src])
            bias = bias.at[0, bdst].set(b_b[src])

        wih_l.append(wih)
        whh_l.append(whh)
        b_l.append(bias)

    return {"wih": jnp.stack(wih_l), "whh": jnp.stack(whh_l),
            "bias": jnp.stack(b_l)}


def init_params(key, *, vocab_size, embed_dim, num_layers):
    H = embed_dim
    keys = jax.random.split(key, 1 + num_layers * 2 * 4)
    k_iter = iter(keys)

    emb = jax.random.normal(next(k_iter), (vocab_size, embed_dim), jnp.float32)
    emb = emb.at[0].set(0.0)  # padding_idx=0

    scale = 1.0 / jnp.sqrt(jnp.float32(H))
    raw = {}
    for layer in range(num_layers):
        d_in = embed_dim if layer == 0 else 2 * H
        for direction in range(2):
            w_ih = jax.random.uniform(next(k_iter), (d_in, 4 * H), jnp.float32,
                                      -scale, scale)
            w_hh = jax.random.uniform(next(k_iter), (H, 4 * H), jnp.float32,
                                      -scale, scale)
            b_ih = jax.random.uniform(next(k_iter), (4 * H,), jnp.float32,
                                      -scale, scale)
            b_hh = jax.random.uniform(next(k_iter), (4 * H,), jnp.float32,
                                      -scale, scale)
            raw[(layer, direction)] = (w_ih, w_hh, b_ih + b_hh)

    params = {"embedding": emb, "raw_lstm": raw}
    # Feature-pad the table once at init so the gather already yields 2H-wide rows.
    params["embedding_padded"] = jnp.pad(emb, ((0, 0), (0, H)))   # (V, 2H)
    params.update(_pack_params(raw, H, num_layers))
    # TODO(synk): store wih/whh/activations in bf16 (f32 gate math kept) once
    # batched to real sizes; left in f32 here for tight reference parity.
    return params


# ----------------------------------------------------------------------------
# Pure-JAX reference (HIGHEST-precision matmuls) for correctness check.
# ----------------------------------------------------------------------------
def _reference_forward(question, embedding, raw_lstm, *, embed_dim, num_layers):
    H = embed_dim
    B = question.shape[0]
    hp = jax.lax.Precision.HIGHEST
    x = jnp.take(embedding, question, axis=0)                    # (B, T, E)
    for layer in range(num_layers):
        outs = []
        for d in range(2):
            w_ih, w_hh, b = raw_lstm[(layer, d)]
            seq = x if d == 0 else jnp.flip(x, axis=1)
            seq_t = jnp.transpose(seq, (1, 0, 2))                # (T, B, Din)

            def step(carry, x_t, w_ih=w_ih, w_hh=w_hh, b=b):
                h, c = carry
                gates = (jnp.dot(x_t, w_ih, precision=hp)
                         + jnp.dot(h, w_hh, precision=hp) + b)
                i = jax.nn.sigmoid(gates[:, 0 * H:1 * H])
                f = jax.nn.sigmoid(gates[:, 1 * H:2 * H])
                g = jnp.tanh(gates[:, 2 * H:3 * H])
                o = jax.nn.sigmoid(gates[:, 3 * H:4 * H])
                c = f * c + i * g
                h = o * jnp.tanh(c)
                return (h, c), h

            init = (jnp.zeros((B, H), jnp.float32),
                    jnp.zeros((B, H), jnp.float32))
            _, ys = lax.scan(step, init, seq_t)
            ys = jnp.transpose(ys, (1, 0, 2))                    # (B, T, H)
            if d == 1:
                ys = jnp.flip(ys, axis=1)
            outs.append(ys)
        x = jnp.concatenate(outs, axis=-1)                       # (B, T, 2H)
    return jnp.concatenate([x[:, -1, :H], x[:, 0, H:]], axis=1)


if __name__ == "__main__":
    VOCAB = 20
    QLEN = 8          # question_length / seq
    EMBED = 32        # embed_dim / hidden
    LAYERS = 2
    BATCH = 2

    key = jax.random.PRNGKey(0)
    k_par, k_tok = jax.random.split(key)

    params = init_params(k_par, vocab_size=VOCAB, embed_dim=EMBED,
                         num_layers=LAYERS)
    question = jax.random.randint(k_tok, (BATCH, QLEN), 0, VOCAB, jnp.int32)

    fwd = functools.partial(
        question_encoder_forward,
        question_length=QLEN, embed_dim=EMBED, num_layers=LAYERS,
    )
    out = jax.jit(lambda q: fwd(q, params))(question)
    out = jax.block_until_ready(out)

    assert out.shape == (BATCH, 2 * EMBED), out.shape
    assert bool(jnp.all(jnp.isfinite(out)))

    # Numerical cross-check against a pure-JAX reference bidirectional LSTM.
    ref = _reference_forward(question, params["embedding"], params["raw_lstm"],
                             embed_dim=EMBED, num_layers=LAYERS)
    max_err = float(jnp.max(jnp.abs(out - ref)))
    assert max_err < 2e-2, f"mismatch vs reference: max abs err = {max_err}"

    print("KERNEL_OK")
</pallas_src>

<mosaic_0001>
module attributes {stable_mosaic.version = 11 : i64} {
  func.func @_encoder_kernel(%arg0: i32, %arg1: memref<64x64xf32, #tpu.memory_space<vmem>>, %arg2: memref<2x64x1024xf32, #tpu.memory_space<vmem>>, %arg3: memref<2x128x512xf32, #tpu.memory_space<vmem>>, %arg4: memref<2x1x1024xf32, #tpu.memory_space<vmem>>, %arg5: memref<8x128xf32, #tpu.memory_space<vmem>>, %arg6: memref<64x1024xf32, #tpu.memory_space<vmem>>, %arg7: memref<64x64xf32, #tpu.memory_space<vmem>>, %arg8: memref<64x64xf32, #tpu.memory_space<vmem>>) attributes {dimension_semantics = [#tpu.dimension_semantics<arbitrary>], iteration_bounds = array<i64: 1>, scalar_prefetch = 0 : i64, scratch_operands = 3 : i64, tpu.core_type = #tpu.core_type<tc>, window_params = [{pipeline_mode = #tpu.pipeline_mode<synchronous>, transform_indices = @transform_0, window_bounds = array<i64: 64, 64>}, {pipeline_mode = #tpu.pipeline_mode<synchronous>, transform_indices = @transform_1, window_bounds = array<i64: 2, 64, 1024>}, {pipeline_mode = #tpu.pipeline_mode<synchronous>, transform_indices = @transform_2, window_bounds = array<i64: 2, 128, 512>}, {pipeline_mode = #tpu.pipeline_mode<synchronous>, transform_indices = @transform_3, window_bounds = array<i64: 2, 1, 1024>}, {pipeline_mode = #tpu.pipeline_mode<synchronous>, transform_indices = @transform_4, window_bounds = array<i64: 8, 128>}]} {
    %c0 = arith.constant 0 : index
    %c0_0 = arith.constant 0 : index
    %0 = vector.load %arg1[%c0, %c0_0] : memref<64x64xf32, #tpu.memory_space<vmem>>, vector<64x64xf32>
    %c0_1 = arith.constant 0 : index
    %c0_2 = arith.constant 0 : index
    %c0_3 = arith.constant 0 : index
    %1 = vector.load %arg2[%c0_1, %c0_2, %c0_3] : memref<2x64x1024xf32, #tpu.memory_space<vmem>>, vector<1x64x1024xf32>
    %2 = vector.shape_cast %1 : vector<1x64x1024xf32> to vector<64x1024xf32>
    %cst = arith.constant dense<0.000000e+00> : vector<64x1024xf32>
    %3 = tpu.matmul %0, %2, %cst {dimension_numbers = #tpu.dot_dimension_numbers<[1], [0], [0], [1], [0, 0, 1, 1], [], []>} : vector<64x64xf32>, vector<64x1024xf32>, vector<64x1024xf32> -> vector<64x1024xf32>
    %c0_4 = arith.constant 0 : index
    %c0_5 = arith.constant 0 : index
    %c0_6 = arith.constant 0 : index
    %4 = vector.load %arg4[%c0_4, %c0_5, %c0_6] : memref<2x1x1024xf32, #tpu.memory_space<vmem>>, vector<1x1x1024xf32>
    %5 = vector.shape_cast %4 : vector<1x1x1024xf32> to vector<1x1024xf32>
    %6 = vector.broadcast %5 : vector<1x1024xf32> to vector<64x1024xf32>
    %7 = arith.addf %3, %6 : vector<64x1024xf32>
    %c0_7 = arith.constant 0 : index
    %c0_8 = arith.constant 0 : index
    %8 = vector.load %arg6[%c0_7, %c0_8] : memref<64x1024xf32, #tpu.memory_space<vmem>>, vector<64x1024xf32>
    tpu.vector_store %arg6[%c0_7, %c0_8], %7 {strides = array<i32>} : memref<64x1024xf32, #tpu.memory_space<vmem>>, vector<64x1024xf32>,
    %c0_9 = arith.constant 0 : index
    %c0_10 = arith.constant 0 : index
    %c0_11 = arith.constant 0 : index
    %9 = vector.load %arg3[%c0_9, %c0_10, %c0_11] : memref<2x128x512xf32, #tpu.memory_space<vmem>>, vector<1x128x512xf32>
    %10 = vector.shape_cast %9 : vector<1x128x512xf32> to vector<128x512xf32>
    %cst_12 = arith.constant 0.000000e+00 : f32
    %11 = vector.broadcast %cst_12 : f32 to vector<8x128xf32>
    %cst_13 = arith.constant 0.000000e+00 : f32
    %12 = vector.broadcast %cst_13 : f32 to vector<8x128xf32>
    %c0_14 = arith.constant 0 : index
    %c0_15 = arith.constant 0 : index
    %13 = vector.load %arg6[%c0_14, %c0_15] : memref<64x1024xf32, #tpu.memory_space<vmem>>, vector<8x512xf32>
    %c56 = arith.constant 56 : index
    %c512 = arith.constant 512 : index
    %14 = vector.load %arg6[%c56, %c512] : memref<64x1024xf32, #tpu.memory_space<vmem>>, vector<8x512xf32>
    %cst_16 = arith.constant dense<0.000000e+00> : vector<8x512xf32>
    %15 = tpu.matmul %11, %10, %cst_16 {dimension_numbers = #tpu.dot_dimension_numbers<[1], [0], [0], [1], [0, 0, 1, 1], [], []>} : vector<8x128xf32>, vector<128x512xf32>, vector<8x512xf32> -> vector<8x512xf32>
    %16 = arith.addf %15, %13 : vector<8x512xf32>
    %17 = arith.addf %16, %14 : vector<8x512xf32>
    %18 = vector.extract_strided_slice %17 {offsets = [0, 0], sizes = [8, 384], strides = [1, 1]} : vector<8x512xf32> to vector<8x384xf32>
    %19 = arith.negf %18 : vector<8x384xf32>
    %20 = math.exp %19 : vector<8x384xf32>
    %cst_17 = arith.constant 1.000000e+00 : f32
    %21 = vector.broadcast %cst_17 : f32 to vector<8x384xf32>
    %22 = arith.addf %21, %20 : vector<8x384xf32>
    %23 = arith.divf %21, %22 : vector<8x384xf32>
    %24 = vector.extract_strided_slice %17 {offsets = [0, 384], sizes = [8, 128], strides = [1, 1]} : vector<8x512xf32> to vector<8x128xf32>
    %25 = math.tanh %24 : vector<8x128xf32>
    %26 = vector.extract_strided_slice %23 {offsets = [0, 0], sizes = [8, 128], strides = [1, 1]} : vector<8x384xf32> to vector<8x128xf32>
    %27 = vector.extract_strided_slice %23 {offsets = [0, 128], sizes = [8, 128], strides = [1, 1]} : vector<8x384xf32> to vector<8x128xf32>
    %28 = vector.extract_strided_slice %23 {offsets = [0, 256], sizes = [8, 128], strides = [1, 1]} : vector<8x384xf32> to vector<8x128xf32>
    %29 = arith.mulf %27, %12 : vector<8x128xf32>
    %30 = arith.mulf %26, %25 : vector<8x128xf32>
    %31 = arith.addf %29, %30 : vector<8x128xf32>
    %32 = math.tanh %31 : vector<8x128xf32>
    %33 = arith.mulf %28, %32 : vector<8x128xf32>
    %34 = vector.extract_strided_slice %33 {offsets = [0, 0], sizes = [8, 32], strides = [1, 1]} : vector<8x128xf32> to vector<8x32xf32>
    %c0_18 = arith.constant 0 : index
    %c0_19 = arith.constant 0 : index
    %35 = vector.load %arg7[%c0_18, %c0_19] : memref<64x64xf32, #tpu.memory_space<vmem>>, vector<8x32xf32>
    tpu.vector_store %arg7[%c0_18, %c0_19], %34 {strides = array<i32>} : memref<64x64xf32, #tpu.memory_space<vmem>>, vector<8x32xf32>,
    %36 = vector.extract_strided_slice %33 {offsets = [0, 32], sizes = [8, 32], strides = [1, 1]} : vector<8x128xf32> to vector<8x32xf32>
    %c56_20 = arith.constant 56 : index
    %c32 = arith.constant 32 : index
    %37 = vector.load %arg7[%c56_20, %c32] : memref<64x64xf32, #tpu.memory_space<vmem>>, vector<8x32xf32>
    tpu.vector_store %arg7[%c56_20, %c32], %36 {strides = array<i32>} : memref<64x64xf32, #tpu.memory_space<vmem>>, vector<8x32xf32>,
    %c8 = arith.constant 8 : index
    %c0_21 = arith.constant 0 : index
    %38 = vector.load %arg6[%c8, %c0_21] : memref<64x1024xf32, #tpu.memory_space<vmem>>, vector<8x512xf32>
    %c48 = arith.constant 48 : index
    %c512_22 = arith.constant 512 : index
    %39 = vector.load %arg6[%c48, %c512_22] : memref<64x1024xf32, #tpu.memory_space<vmem>>, vector<8x512xf32>
    %cst_23 = arith.constant dense<0.000000e+00> : vector<8x512xf32>
    %40 = tpu.matmul %33, %10, %cst_23 {dimension_numbers = #tpu.dot_dimension_numbers<[1], [0], [0], [1], [0, 0, 1, 1], [], []>} : vector<8x128xf32>, vector<128x512xf32>, vector<8x512xf32> -> vector<8x512xf32>
    %41 = arith.addf %40, %38 : vector<8x512xf32>
    %42 = arith.addf %41, %39 : vector<8x512xf32>
    %43 = vector.extract_strided_slice %42 {offsets = [0, 0], sizes = [8, 384], strides = [1, 1]} : vector<8x512xf32> to vector<8x384xf32>
    %44 = arith.negf %43 : vector<8x384xf32>
    %45 = math.exp %44 : vector<8x384xf32>
    %cst_24 = arith.constant 1.000000e+00 : f32
    %46 = vector.broadcast %cst_24 : f32 to vector<8x384xf32>
    %47 = arith.addf %46, %45 : vector<8x384xf32>
    %48 = arith.divf %46, %47 : vector<8x384xf32>
    %49 = vector.extract_strided_slice %42 {offsets = [0, 384], sizes = [8, 128], strides = [1, 1]} : vector<8x512xf32> to vector<8x128xf32>
    %50 = math.tanh %49 : vector<8x128xf32>
    %51 = vector.extract_strided_slice %48 {offsets = [0, 0], sizes = [8, 128], strides = [1, 1]} : vector<8x384xf32> to vector<8x128xf32>
    %52 = vector.extract_strided_slice %48 {offsets = [0, 128], sizes = [8, 128], strides = [1, 1]} : vector<8x384xf32> to vector<8x128xf32>
    %53 = vector.extract_strided_slice %48 {offsets = [0, 256], sizes = [8, 128], strides = [1, 1]} : vector<8x384xf32> to vector<8x128xf32>
    %54 = arith.mulf %52, %31 : vector<8x128xf32>
    %55 = arith.mulf %51, %50 : vector<8x128xf32>
    %56 = arith.addf %54, %55 : vector<8x128xf32>
    %57 = math.tanh %56 : vector<8x128xf32>
    %58 = arith.mulf %53, %57 : vector<8x128xf32>
    %59 = vector.extract_strided_slice %58 {offsets = [0, 0], sizes = [8, 32], strides = [1, 1]} : vector<8x128xf32> to vector<8x32xf32>
    %c8_25 = arith.constant 8 : index
    %c0_26 = arith.constant 0 : index
    %60 = vector.load %arg7[%c8_25, %c0_26] : memref<64x64xf32, #tpu.memory_space<vmem>>, vector<8x32xf32>
    tpu.vector_store %arg7[%c8_25, %c0_26], %59 {strides = array<i32>} : memref<64x64xf32, #tpu.memory_space<vmem>>, vector<8x32xf32>,
    %61 = vector.extract_strided_slice %58 {offsets = [0, 32], sizes = [8, 32], strides = [1, 1]} : vector<8x128xf32> to vector<8x32xf32>
    %c48_27 = arith.constant 48 : index
    %c32_28 = arith.constant 32 : index
    %62 = vector.load %arg7[%c48_27, %c32_28] : memref<64x64xf32, #tpu.memory_space<vmem>>, vector<8x32xf32>
    tpu.vector_store %arg7[%c48_27, %c32_28], %61 {strides = array<i32>} : memref<64x64xf32, #tpu.memory_space<vmem>>, vector<8x32xf32>,
    %c16 = arith.constant 16 : index
    %c0_29 = arith.constant 0 : index
    %63 = vector.load %arg6[%c16, %c0_29] : memref<64x1024xf32, #tpu.memory_space<vmem>>, vector<8x512xf32>
    %c40 = arith.constant 40 : index
    %c512_30 = arith.constant 512 : index
    %64 = vector.load %arg6[%c40, %c512_30] : memref<64x1024xf32, #tpu.memory_space<vmem>>, vector<8x512xf32>
    %cst_31 = arith.constant dense<0.000000e+00> : vector<8x512xf32>
    %65 = tpu.matmul %58, %10, %cst_31 {dimension_numbers = #tpu.dot_dimension_numbers<[1], [0], [0], [1], [0, 0, 1, 1], [], []>} : vector<8x128xf32>, vector<128x512xf32>, vector<8x512xf32> -> vector<8x512xf32>
    %66 = arith.addf %65, %63 : vector<8x512xf32>
    %67 = arith.addf %66, %64 : vector<8x512xf32>
    %68 = vector.extract_strided_slice %67 {offsets = [0, 0], sizes = [8, 384], strides = [1, 1]} : vector<8x512xf32> to vector<8x384xf32>
    %69 = arith.negf %68 : vector<8x384xf32>
    %70 = math.exp %69 : vector<8x384xf32>
    %cst_32 = arith.constant 1.000000e+00 : f32
    %71 = vector.broadcast %cst_32 : f32 to vector<8x384xf32>
    %72 = arith.addf %71, %70 : vector<8x384xf32>
    %73 = arith.divf %71, %72 : vector<8x384xf32>
    %74 = vector.extract_strided_slice %67 {offsets = [0, 384], sizes = [8, 128], strides = [1, 1]} : vector<8x512xf32> to vector<8x128xf32>
    %75 = math.tanh %74 : vector<8x128xf32>
    %76 = vector.extract_strided_slice %73 {offsets = [0, 0], sizes = [8, 128], strides = [1, 1]} : vector<8x384xf32> to vector<8x128xf32>
    %77 = vector.extract_strided_slice %73 {offsets = [0, 128], sizes = [8, 128], strides = [1, 1]} : vector<8x384xf32> to vector<8x128xf32>
    %78 = vector.extract_strided_slice %73 {offsets = [0, 256], sizes = [8, 128], strides = [1, 1]} : vector<8x384xf32> to vector<8x128xf32>
    %79 = arith.mulf %77, %56 : vector<8x128xf32>
    %80 = arith.mulf %76, %75 : vector<8x128xf32>
    %81 = arith.addf %79, %80 : vector<8x128xf32>
    %82 = math.tanh %81 : vector<8x128xf32>
    %83 = arith.mulf %78, %82 : vector<8x128xf32>
    %84 = vector.extract_strided_slice %83 {offsets = [0, 0], sizes = [8, 32], strides = [1, 1]} : vector<8x128xf32> to vector<8x32xf32>
    %c16_33 = arith.constant 16 : index
    %c0_34 = arith.constant 0 : index
    %85 = vector.load %arg7[%c16_33, %c0_34] : memref<64x64xf32, #tpu.memory_space<vmem>>, vector<8x32xf32>
    tpu.vector_store %arg7[%c16_33, %c0_34], %84 {strides = array<i32>} : memref<64x64xf32, #tpu.memory_space<vmem>>, vector<8x32xf32>,
    %86 = vector.extract_strided_slice %83 {offsets = [0, 32], sizes = [8, 32], strides = [1, 1]} : vector<8x128xf32> to vector<8x32xf32>
    %c40_35 = arith.constant 40 : index
    %c32_36 = arith.constant 32 : index
    %87 = vector.load %arg7[%c40_35, %c32_36] : memref<64x64xf32, #tpu.memory_space<vmem>>, vector<8x32xf32>
    tpu.vector_store %arg7[%c40_35, %c32_36], %86 {strides = array<i32>} : memref<64x64xf32, #tpu.memory_space<vmem>>, vector<8x32xf32>,
    %c24 = arith.constant 24 : index
    %c0_37 = arith.constant 0 : index
    %88 = vector.load %arg6[%c24, %c0_37] : memref<64x1024xf32, #tpu.memory_space<vmem>>, vector<8x512xf32>
    %c32_38 = arith.constant 32 : index
    %c512_39 = arith.constant 512 : index
    %89 = vector.load %arg6[%c32_38, %c512_39] : memref<64x1024xf32, #tpu.memory_space<vmem>>, vector<8x512xf32>
    %cst_40 = arith.constant dense<0.000000e+00> : vector<8x512xf32>
    %90 = tpu.matmul %83, %10, %cst_40 {dimension_numbers = #tpu.dot_dimension_numbers<[1], [0], [0], [1], [0, 0, 1, 1], [], []>} : vector<8x128xf32>, vector<128x512xf32>, vector<8x512xf32> -> vector<8x512xf32>
    %91 = arith.addf %90, %88 : vector<8x512xf32>
    %92 = arith.addf %91, %89 : vector<8x512xf32>
    %93 = vector.extract_strided_slice %92 {offsets = [0, 0], sizes = [8, 384], strides = [1, 1]} : vector<8x512xf32> to vector<8x384xf32>
    %94 = arith.negf %93 : vector<8x384xf32>
    %95 = math.exp %94 : vector<8x384xf32>
    %cst_41 = arith.constant 1.000000e+00 : f32
    %96 = vector.broadcast %cst_41 : f32 to vector<8x384xf32>
    %97 = arith.addf %96, %95 : vector<8x384xf32>
    %98 = arith.divf %96, %97 : vector<8x384xf32>
    %99 = vector.extract_strided_slice %92 {offsets = [0, 384], sizes = [8, 128], strides = [1, 1]} : vector<8x512xf32> to vector<8x128xf32>
    %100 = math.tanh %99 : vector<8x128xf32>
    %101 = vector.extract_strided_slice %98 {offsets = [0, 0], sizes = [8, 128], strides = [1, 1]} : vector<8x384xf32> to vector<8x128xf32>
    %102 = vector.extract_strided_slice %98 {offsets = [0, 128], sizes = [8, 128], strides = [1, 1]} : vector<8x384xf32> to vector<8x128xf32>
    %103 = vector.extract_strided_slice %98 {offsets = [0, 256], sizes = [8, 128], strides = [1, 1]} : vector<8x384xf32> to vector<8x128xf32>
    %104 = arith.mulf %102, %81 : vector<8x128xf32>
    %105 = arith.mulf %101, %100 : vector<8x128xf32>
    %106 = arith.addf %104, %105 : vector<8x128xf32>
    %107 = math.tanh %106 : vector<8x128xf32>
    %108 = arith.mulf %103, %107 : vector<8x128xf32>
    %109 = vector.extract_strided_slice %108 {offsets = [0, 0], sizes = [8, 32], strides = [1, 1]} : vector<8x128xf32> to vector<8x32xf32>
    %c24_42 = arith.constant 24 : index
    %c0_43 = arith.constant 0 : index
    %110 = vector.load %arg7[%c24_42, %c0_43] : memref<64x64xf32, #tpu.memory_space<vmem>>, vector<8x32xf32>
    tpu.vector_store %arg7[%c24_42, %c0_43], %109 {strides = array<i32>} : memref<64x64xf32, #tpu.memory_space<vmem>>, vector<8x32xf32>,
    %111 = vector.extract_strided_slice %108 {offsets = [0, 32], sizes = [8, 32], strides = [1, 1]} : vector<8x128xf32> to vector<8x32xf32>
    %c32_44 = arith.constant 32 : index
    %c32_45 = arith.constant 32 : index
    %112 = vector.load %arg7[%c32_44, %c32_45] : memref<64x64xf32, #tpu.memory_space<vmem>>, vector<8x32xf32>
    tpu.vector_store %arg7[%c32_44, %c32_45], %111 {strides = array<i32>} : memref<64x64xf32, #tpu.memory_space<vmem>>, vector<8x32xf32>,
    %c32_46 = arith.constant 32 : index
    %c0_47 = arith.constant 0 : index
    %113 = vector.load %arg6[%c32_46, %c0_47] : memref<64x1024xf32, #tpu.memory_space<vmem>>, vector<8x512xf32>
    %c24_48 = arith.constant 24 : index
    %c512_49 = arith.constant 512 : index
    %114 = vector.load %arg6[%c24_48, %c512_49] : memref<64x1024xf32, #tpu.memory_space<vmem>>, vector<8x512xf32>
    %cst_50 = arith.constant dense<0.000000e+00> : vector<8x512xf32>
    %115 = tpu.matmul %108, %10, %cst_50 {dimension_numbers = #tpu.dot_dimension_numbers<[1], [0], [0], [1], [0, 0, 1, 1], [], []>} : vector<8x128xf32>, vector<128x512xf32>, vector<8x512xf32> -> vector<8x512xf32>
    %116 = arith.addf %115, %113 : vector<8x512xf32>
    %117 = arith.addf %116, %114 : vector<8x512xf32>
    %118 = vector.extract_strided_slice %117 {offsets = [0, 0], sizes = [8, 384], strides = [1, 1]} : vector<8x512xf32> to vector<8x384xf32>
    %119 = arith.negf %118 : vector<8x384xf32>
    %120 = math.exp %119 : vector<8x384xf32>
    %cst_51 = arith.constant 1.000000e+00 : f32
    %121 = vector.broadcast %cst_51 : f32 to vector<8x384xf32>
    %122 = arith.addf %121, %120 : vector<8x384xf32>
    %123 = arith.divf %121, %122 : vector<8x384xf32>
    %124 = vector.extract_strided_slice %117 {offsets = [0, 384], sizes = [8, 128], strides = [1, 1]} : vector<8x512xf32> to vector<8x128xf32>
    %125 = math.tanh %124 : vector<8x128xf32>
    %126 = vector.extract_strided_slice %123 {offsets = [0, 0], sizes = [8, 128], strides = [1, 1]} : vector<8x384xf32> to vector<8x128xf32>
    %127 = vector.extract_strided_slice %123 {offsets = [0, 128], sizes = [8, 128], strides = [1, 1]} : vector<8x384xf32> to vector<8x128xf32>
    %128 = vector.extract_strided_slice %123 {offsets = [0, 256], sizes = [8, 128], strides = [1, 1]} : vector<8x384xf32> to vector<8x128xf32>
    %129 = arith.mulf %127, %106 : vector<8x128xf32>
    %130 = arith.mulf %126, %125 : vector<8x128xf32>
    %131 = arith.addf %129, %130 : vector<8x128xf32>
    %132 = math.tanh %131 : vector<8x128xf32>
    %133 = arith.mulf %128, %132 : vector<8x128xf32>
    %134 = vector.extract_strided_slice %133 {offsets = [0, 0], sizes = [8, 32], strides = [1, 1]} : vector<8x128xf32> to vector<8x32xf32>
    %c32_52 = arith.constant 32 : index
    %c0_53 = arith.constant 0 : index
    %135 = vector.load %arg7[%c32_52, %c0_53] : memref<64x64xf32, #tpu.memory_space<vmem>>, vector<8x32xf32>
    tpu.vector_store %arg7[%c32_52, %c0_53], %134 {strides = array<i32>} : memref<64x64xf32, #tpu.memory_space<vmem>>, vector<8x32xf32>,
    %136 = vector.extract_strided_slice %133 {offsets = [0, 32], sizes = [8, 32], strides = [1, 1]} : vector<8x128xf32> to vector<8x32xf32>
    %c24_54 = arith.constant 24 : index
    %c32_55 = arith.constant 32 : index
    %137 = vector.load %arg7[%c24_54, %c32_55] : memref<64x64xf32, #tpu.memory_space<vmem>>, vector<8x32xf32>
    tpu.vector_store %arg7[%c24_54, %c32_55], %136 {strides = array<i32>} : memref<64x64xf32, #tpu.memory_space<vmem>>, vector<8x32xf32>,
    %c40_56 = arith.constant 40 : index
    %c0_57 = arith.constant 0 : index
    %138 = vector.load %arg6[%c40_56, %c0_57] : memref<64x1024xf32, #tpu.memory_space<vmem>>, vector<8x512xf32>
    %c16_58 = arith.constant 16 : index
    %c512_59 = arith.constant 512 : index
    %139 = vector.load %arg6[%c16_58, %c512_59] : memref<64x1024xf32, #tpu.memory_space<vmem>>, vector<8x512xf32>
    %cst_60 = arith.constant dense<0.000000e+00> : vector<8x512xf32>
    %140 = tpu.matmul %133, %10, %cst_60 {dimension_numbers = #tpu.dot_dimension_numbers<[1], [0], [0], [1], [0, 0, 1, 1], [], []>} : vector<8x128xf32>, vector<128x512xf32>, vector<8x512xf32> -> vector<8x512xf32>
    %141 = arith.addf %140, %138 : vector<8x512xf32>
    %142 = arith.addf %141, %139 : vector<8x512xf32>
    %143 = vector.extract_strided_slice %142 {offsets = [0, 0], sizes = [8, 384], strides = [1, 1]} : vector<8x512xf32> to vector<8x384xf32>
    %144 = arith.negf %143 : vector<8x384xf32>
    %145 = math.exp %144 : vector<8x384xf32>
    %cst_61 = arith.constant 1.000000e+00 : f32
    %146 = vector.broadcast %cst_61 : f32 to vector<8x384xf32>
    %147 = arith.addf %146, %145 : vector<8x384xf32>
    %148 = arith.divf %146, %147 : vector<8x384xf32>
    %149 = vector.extract_strided_slice %142 {offsets = [0, 384], sizes = [8, 128], strides = [1, 1]} : vector<8x512xf32> to vector<8x128xf32>
    %150 = math.tanh %149 : vector<8x128xf32>
    %151 = vector.extract_strided_slice %148 {offsets = [0, 0], sizes = [8, 128], strides = [1, 1]} : vector<8x384xf32> to vector<8x128xf32>
    %152 = vector.extract_strided_slice %148 {offsets = [0, 128], sizes = [8, 128], strides = [1, 1]} : vector<8x384xf32> to vector<8x128xf32>
    %153 = vector.extract_strided_slice %148 {offsets = [0, 256], sizes = [8, 128], strides = [1, 1]} : vector<8x384xf32> to vector<8x128xf32>
    %154 = arith.mulf %152, %131 : vector<8x128xf32>
    %155 = arith.mulf %151, %150 : vector<8x128xf32>
    %156 = arith.addf %154, %155 : vector<8x128xf32>
    %157 = math.tanh %156 : vector<8x128xf32>
    %158 = arith.mulf %153, %157 : vector<8x128xf32>
    %159 = vector.extract_strided_slice %158 {offsets = [0, 0], sizes = [8, 32], strides = [1, 1]} : vector<8x128xf32> to vector<8x32xf32>
    %c40_62 = arith.constant 40 : index
    %c0_63 = arith.constant 0 : index
    %160 = vector.load %arg7[%c40_62, %c0_63] : memref<64x64xf32, #tpu.memory_space<vmem>>, vector<8x32xf32>
    tpu.vector_store %arg7[%c40_62, %c0_63], %159 {strides = array<i32>} : memref<64x64xf32, #tpu.memory_space<vmem>>, vector<8x32xf32>,
    %161 = vector.extract_strided_slice %158 {offsets = [0, 32], sizes = [8, 32], strides = [1, 1]} : vector<8x128xf32> to vector<8x32xf32>
    %c16_64 = arith.constant 16 : index
    %c32_65 = arith.constant 32 : index
    %162 = vector.load %arg7[%c16_64, %c32_65] : memref<64x64xf32, #tpu.memory_space<vmem>>, vector<8x32xf32>
    tpu.vector_store %arg7[%c16_64, %c32_65], %161 {strides = array<i32>} : memref<64x64xf32, #tpu.memory_space<vmem>>, vector<8x32xf32>,
    %c48_66 = arith.constant 48 : index
    %c0_67 = arith.constant 0 : index
    %163 = vector.load %arg6[%c48_66, %c0_67] : memref<64x1024xf32, #tpu.memory_space<vmem>>, vector<8x512xf32>
    %c8_68 = arith.constant 8 : index
    %c512_69 = arith.constant 512 : index
    %164 = vector.load %arg6[%c8_68, %c512_69] : memref<64x1024xf32, #tpu.memory_space<vmem>>, vector<8x512xf32>
    %cst_70 = arith.constant dense<0.000000e+00> : vector<8x512xf32>
    %165 = tpu.matmul %158, %10, %cst_70 {dimension_numbers = #tpu.dot_dimension_numbers<[1], [0], [0], [1], [0, 0, 1, 1], [], []>} : vector<8x128xf32>, vector<128x512xf32>, vector<8x512xf32> -> vector<8x512xf32>
    %166 = arith.addf %165, %163 : vector<8x512xf32>
    %167 = arith.addf %166, %164 : vector<8x512xf32>
    %168 = vector.extract_strided_slice %167 {offsets = [0, 0], sizes = [8, 384], strides = [1, 1]} : vector<8x512xf32> to vector<8x384xf32>
    %169 = arith.negf %168 : vector<8x384xf32>
    %170 = math.exp %169 : vector<8x384xf32>
    %cst_71 = arith.constant 1.000000e+00 : f32
    %171 = vector.broadcast %cst_71 : f32 to vector<8x384xf32>
    %172 = arith.addf %171, %170 : vector<8x384xf32>
    %173 = arith.divf %171, %172 : vector<8x384xf32>
    %174 = vector.extract_strided_slice %167 {offsets = [0, 384], sizes = [8, 128], strides = [1, 1]} : vector<8x512xf32> to vector<8x128xf32>
    %175 = math.tanh %174 : vector<8x128xf32>
    %176 = vector.extract_strided_slice %173 {offsets = [0, 0], sizes = [8, 128], strides = [1, 1]} : vector<8x384xf32> to vector<8x128xf32>
    %177 = vector.extract_strided_slice %173 {offsets = [0, 128], sizes = [8, 128], strides = [1, 1]} : vector<8x384xf32> to vector<8x128xf32>
    %178 = vector.extract_strided_slice %173 {offsets = [0, 256], sizes = [8, 128], strides = [1, 1]} : vector<8x384xf32> to vector<8x128xf32>
    %179 = arith.mulf %177, %156 : vector<8x128xf32>
    %180 = arith.mulf %176, %175 : vector<8x128xf32>
    %181 = arith.addf %179, %180 : vector<8x128xf32>
    %182 = math.tanh %181 : vector<8x128xf32>
    %183 = arith.mulf %178, %182 : vector<8x128xf32>
    %184 = vector.extract_strided_slice %183 {offsets = [0, 0], sizes = [8, 32], strides = [1, 1]} : vector<8x128xf32> to vector<8x32xf32>
    %c48_72 = arith.constant 48 : index
    %c0_73 = arith.constant 0 : index
    %185 = vector.load %arg7[%c48_72, %c0_73] : memref<64x64xf32, #tpu.memory_space<vmem>>, vector<8x32xf32>
    tpu.vector_store %arg7[%c48_72, %c0_73], %184 {strides = array<i32>} : memref<64x64xf32, #tpu.memory_space<vmem>>, vector<8x32xf32>,
    %186 = vector.extract_strided_slice %183 {offsets = [0, 32], sizes = [8, 32], strides = [1, 1]} : vector<8x128xf32> to vector<8x32xf32>
    %c8_74 = arith.constant 8 : index
    %c32_75 = arith.constant 32 : index
    %187 = vector.load %arg7[%c8_74, %c32_75] : memref<64x64xf32, #tpu.memory_space<vmem>>, vector<8x32xf32>
    tpu.vector_store %arg7[%c8_74, %c32_75], %186 {strides = array<i32>} : memref<64x64xf32, #tpu.memory_space<vmem>>, vector<8x32xf32>,
    %c56_76 = arith.constant 56 : index
    %c0_77 = arith.constant 0 : index
    %188 = vector.load %arg6[%c56_76, %c0_77] : memref<64x1024xf32, #tpu.memory_space<vmem>>, vector<8x512xf32>
    %c0_78 = arith.constant 0 : index
    %c512_79 = arith.constant 512 : index
    %189 = vector.load %arg6[%c0_78, %c512_79] : memref<64x1024xf32, #tpu.memory_space<vmem>>, vector<8x512xf32>
    %cst_80 = arith.constant dense<0.000000e+00> : vector<8x512xf32>
    %190 = tpu.matmul %183, %10, %cst_80 {dimension_numbers = #tpu.dot_dimension_numbers<[1], [0], [0], [1], [0, 0, 1, 1], [], []>} : vector<8x128xf32>, vector<128x512xf32>, vector<8x512xf32> -> vector<8x512xf32>
    %191 = arith.addf %190, %188 : vector<8x512xf32>
    %192 = arith.addf %191, %189 : vector<8x512xf32>
    %193 = vector.extract_strided_slice %192 {offsets = [0, 0], sizes = [8, 384], strides = [1, 1]} : vector<8x512xf32> to vector<8x384xf32>
    %194 = arith.negf %193 : vector<8x384xf32>
    %195 = math.exp %194 : vector<8x384xf32>
    %cst_81 = arith.constant 1.000000e+00 : f32
    %196 = vector.broadcast %cst_81 : f32 to vector<8x384xf32>
    %197 = arith.addf %196, %195 : vector<8x384xf32>
    %198 = arith.divf %196, %197 : vector<8x384xf32>
    %199 = vector.extract_strided_slice %192 {offsets = [0, 384], sizes = [8, 128], strides = [1, 1]} : vector<8x512xf32> to vector<8x128xf32>
    %200 = math.tanh %199 : vector<8x128xf32>
    %201 = vector.extract_strided_slice %198 {offsets = [0, 0], sizes = [8, 128], strides = [1, 1]} : vector<8x384xf32> to vector<8x128xf32>
    %202 = vector.extract_strided_slice %198 {offsets = [0, 128], sizes = [8, 128], strides = [1, 1]} : vector<8x384xf32> to vector<8x128xf32>
    %203 = vector.extract_strided_slice %198 {offsets = [0, 256], sizes = [8, 128], strides = [1, 1]} : vector<8x384xf32> to vector<8x128xf32>
    %204 = arith.mulf %202, %181 : vector<8x128xf32>
    %205 = arith.mulf %201, %200 : vector<8x128xf32>
    %206 = arith.addf %204, %205 : vector<8x128xf32>
    %207 = math.tanh %206 : vector<8x128xf32>
    %208 = arith.mulf %203, %207 : vector<8x128xf32>
    %209 = vector.extract_strided_slice %208 {offsets = [0, 0], sizes = [8, 32], strides = [1, 1]} : vector<8x128xf32> to vector<8x32xf32>
    %c56_82 = arith.constant 56 : index
    %c0_83 = arith.constant 0 : index
    %210 = vector.load %arg7[%c56_82, %c0_83] : memref<64x64xf32, #tpu.memory_space<vmem>>, vector<8x32xf32>
    tpu.vector_store %arg7[%c56_82, %c0_83], %209 {strides = array<i32>} : memref<64x64xf32, #tpu.memory_space<vmem>>, vector<8x32xf32>,
    %211 = vector.extract_strided_slice %208 {offsets = [0, 32], sizes = [8, 32], strides = [1, 1]} : vector<8x128xf32> to vector<8x32xf32>
    %c0_84 = arith.constant 0 : index
    %c32_85 = arith.constant 32 : index
    %212 = vector.load %arg7[%c0_84, %c32_85] : memref<64x64xf32, #tpu.memory_space<vmem>>, vector<8x32xf32>
    tpu.vector_store %arg7[%c0_84, %c32_85], %211 {strides = array<i32>} : memref<64x64xf32, #tpu.memory_space<vmem>>, vector<8x32xf32>,
    %c0_86 = arith.constant 0 : index
    %c0_87 = arith.constant 0 : index
    %213 = vector.load %arg7[%c0_86, %c0_87] : memref<64x64xf32, #tpu.memory_space<vmem>>, vector<64x64xf32>
    %c1 = arith.constant 1 : index
    %c0_88 = arith.constant 0 : index
    %c0_89 = arith.constant 0 : index
    %214 = vector.load %arg2[%c1, %c0_88, %c0_89] : memref<2x64x1024xf32, #tpu.memory_space<vmem>>, vector<1x64x1024xf32>
    %215 = vector.shape_cast %214 : vector<1x64x1024xf32> to vector<64x1024xf32>
    %cst_90 = arith.constant dense<0.000000e+00> : vector<64x1024xf32>
    %216 = tpu.matmul %213, %215, %cst_90 {dimension_numbers = #tpu.dot_dimension_numbers<[1], [0], [0], [1], [0, 0, 1, 1], [], []>} : vector<64x64xf32>, vector<64x1024xf32>, vector<64x1024xf32> -> vector<64x1024xf32>
    %c1_91 = arith.constant 1 : index
    %c0_92 = arith.constant 0 : index
    %c0_93 = arith.constant 0 : index
    %217 = vector.load %arg4[%c1_91, %c0_92, %c0_93] : memref<2x1x1024xf32, #tpu.memory_space<vmem>>, vector<1x1x1024xf32>
    %218 = vector.shape_cast %217 : vector<1x1x1024xf32> to vector<1x1024xf32>
    %219 = vector.broadcast %218 : vector<1x1024xf32> to vector<64x1024xf32>
    %220 = arith.addf %216, %219 : vector<64x1024xf32>
    %c0_94 = arith.constant 0 : index
    %c0_95 = arith.constant 0 : index
    %221 = vector.load %arg6[%c0_94, %c0_95] : memref<64x1024xf32, #tpu.memory_space<vmem>>, vector<64x1024xf32>
    tpu.vector_store %arg6[%c0_94, %c0_95], %220 {strides = array<i32>} : memref<64x1024xf32, #tpu.memory_space<vmem>>, vector<64x1024xf32>,
    %c1_96 = arith.constant 1 : index
    %c0_97 = arith.constant 0 : index
    %c0_98 = arith.constant 0 : index
    %222 = vector.load %arg3[%c1_96, %c0_97, %c0_98] : memref<2x128x512xf32, #tpu.memory_space<vmem>>, vector<1x128x512xf32>
    %223 = vector.shape_cast %222 : vector<1x128x512xf32> to vector<128x512xf32>
    %cst_99 = arith.constant 0.000000e+00 : f32
    %224 = vector.broadcast %cst_99 : f32 to vector<8x128xf32>
    %cst_100 = arith.constant 0.000000e+00 : f32
    %225 = vector.broadcast %cst_100 : f32 to vector<8x128xf32>
    %c0_101 = arith.constant 0 : index
    %c0_102 = arith.constant 0 : index
    %226 = vector.load %arg6[%c0_101, %c0_102] : memref<64x1024xf32, #tpu.memory_space<vmem>>, vector<8x512xf32>
    %c56_103 = arith.constant 56 : index
    %c512_104 = arith.constant 512 : index
    %227 = vector.load %arg6[%c56_103, %c512_104] : memref<64x1024xf32, #tpu.memory_space<vmem>>, vector<8x512xf32>
    %cst_105 = arith.constant dense<0.000000e+00> : vector<8x512xf32>
    %228 = tpu.matmul %224, %223, %cst_105 {dimension_numbers = #tpu.dot_dimension_numbers<[1], [0], [0], [1], [0, 0, 1, 1], [], []>} : vector<8x128xf32>, vector<128x512xf32>, vector<8x512xf32> -> vector<8x512xf32>
    %229 = arith.addf %228, %226 : vector<8x512xf32>
    %230 = arith.addf %229, %227 : vector<8x512xf32>
    %231 = vector.extract_strided_slice %230 {offsets = [0, 0], sizes = [8, 384], strides = [1, 1]} : vector<8x512xf32> to vector<8x384xf32>
    %232 = arith.negf %231 : vector<8x384xf32>
    %233 = math.exp %232 : vector<8x384xf32>
    %cst_106 = arith.constant 1.000000e+00 : f32
    %234 = vector.broadcast %cst_106 : f32 to vector<8x384xf32>
    %235 = arith.addf %234, %233 : vector<8x384xf32>
    %236 = arith.divf %234, %235 : vector<8x384xf32>
    %237 = vector.extract_strided_slice %230 {offsets = [0, 384], sizes = [8, 128], strides = [1, 1]} : vector<8x512xf32> to vector<8x128xf32>
    %238 = math.tanh %237 : vector<8x128xf32>
    %239 = vector.extract_strided_slice %236 {offsets = [0, 0], sizes = [8, 128], strides = [1, 1]} : vector<8x384xf32> to vector<8x128xf32>
    %240 = vector.extract_strided_slice %236 {offsets = [0, 128], sizes = [8, 128], strides = [1, 1]} : vector<8x384xf32> to vector<8x128xf32>
    %241 = vector.extract_strided_slice %236 {offsets = [0, 256], sizes = [8, 128], strides = [1, 1]} : vector<8x384xf32> to vector<8x128xf32>
    %242 = arith.mulf %240, %225 : vector<8x128xf32>
    %243 = arith.mulf %239, %238 : vector<8x128xf32>
    %244 = arith.addf %242, %243 : vector<8x128xf32>
    %245 = math.tanh %244 : vector<8x128xf32>
    %246 = arith.mulf %241, %245 : vector<8x128xf32>
    %c8_107 = arith.constant 8 : index
    %c0_108 = arith.constant 0 : index
    %247 = vector.load %arg6[%c8_107, %c0_108] : memref<64x1024xf32, #tpu.memory_space<vmem>>, vector<8x512xf32>
    %c48_109 = arith.constant 48 : index
    %c512_110 = arith.constant 512 : index
    %248 = vector.load %arg6[%c48_109, %c512_110] : memref<64x1024xf32, #tpu.memory_space<vmem>>, vector<8x512xf32>
    %cst_111 = arith.constant dense<0.000000e+00> : vector<8x512xf32>
    %249 = tpu.matmul %246, %223, %cst_111 {dimension_numbers = #tpu.dot_dimension_numbers<[1], [0], [0], [1], [0, 0, 1, 1], [], []>} : vector<8x128xf32>, vector<128x512xf32>, vector<8x512xf32> -> vector<8x512xf32>
    %250 = arith.addf %249, %247 : vector<8x512xf32>
    %251 = arith.addf %250, %248 : vector<8x512xf32>
    %252 = vector.extract_strided_slice %251 {offsets = [0, 0], sizes = [8, 384], strides = [1, 1]} : vector<8x512xf32> to vector<8x384xf32>
    %253 = arith.negf %252 : vector<8x384xf32>
    %254 = math.exp %253 : vector<8x384xf32>
    %cst_112 = arith.constant 1.000000e+00 : f32
    %255 = vector.broadcast %cst_112 : f32 to vector<8x384xf32>
    %256 = arith.addf %255, %254 : vector<8x384xf32>
    %257 = arith.divf %255, %256 : vector<8x384xf32>
    %258 = vector.extract_strided_slice %251 {offsets = [0, 384], sizes = [8, 128], strides = [1, 1]} : vector<8x512xf32> to vector<8x128xf32>
    %259 = math.tanh %258 : vector<8x128xf32>
    %260 = vector.extract_strided_slice %257 {offsets = [0, 0], sizes = [8, 128], strides = [1, 1]} : vector<8x384xf32> to vector<8x128xf32>
    %261 = vector.extract_strided_slice %257 {offsets = [0, 128], sizes = [8, 128], strides = [1, 1]} : vector<8x384xf32> to vector<8x128xf32>
    %262 = vector.extract_strided_slice %257 {offsets = [0, 256], sizes = [8, 128], strides = [1, 1]} : vector<8x384xf32> to vector<8x128xf32>
    %263 = arith.mulf %261, %244 : vector<8x128xf32>
    %264 = arith.mulf %260, %259 : vector<8x128xf32>
    %265 = arith.addf %263, %264 : vector<8x128xf32>
    %266 = math.tanh %265 : vector<8x128xf32>
    %267 = arith.mulf %262, %266 : vector<8x128xf32>
    %c16_113 = arith.constant 16 : index
    %c0_114 = arith.constant 0 : index
    %268 = vector.load %arg6[%c16_113, %c0_114] : memref<64x1024xf32, #tpu.memory_space<vmem>>, vector<8x512xf32>
    %c40_115 = arith.constant 40 : index
    %c512_116 = arith.constant 512 : index
    %269 = vector.load %arg6[%c40_115, %c512_116] : memref<64x1024xf32, #tpu.memory_space<vmem>>, vector<8x512xf32>
    %cst_117 = arith.constant dense<0.000000e+00> : vector<8x512xf32>
    %270 = tpu.matmul %267, %223, %cst_117 {dimension_numbers = #tpu.dot_dimension_numbers<[1], [0], [0], [1], [0, 0, 1, 1], [], []>} : vector<8x128xf32>, vector<128x512xf32>, vector<8x512xf32> -> vector<8x512xf32>
    %271 = arith.addf %270, %268 : vector<8x512xf32>
    %272 = arith.addf %271, %269 : vector<8x512xf32>
    %273 = vector.extract_strided_slice %272 {offsets = [0, 0], sizes = [8, 384], strides = [1, 1]} : vector<8x512xf32> to vector<8x384xf32>
    %274 = arith.negf %273 : vector<8x384xf32>
    %275 = math.exp %274 : vector<8x384xf32>
    %cst_118 = arith.constant 1.000000e+00 : f32
    %276 = vector.broadcast %cst_118 : f32 to vector<8x384xf32>
    %277 = arith.addf %276, %275 : vector<8x384xf32>
    %278 = arith.divf %276, %277 : vector<8x384xf32>
    %279 = vector.extract_strided_slice %272 {offsets = [0, 384], sizes = [8, 128], strides = [1, 1]} : vector<8x512xf32> to vector<8x128xf32>
    %280 = math.tanh %279 : vector<8x128xf32>
    %281 = vector.extract_strided_slice %278 {offsets = [0, 0], sizes = [8, 128], strides = [1, 1]} : vector<8x384xf32> to vector<8x128xf32>
    %282 = vector.extract_strided_slice %278 {offsets = [0, 128], sizes = [8, 128], strides = [1, 1]} : vector<8x384xf32> to vector<8x128xf32>
    %283 = vector.extract_strided_slice %278 {offsets = [0, 256], sizes = [8, 128], strides = [1, 1]} : vector<8x384xf32> to vector<8x128xf32>
    %284 = arith.mulf %282, %265 : vector<8x128xf32>
    %285 = arith.mulf %281, %280 : vector<8x128xf32>
    %286 = arith.addf %284, %285 : vector<8x128xf32>
    %287 = math.tanh %286 : vector<8x128xf32>
    %288 = arith.mulf %283, %287 : vector<8x128xf32>
    %c24_119 = arith.constant 24 : index
    %c0_120 = arith.constant 0 : index
    %289 = vector.load %arg6[%c24_119, %c0_120] : memref<64x1024xf32, #tpu.memory_space<vmem>>, vector<8x512xf32>
    %c32_121 = arith.constant 32 : index
    %c512_122 = arith.constant 512 : index
    %290 = vector.load %arg6[%c32_121, %c512_122] : memref<64x1024xf32, #tpu.memory_space<vmem>>, vector<8x512xf32>
    %cst_123 = arith.constant dense<0.000000e+00> : vector<8x512xf32>
    %291 = tpu.matmul %288, %223, %cst_123 {dimension_numbers = #tpu.dot_dimension_numbers<[1], [0], [0], [1], [0, 0, 1, 1], [], []>} : vector<8x128xf32>, vector<128x512xf32>, vector<8x512xf32> -> vector<8x512xf32>
    %292 = arith.addf %291, %289 : vector<8x512xf32>
    %293 = arith.addf %292, %290 : vector<8x512xf32>
    %294 = vector.extract_strided_slice %293 {offsets = [0, 0], sizes = [8, 384], strides = [1, 1]} : vector<8x512xf32> to vector<8x384xf32>
    %295 = arith.negf %294 : vector<8x384xf32>
    %296 = math.exp %295 : vector<8x384xf32>
    %cst_124 = arith.constant 1.000000e+00 : f32
    %297 = vector.broadcast %cst_124 : f32 to vector<8x384xf32>
    %298 = arith.addf %297, %296 : vector<8x384xf32>
    %299 = arith.divf %297, %298 : vector<8x384xf32>
    %300 = vector.extract_strided_slice %293 {offsets = [0, 384], sizes = [8, 128], strides = [1, 1]} : vector<8x512xf32> to vector<8x128xf32>
    %301 = math.tanh %300 : vector<8x128xf32>
    %302 = vector.extract_strided_slice %299 {offsets = [0, 0], sizes = [8, 128], strides = [1, 1]} : vector<8x384xf32> to vector<8x128xf32>
    %303 = vector.extract_strided_slice %299 {offsets = [0, 128], sizes = [8, 128], strides = [1, 1]} : vector<8x384xf32> to vector<8x128xf32>
    %304 = vector.extract_strided_slice %299 {offsets = [0, 256], sizes = [8, 128], strides = [1, 1]} : vector<8x384xf32> to vector<8x128xf32>
    %305 = arith.mulf %303, %286 : vector<8x128xf32>
    %306 = arith.mulf %302, %301 : vector<8x128xf32>
    %307 = arith.addf %305, %306 : vector<8x128xf32>
    %308 = math.tanh %307 : vector<8x128xf32>
    %309 = arith.mulf %304, %308 : vector<8x128xf32>
    %c32_125 = arith.constant 32 : index
    %c0_126 = arith.constant 0 : index
    %310 = vector.load %arg6[%c32_125, %c0_126] : memref<64x1024xf32, #tpu.memory_space<vmem>>, vector<8x512xf32>
    %c24_127 = arith.constant 24 : index
    %c512_128 = arith.constant 512 : index
    %311 = vector.load %arg6[%c24_127, %c512_128] : memref<64x1024xf32, #tpu.memory_space<vmem>>, vector<8x512xf32>
    %cst_129 = arith.constant dense<0.000000e+00> : vector<8x512xf32>
    %312 = tpu.matmul %309, %223, %cst_129 {dimension_numbers = #tpu.dot_dimension_numbers<[1], [0], [0], [1], [0, 0, 1, 1], [], []>} : vector<8x128xf32>, vector<128x512xf32>, vector<8x512xf32> -> vector<8x512xf32>
    %313 = arith.addf %312, %310 : vector<8x512xf32>
    %314 = arith.addf %313, %311 : vector<8x512xf32>
    %315 = vector.extract_strided_slice %314 {offsets = [0, 0], sizes = [8, 384], strides = [1, 1]} : vector<8x512xf32> to vector<8x384xf32>
    %316 = arith.negf %315 : vector<8x384xf32>
    %317 = math.exp %316 : vector<8x384xf32>
    %cst_130 = arith.constant 1.000000e+00 : f32
    %318 = vector.broadcast %cst_130 : f32 to vector<8x384xf32>
    %319 = arith.addf %318, %317 : vector<8x384xf32>
    %320 = arith.divf %318, %319 : vector<8x384xf32>
    %321 = vector.extract_strided_slice %314 {offsets = [0, 384], sizes = [8, 128], strides = [1, 1]} : vector<8x512xf32> to vector<8x128xf32>
    %322 = math.tanh %321 : vector<8x128xf32>
    %323 = vector.extract_strided_slice %320 {offsets = [0, 0], sizes = [8, 128], strides = [1, 1]} : vector<8x384xf32> to vector<8x128xf32>
    %324 = vector.extract_strided_slice %320 {offsets = [0, 128], sizes = [8, 128], strides = [1, 1]} : vector<8x384xf32> to vector<8x128xf32>
    %325 = vector.extract_strided_slice %320 {offsets = [0, 256], sizes = [8, 128], strides = [1, 1]} : vector<8x384xf32> to vector<8x128xf32>
    %326 = arith.mulf %324, %307 : vector<8x128xf32>
    %327 = arith.mulf %323, %322 : vector<8x128xf32>
    %328 = arith.addf %326, %327 : vector<8x128xf32>
    %329 = math.tanh %328 : vector<8x128xf32>
    %330 = arith.mulf %325, %329 : vector<8x128xf32>
    %c40_131 = arith.constant 40 : index
    %c0_132 = arith.constant 0 : index
    %331 = vector.load %arg6[%c40_131, %c0_132] : memref<64x1024xf32, #tpu.memory_space<vmem>>, vector<8x512xf32>
    %c16_133 = arith.constant 16 : index
    %c512_134 = arith.constant 512 : index
    %332 = vector.load %arg6[%c16_133, %c512_134] : memref<64x1024xf32, #tpu.memory_space<vmem>>, vector<8x512xf32>
    %cst_135 = arith.constant dense<0.000000e+00> : vector<8x512xf32>
    %333 = tpu.matmul %330, %223, %cst_135 {dimension_numbers = #tpu.dot_dimension_numbers<[1], [0], [0], [1], [0, 0, 1, 1], [], []>} : vector<8x128xf32>, vector<128x512xf32>, vector<8x512xf32> -> vector<8x512xf32>
    %334 = arith.addf %333, %331 : vector<8x512xf32>
    %335 = arith.addf %334, %332 : vector<8x512xf32>
    %336 = vector.extract_strided_slice %335 {offsets = [0, 0], sizes = [8, 384], strides = [1, 1]} : vector<8x512xf32> to vector<8x384xf32>
    %337 = arith.negf %336 : vector<8x384xf32>
    %338 = math.exp %337 : vector<8x384xf32>
    %cst_136 = arith.constant 1.000000e+00 : f32
    %339 = vector.broadcast %cst_136 : f32 to vector<8x384xf32>
    %340 = arith.addf %339, %338 : vector<8x384xf32>
    %341 = arith.divf %339, %340 : vector<8x384xf32>
    %342 = vector.extract_strided_slice %335 {offsets = [0, 384], sizes = [8, 128], strides = [1, 1]} : vector<8x512xf32> to vector<8x128xf32>
    %343 = math.tanh %342 : vector<8x128xf32>
    %344 = vector.extract_strided_slice %341 {offsets = [0, 0], sizes = [8, 128], strides = [1, 1]} : vector<8x384xf32> to vector<8x128xf32>
    %345 = vector.extract_strided_slice %341 {offsets = [0, 128], sizes = [8, 128], strides = [1, 1]} : vector<8x384xf32> to vector<8x128xf32>
    %346 = vector.extract_strided_slice %341 {offsets = [0, 256], sizes = [8, 128], strides = [1, 1]} : vector<8x384xf32> to vector<8x128xf32>
    %347 = arith.mulf %345, %328 : vector<8x128xf32>
    %348 = arith.mulf %344, %343 : vector<8x128xf32>
    %349 = arith.addf %347, %348 : vector<8x128xf32>
    %350 = math.tanh %349 : vector<8x128xf32>
    %351 = arith.mulf %346, %350 : vector<8x128xf32>
    %c48_137 = arith.constant 48 : index
    %c0_138 = arith.constant 0 : index
    %352 = vector.load %arg6[%c48_137, %c0_138] : memref<64x1024xf32, #tpu.memory_space<vmem>>, vector<8x512xf32>
    %c8_139 = arith.constant 8 : index
    %c512_140 = arith.constant 512 : index
    %353 = vector.load %arg6[%c8_139, %c512_140] : memref<64x1024xf32, #tpu.memory_space<vmem>>, vector<8x512xf32>
    %cst_141 = arith.constant dense<0.000000e+00> : vector<8x512xf32>
    %354 = tpu.matmul %351, %223, %cst_141 {dimension_numbers = #tpu.dot_dimension_numbers<[1], [0], [0], [1], [0, 0, 1, 1], [], []>} : vector<8x128xf32>, vector<128x512xf32>, vector<8x512xf32> -> vector<8x512xf32>
    %355 = arith.addf %354, %352 : vector<8x512xf32>
    %356 = arith.addf %355, %353 : vector<8x512xf32>
    %357 = vector.extract_strided_slice %356 {offsets = [0, 0], sizes = [8, 384], strides = [1, 1]} : vector<8x512xf32> to vector<8x384xf32>
    %358 = arith.negf %357 : vector<8x384xf32>
    %359 = math.exp %358 : vector<8x384xf32>
    %cst_142 = arith.constant 1.000000e+00 : f32
    %360 = vector.broadcast %cst_142 : f32 to vector<8x384xf32>
    %361 = arith.addf %360, %359 : vector<8x384xf32>
    %362 = arith.divf %360, %361 : vector<8x384xf32>
    %363 = vector.extract_strided_slice %356 {offsets = [0, 384], sizes = [8, 128], strides = [1, 1]} : vector<8x512xf32> to vector<8x128xf32>
    %364 = math.tanh %363 : vector<8x128xf32>
    %365 = vector.extract_strided_slice %362 {offsets = [0, 0], sizes = [8, 128], strides = [1, 1]} : vector<8x384xf32> to vector<8x128xf32>
    %366 = vector.extract_strided_slice %362 {offsets = [0, 128], sizes = [8, 128], strides = [1, 1]} : vector<8x384xf32> to vector<8x128xf32>
    %367 = vector.extract_strided_slice %362 {offsets = [0, 256], sizes = [8, 128], strides = [1, 1]} : vector<8x384xf32> to vector<8x128xf32>
    %368 = arith.mulf %366, %349 : vector<8x128xf32>
    %369 = arith.mulf %365, %364 : vector<8x128xf32>
    %370 = arith.addf %368, %369 : vector<8x128xf32>
    %371 = math.tanh %370 : vector<8x128xf32>
    %372 = arith.mulf %367, %371 : vector<8x128xf32>
    %c56_143 = arith.constant 56 : index
    %c0_144 = arith.constant 0 : index
    %373 = vector.load %arg6[%c56_143, %c0_144] : memref<64x1024xf32, #tpu.memory_space<vmem>>, vector<8x512xf32>
    %c0_145 = arith.constant 0 : index
    %c512_146 = arith.constant 512 : index
    %374 = vector.load %arg6[%c0_145, %c512_146] : memref<64x1024xf32, #tpu.memory_space<vmem>>, vector<8x512xf32>
    %cst_147 = arith.constant dense<0.000000e+00> : vector<8x512xf32>
    %375 = tpu.matmul %372, %223, %cst_147 {dimension_numbers = #tpu.dot_dimension_numbers<[1], [0], [0], [1], [0, 0, 1, 1], [], []>} : vector<8x128xf32>, vector<128x512xf32>, vector<8x512xf32> -> vector<8x512xf32>
    %376 = arith.addf %375, %373 : vector<8x512xf32>
    %377 = arith.addf %376, %374 : vector<8x512xf32>
    %378 = vector.extract_strided_slice %377 {offsets = [0, 0], sizes = [8, 384], strides = [1, 1]} : vector<8x512xf32> to vector<8x384xf32>
    %379 = arith.negf %378 : vector<8x384xf32>
    %380 = math.exp %379 : vector<8x384xf32>
    %cst_148 = arith.constant 1.000000e+00 : f32
    %381 = vector.broadcast %cst_148 : f32 to vector<8x384xf32>
    %382 = arith.addf %381, %380 : vector<8x384xf32>
    %383 = arith.divf %381, %382 : vector<8x384xf32>
    %384 = vector.extract_strided_slice %377 {offsets = [0, 384], sizes = [8, 128], strides = [1, 1]} : vector<8x512xf32> to vector<8x128xf32>
    %385 = math.tanh %384 : vector<8x128xf32>
    %386 = vector.extract_strided_slice %383 {offsets = [0, 0], sizes = [8, 128], strides = [1, 1]} : vector<8x384xf32> to vector<8x128xf32>
    %387 = vector.extract_strided_slice %383 {offsets = [0, 128], sizes = [8, 128], strides = [1, 1]} : vector<8x384xf32> to vector<8x128xf32>
    %388 = vector.extract_strided_slice %383 {offsets = [0, 256], sizes = [8, 128], strides = [1, 1]} : vector<8x384xf32> to vector<8x128xf32>
    %389 = arith.mulf %387, %370 : vector<8x128xf32>
    %390 = arith.mulf %386, %385 : vector<8x128xf32>
    %391 = arith.addf %389, %390 : vector<8x128xf32>
    %392 = math.tanh %391 : vector<8x128xf32>
    %393 = arith.mulf %388, %392 : vector<8x128xf32>
    %c0_149 = arith.constant 0 : index
    %c0_150 = arith.constant 0 : index
    %394 = vector.load %arg5[%c0_149, %c0_150] : memref<8x128xf32, #tpu.memory_space<vmem>>, vector<8x128xf32>
    tpu.vector_store %arg5[%c0_149, %c0_150], %393 {strides = array<i32>} : memref<8x128xf32, #tpu.memory_space<vmem>>, vector<8x128xf32>,
    return
  }
  func.func @transform_0(%arg0: i32) -> (i32, i32) {
    %c0_i32 = arith.constant 0 : i32
    %c0_i32_0 = arith.constant 0 : i32
    %c0_i32_1 = arith.constant 0 : i32
    return %c0_i32, %c0_i32_0 : i32, i32
  }
  func.func @transform_1(%arg0: i32) -> (i32, i32, i32) {
    %c0_i32 = arith.constant 0 : i32
    %c0_i32_0 = arith.constant 0 : i32
    %c0_i32_1 = arith.constant 0 : i32
    %c0_i32_2 = arith.constant 0 : i32
    return %c0_i32, %c0_i32_0, %c0_i32_1 : i32, i32, i32
  }
  func.func @transform_2(%arg0: i32) -> (i32, i32, i32) {
    %c0_i32 = arith.constant 0 : i32
    %c0_i32_0 = arith.constant 0 : i32
    %c0_i32_1 = arith.constant 0 : i32
    %c0_i32_2 = arith.constant 0 : i32
    return %c0_i32, %c0_i32_0, %c0_i32_1 : i32, i32, i32
  }
  func.func @transform_3(%arg0: i32) -> (i32, i32, i32) {
    %c0_i32 = arith.constant 0 : i32
    %c0_i32_0 = arith.constant 0 : i32
    %c0_i32_1 = arith.constant 0 : i32
    %c0_i32_2 = arith.constant 0 : i32
    return %c0_i32, %c0_i32_0, %c0_i32_1 : i32, i32, i32
  }
  func.func @transform_4(%arg0: i32) -> (i32, i32) {
    %c0_i32 = arith.constant 0 : i32
    %c0_i32_0 = arith.constant 0 : i32
    %c0_i32_1 = arith.constant 0 : i32
    return %c0_i32, %c0_i32_0 : i32, i32
  }
}

</mosaic_0001>

<llo_original>
// kernel: _lambda_.1
$region0: #{_lambda_.1}
  #allocation0 [shape = 'u32[]', space=smem, size = 0x4, offset = 0x4, fixed_abs, tag = 'smem constant byte address 0x4 - core index']
  #allocation1 [shape = 'u32[144,128]{1,0:T(1,128)}', space=vmem, size = 0x12000, scoped, tag = 'internal scratch']
  #allocation2 [shape = 'f32[64,1024]{1,0:T(8,128)}', space=vmem, size = 0x40000, scoped, tag = 'scratch operand']
  #allocation3 [shape = 'f32[64,64]{1,0:T(8,128)}', space=vmem, size = 0x8000, scoped, tag = 'scratch operand']
  #allocation4 [shape = 'f32[64,64]{1,0:T(8,128)}', space=vmem, size = 0x8000, scoped, tag = 'scratch operand']
  %s0 = inlined_call_operand.vmem [shape: f32[64,64], index: 0, kind: input, shape index: {}]
  %s1 = inlined_call_operand.hbm [shape: f32[2,64,1024], index: 1, kind: input, shape index: {}]
  %s2 = inlined_call_operand.hbm [shape: f32[2,128,512], index: 2, kind: input, shape index: {}]
  %s3 = inlined_call_operand.vmem [shape: f32[2,1,1024], index: 3, kind: input, shape index: {}]
  %s4 = inlined_call_operand.vmem [shape: f32[8,128], index: 4, kind: output, shape index: {}]
  %s5 = sld [smem:[#allocation0]]
  $region34: #{_lambda_.1} parent=0
    _
  %s7 = ssub.s32 1, %s5
  %s8 = scalar_select 0, %s7, %s5
  $region1: #{_lambda_.1} parent=0
    #allocation5 [shape = 'u8[524288]{0}', space=vmem, size = 0x80000, scoped, tag = 'input window, operand 1, single buffered']
    #allocation6 [shape = 's32[1]{0}', space=sflag, size = 0x4, scoped, tag = 'scoped memory for _lambda_.1']
    #allocation7 [shape = 'u8[524288]{0}', space=vmem, size = 0x80000, scoped, tag = 'input window, operand 2, single buffered']
    #allocation8 [shape = 's32[1]{0}', space=sflag, size = 0x4, scoped, tag = 'scoped memory for _lambda_.1']
    %9 = vsyncpa [#allocation6], 0
    %10 = vsyncpa [#allocation8], 0
    // Predicated region
    $region2: #{_lambda_.1} parent=1 // pred_check
      _
    $region3: #{_lambda_.1} parent=1 // pred_check_branch
      %12 = sbr.rel (0) target = $region5
    $region4: #{_lambda_.1} parent=1 // pred_region
      _
    $region5: #{_lambda_.1} parent=1 // pred_fallthru
      _
    // Predicated region
    $region6: #{_lambda_.1} parent=1 // pred_check
      _
    $region7: #{_lambda_.1} parent=1 // pred_check_branch
      %14 = sbr.rel (0) target = $region9
    $region8: #{_lambda_.1} parent=1 // pred_region
      %s16 = ssub.s32 16384, 16384
      %17 = vsyncadd [#allocation6], %s16
      %s18 = sshll.u32 [#allocation5], 4
      %s19 = int_to_ptr.vmem [resolvable:$true] %s18
      %24 = dma.hbm_to_vmem [thread:$0]  %s1, 16384, %s19, [#allocation6], 1024, 1024, 64
    $region9: #{_lambda_.1} parent=1 // pred_fallthru
      _
    // Predicated region
    $region10: #{_lambda_.1} parent=1 // pred_check
      _
    $region11: #{_lambda_.1} parent=1 // pred_check_branch
      %26 = sbr.rel (0) target = $region13
    $region12: #{_lambda_.1} parent=1 // pred_region
      %s28 = ssub.s32 16384, 16384
      %29 = vsyncadd [#allocation8], %s28
      %s30 = sshll.u32 [#allocation7], 4
      %s31 = int_to_ptr.vmem [resolvable:$true] %s30
      %36 = dma.hbm_to_vmem [thread:$0]  %s2, 16384, %s31, [#allocation8], 512, 512, 32
    $region13: #{_lambda_.1} parent=1 // pred_fallthru
      _
    // Predicated region
    $region14: #{_lambda_.1} parent=1 // pred_check
      _
    $region15: #{_lambda_.1} parent=1 // pred_check_branch
      %38 = sbr.rel (0) target = $region17
    $region16: #{_lambda_.1} parent=1 // pred_region
      _
    $region17: #{_lambda_.1} parent=1 // pred_fallthru
      _
    // Predicated region
    $region18: #{_lambda_.1} parent=1 // pred_check
      _
    $region19: #{_lambda_.1} parent=1 // pred_check_branch
      %40 = sbr.rel (0) target = $region21
    $region20: #{_lambda_.1} parent=1 // pred_region
      %41 = dma.done [#allocation6], 16384
    $region21: #{_lambda_.1} parent=1 // pred_fallthru
      _
    // Predicated region
    $region22: #{_lambda_.1} parent=1 // pred_check
      _
    $region23: #{_lambda_.1} parent=1 // pred_check_branch
      %43 = sbr.rel (0) target = $region25
    $region24: #{_lambda_.1} parent=1 // pred_region
      %44 = dma.done [#allocation8], 16384
    $region25: #{_lambda_.1} parent=1 // pred_fallthru
      _
    %v45 = vld [vmem:[%s0] sm:$0xff]
    %v46 = vld [vmem:[%s0 + $0x8] sm:$0xff]
    %v47 = vld [vmem:[%s0 + $0x10] sm:$0xff]
    %v48 = vld [vmem:[%s0 + $0x18] sm:$0xff]
    %v49 = vld [vmem:[%s0 + $0x20] sm:$0xff]
    %v50 = vld [vmem:[%s0 + $0x28] sm:$0xff]
    %v51 = vld [vmem:[%s0 + $0x30] sm:$0xff]
    %v52 = vld [vmem:[%s0 + $0x38] sm:$0xff]
    %v53 = vld [vmem:[#allocation5] sm:$0xff]
    %v54 = vld [vmem:[#allocation5 + $0x8] sm:$0xff]
    %v55 = vld [vmem:[#allocation5 + $0x10] sm:$0xff]
    %v56 = vld [vmem:[#allocation5 + $0x18] sm:$0xff]
    %v57 = vld [vmem:[#allocation5 + $0x20] sm:$0xff]
    %v58 = vld [vmem:[#allocation5 + $0x28] sm:$0xff]
    %v59 = vld [vmem:[#allocation5 + $0x30] sm:$0xff]
    %v60 = vld [vmem:[#allocation5 + $0x38] sm:$0xff]
    %v61 = vld [vmem:[#allocation5 + $0x40] sm:$0xff]
    %v62 = vld [vmem:[#allocation5 + $0x48] sm:$0xff]
    %v63 = vld [vmem:[#allocation5 + $0x50] sm:$0xff]
    %v64 = vld [vmem:[#allocation5 + $0x58] sm:$0xff]
    %v65 = vld [vmem:[#allocation5 + $0x60] sm:$0xff]
    %v66 = vld [vmem:[#allocation5 + $0x68] sm:$0xff]
    %v67 = vld [vmem:[#allocation5 + $0x70] sm:$0xff]
    %v68 = vld [vmem:[#allocation5 + $0x78] sm:$0xff]
    %v69 = vld [vmem:[#allocation5 + $0x80] sm:$0xff]
    %v70 = vld [vmem:[#allocation5 + $0x88] sm:$0xff]
    %v71 = vld [vmem:[#allocation5 + $0x90] sm:$0xff]
    %v72 = vld [vmem:[#allocation5 + $0x98] sm:$0xff]
    %v73 = vld [vmem:[#allocation5 + $0xa0] sm:$0xff]
    %v74 = vld [vmem:[#allocation5 + $0xa8] sm:$0xff]
    %v75 = vld [vmem:[#allocation5 + $0xb0] sm:$0xff]
    %v76 = vld [vmem:[#allocation5 + $0xb8] sm:$0xff]
    %v77 = vld [vmem:[#allocation5 + $0xc0] sm:$0xff]
    %v78 = vld [vmem:[#allocation5 + $0xc8] sm:$0xff]
    %v79 = vld [vmem:[#allocation5 + $0xd0] sm:$0xff]
    %v80 = vld [vmem:[#allocation5 + $0xd8] sm:$0xff]
    %v81 = vld [vmem:[#allocation5 + $0xe0] sm:$0xff]
    %v82 = vld [vmem:[#allocation5 + $0xe8] sm:$0xff]
    %v83 = vld [vmem:[#allocation5 + $0xf0] sm:$0xff]
    %v84 = vld [vmem:[#allocation5 + $0xf8] sm:$0xff]
    %v85 = vld [vmem:[#allocation5 + $0x100] sm:$0xff]
    %v86 = vld [vmem:[#allocation5 + $0x108] sm:$0xff]
    %v87 = vld [vmem:[#allocation5 + $0x110] sm:$0xff]
    %v88 = vld [vmem:[#allocation5 + $0x118] sm:$0xff]
    %v89 = vld [vmem:[#allocation5 + $0x120] sm:$0xff]
    %v90 = vld [vmem:[#allocation5 + $0x128] sm:$0xff]
    %v91 = vld [vmem:[#allocation5 + $0x130] sm:$0xff]
    %v92 = vld [vmem:[#allocation5 + $0x138] sm:$0xff]
    %v93 = vld [vmem:[#allocation5 + $0x140] sm:$0xff]
    %v94 = vld [vmem:[#allocation5 + $0x148] sm:$0xff]
    %v95 = vld [vmem:[#allocation5 + $0x150] sm:$0xff]
    %v96 = vld [vmem:[#allocation5 + $0x158] sm:$0xff]
    %v97 = vld [vmem:[#allocation5 + $0x160] sm:$0xff]
    %v98 = vld [vmem:[#allocation5 + $0x168] sm:$0xff]
    %v99 = vld [vmem:[#allocation5 + $0x170] sm:$0xff]
    %v100 = vld [vmem:[#allocation5 + $0x178] sm:$0xff]
    %v101 = vld [vmem:[#allocation5 + $0x180] sm:$0xff]
    %v102 = vld [vmem:[#allocation5 + $0x188] sm:$0xff]
    %v103 = vld [vmem:[#allocation5 + $0x190] sm:$0xff]
    %v104 = vld [vmem:[#allocation5 + $0x198] sm:$0xff]
    %v105 = vld [vmem:[#allocation5 + $0x1a0] sm:$0xff]
    %v106 = vld [vmem:[#allocation5 + $0x1a8] sm:$0xff]
    %v107 = vld [vmem:[#allocation5 + $0x1b0] sm:$0xff]
    %v108 = vld [vmem:[#allocation5 + $0x1b8] sm:$0xff]
    %v109 = vld [vmem:[#allocation5 + $0x1c0] sm:$0xff]
    %v110 = vld [vmem:[#allocation5 + $0x1c8] sm:$0xff]
    %v111 = vld [vmem:[#allocation5 + $0x1d0] sm:$0xff]
    %v112 = vld [vmem:[#allocation5 + $0x1d8] sm:$0xff]
    %v113 = vld [vmem:[#allocation5 + $0x1e0] sm:$0xff]
    %v114 = vld [vmem:[#allocation5 + $0x1e8] sm:$0xff]
    %v115 = vld [vmem:[#allocation5 + $0x1f0] sm:$0xff]
    %v116 = vld [vmem:[#allocation5 + $0x1f8] sm:$0xff]
    %v117 = vld [vmem:[%s3] sm:$0xff]
    %v119 = vlaneseq
    %v120 = vshrl.u32 %v119, 7
    %v121 = vsub.s32 0, %v120
    %v122 = vrot.slane %v117, %v121
    %v123 = vlaneseq
    %v124 = vshrl.u32 %v123, 7
    %v125 = vsub.s32 1, %v124
    %v126 = vrot.slane %v117, %v125
    %v127 = vlaneseq
    %v128 = vshrl.u32 %v127, 7
    %v129 = vsub.s32 2, %v128
    %v130 = vrot.slane %v117, %v129
    %v131 = vlaneseq
    %v132 = vshrl.u32 %v131, 7
    %v133 = vsub.s32 3, %v132
    %v134 = vrot.slane %v117, %v133
    %v135 = vlaneseq
    %v136 = vshrl.u32 %v135, 7
    %v137 = vsub.s32 4, %v136
    %v138 = vrot.slane %v117, %v137
    %v139 = vlaneseq
    %v140 = vshrl.u32 %v139, 7
    %v141 = vsub.s32 5, %v140
    %v142 = vrot.slane %v117, %v141
    %v143 = vlaneseq
    %v144 = vshrl.u32 %v143, 7
    %v145 = vsub.s32 6, %v144
    %v146 = vrot.slane %v117, %v145
    %v147 = vlaneseq
    %v148 = vshrl.u32 %v147, 7
    %v149 = vsub.s32 7, %v148
    %v150 = vrot.slane %v117, %v149
    %vm159 = vcmask 523264
    %v161 = vsel %vm159, %v45, 0
    %v164 = vsel %vm159, %v46, 0
    %v167 = vsel %vm159, %v47, 0
    %v170 = vsel %vm159, %v48, 0
    %v173 = vsel %vm159, %v49, 0
    %v176 = vsel %vm159, %v50, 0
    %v179 = vsel %vm159, %v51, 0
    %v182 = vsel %vm159, %v52, 0
    %184 = vmatprep.subr.mxu0 %v54
    %185 = vmatpush1.msra.mxu0 %v53
    %186 = vmatprep.subr.mxu0 %v62
    %187 = vmatpush1.msra.mxu0 %v61
    %188 = vmatprep.subr.mxu0 %v70
    %189 = vmatpush1.msra.mxu0 %v69
    %190 = vmatprep.subr.mxu0 %v78
    %191 = vmatpush1.msra.mxu0 %v77
    %192 = vmatprep.subr.mxu0 %v86
    %193 = vmatpush1.msra.mxu0 %v85
    %194 = vmatprep.subr.mxu0 %v94
    %195 = vmatpush1.msra.mxu0 %v93
    %196 = vmatprep.subr.mxu0 %v102
    %197 = vmatpush1.msra.mxu0 %v101
    %198 = vmatprep.subr.mxu0 %v110
    %199 = vmatpush1.msra.mxu0 %v109
    %200 = vmatprep.subr.mxu0 0.0
    %201 = vmatpush1.msra.mxu0 0.0
    %202 = vmatprep.subr.mxu0 0.0
    %203 = vmatpush1.msra.mxu0 0.0
    %204 = vmatprep.subr.mxu0 0.0
    %205 = vmatpush1.msra.mxu0 0.0
    %206 = vmatprep.subr.mxu0 0.0
    %207 = vmatpush1.msra.mxu0 0.0
    %208 = vmatprep.subr.mxu0 0.0
    %209 = vmatpush1.msra.mxu0 0.0
    %210 = vmatprep.subr.mxu0 0.0
    %211 = vmatpush1.msra.mxu0 0.0
    %212 = vmatprep.subr.mxu0 0.0
    %213 = vmatpush1.msra.mxu0 0.0
    %214 = vmatprep.subr.mxu0 0.0
    %215 = vmatpush1.msra.mxu0 0.0
    %216 = vmatprep.subr.mxu0 0.0
    %217 = vmatpush1.msra.mxu0 0.0
    %218 = vmatprep.subr.mxu0 0.0
    %219 = vmatpush1.msra.mxu0 0.0
    %220 = vmatprep.subr.mxu0 0.0
    %221 = vmatpush1.msra.mxu0 0.0
    %222 = vmatprep.subr.mxu0 0.0
    %223 = vmatpush1.msra.mxu0 0.0
    %224 = vmatprep.subr.mxu0 0.0
    %225 = vmatpush1.msra.mxu0 0.0
    %226 = vmatprep.subr.mxu0 0.0
    %227 = vmatpush1.msra.mxu0 0.0
    %228 = vmatprep.subr.mxu0 0.0
    %229 = vmatpush1.msra.mxu0 0.0
    %230 = vmatprep.subr.mxu0 0.0
    %231 = vmatpush1.msra.mxu0 0.0
    %232 = vmatprep.subr.mxu0 0.0
    %233 = vmatpush1.msra.mxu0 0.0
    %234 = vmatprep.subr.mxu0 0.0
    %235 = vmatpush1.msra.mxu0 0.0
    %236 = vmatprep.subr.mxu0 0.0
    %237 = vmatpush1.msra.mxu0 0.0
    %238 = vmatprep.subr.mxu0 0.0
    %239 = vmatpush1.msra.mxu0 0.0
    %240 = vmatprep.subr.mxu0 0.0
    %241 = vmatpush1.msra.mxu0 0.0
    %242 = vmatprep.subr.mxu0 0.0
    %243 = vmatpush1.msra.mxu0 0.0
    %244 = vmatprep.subr.mxu0 0.0
    %245 = vmatpush1.msra.mxu0 0.0
    %246 = vmatprep.subr.mxu0 0.0
    %247 = vmatpush1.msra.mxu0 0.0
    %248 = vmatprep.mubr.f32.mxu0 0.0
    %249 = vmatmul.mubr.f32.gmra.mrb[0].mxu0 %v161
    %v250 = vpop.f32.mrb[0].mxu0
    %v251 = vadd.f32 %v122, %v250
    %v252 = vpop.f32.mrb[0].mxu0
    %v253 = vadd.f32 %v126, %v252
    %254 = vmatprep.mubr.f32.mxu0 0.0
    %255 = vmatmul.mubr.f32.gmra.mrb[0].mxu0 %v164
    %v256 = vpop.f32.mrb[0].mxu0
    %v257 = vadd.f32 %v122, %v256
    %v258 = vpop.f32.mrb[0].mxu0
    %v259 = vadd.f32 %v126, %v258
    %260 = vmatprep.mubr.f32.mxu0 0.0
    %261 = vmatmul.mubr.f32.gmra.mrb[0].mxu0 %v167
    %v262 = vpop.f32.mrb[0].mxu0
    %v263 = vadd.f32 %v122, %v262
    %v264 = vpop.f32.mrb[0].mxu0
    %v265 = vadd.f32 %v126, %v264
    %266 = vmatprep.mubr.f32.mxu0 0.0
    %267 = vmatmul.mubr.f32.gmra.mrb[0].mxu0 %v170
    %v268 = vpop.f32.mrb[0].mxu0
    %v269 = vadd.f32 %v122, %v268
    %v270 = vpop.f32.mrb[0].mxu0
    %v271 = vadd.f32 %v126, %v270
    %272 = vmatprep.mubr.f32.mxu0 0.0
    %273 = vmatmul.mubr.f32.gmra.mrb[0].mxu0 %v173
    %v274 = vpop.f32.mrb[0].mxu0
    %v275 = vadd.f32 %v122, %v274
    %v276 = vpop.f32.mrb[0].mxu0
    %v277 = vadd.f32 %v126, %v276
    %278 = vmatprep.mubr.f32.mxu0 0.0
    %279 = vmatmul.mubr.f32.gmra.mrb[0].mxu0 %v176
    %v280 = vpop.f32.mrb[0].mxu0
    %v281 = vadd.f32 %v122, %v280
    %v282 = vpop.f32.mrb[0].mxu0
    %v283 = vadd.f32 %v126, %v282
    %284 = vmatprep.mubr.f32.mxu0 0.0
    %285 = vmatmul.mubr.f32.gmra.mrb[0].mxu0 %v179
    %v286 = vpop.f32.mrb[0].mxu0
    %v287 = vadd.f32 %v122, %v286
    %v288 = vpop.f32.mrb[0].mxu0
    %v289 = vadd.f32 %v126, %v288
    %290 = vmatprep.mubr.f32.mxu0 0.0
    %291 = vmatmul.mubr.f32.gmra.mrb[0].mxu0 %v182
    %v292 = vpop.f32.mrb[0].mxu0
    %v293 = vadd.f32 %v122, %v292
    %v294 = vpop.f32.mrb[0].mxu0
    %v295 = vadd.f32 %v126, %v294
    %296 = vdwg.mxu0
    %297 = vmatprep.subr.mxu0 %v56
    %298 = vmatpush1.msra.mxu0 %v55
    %299 = vmatprep.subr.mxu0 %v64
    %300 = vmatpush1.msra.mxu0 %v63
    %301 = vmatprep.subr.mxu0 %v72
    %302 = vmatpush1.msra.mxu0 %v71
    %303 = vmatprep.subr.mxu0 %v80
    %304 = vmatpush1.msra.mxu0 %v79
    %305 = vmatprep.subr.mxu0 %v88
    %306 = vmatpush1.msra.mxu0 %v87
    %307 = vmatprep.subr.mxu0 %v96
    %308 = vmatpush1.msra.mxu0 %v95
    %309 = vmatprep.subr.mxu0 %v104
    %310 = vmatpush1.msra.mxu0 %v103
    %311 = vmatprep.subr.mxu0 %v112
    %312 = vmatpush1.msra.mxu0 %v111
    %313 = vmatprep.subr.mxu0 0.0
    %314 = vmatpush1.msra.mxu0 0.0
    %315 = vmatprep.subr.mxu0 0.0
    %316 = vmatpush1.msra.mxu0 0.0
    %317 = vmatprep.subr.mxu0 0.0
    %318 = vmatpush1.msra.mxu0 0.0
    %319 = vmatprep.subr.mxu0 0.0
    %320 = vmatpush1.msra.mxu0 0.0
    %321 = vmatprep.subr.mxu0 0.0
    %322 = vmatpush1.msra.mxu0 0.0
    %323 = vmatprep.subr.mxu0 0.0
    %324 = vmatpush1.msra.mxu0 0.0
    %325 = vmatprep.subr.mxu0 0.0
    %326 = vmatpush1.msra.mxu0 0.0
    %327 = vmatprep.subr.mxu0 0.0
    %328 = vmatpush1.msra.mxu0 0.0
    %329 = vmatprep.subr.mxu0 0.0
    %330 = vmatpush1.msra.mxu0 0.0
    %331 = vmatprep.subr.mxu0 0.0
    %332 = vmatpush1.msra.mxu0 0.0
    %333 = vmatprep.subr.mxu0 0.0
    %334 = vmatpush1.msra.mxu0 0.0
    %335 = vmatprep.subr.mxu0 0.0
    %336 = vmatpush1.msra.mxu0 0.0
    %337 = vmatprep.subr.mxu0 0.0
    %338 = vmatpush1.msra.mxu0 0.0
    %339 = vmatprep.subr.mxu0 0.0
    %340 = vmatpush1.msra.mxu0 0.0
    %341 = vmatprep.subr.mxu0 0.0
    %342 = vmatpush1.msra.mxu0 0.0
    %343 = vmatprep.subr.mxu0 0.0
    %344 = vmatpush1.msra.mxu0 0.0
    %345 = vmatprep.subr.mxu0 0.0
    %346 = vmatpush1.msra.mxu0 0.0
    %347 = vmatprep.subr.mxu0 0.0
    %348 = vmatpush1.msra.mxu0 0.0
    %349 = vmatprep.subr.mxu0 0.0
    %350 = vmatpush1.msra.mxu0 0.0
    %351 = vmatprep.subr.mxu0 0.0
    %352 = vmatpush1.msra.mxu0 0.0
    %353 = vmatprep.subr.mxu0 0.0
    %354 = vmatpush1.msra.mxu0 0.0
    %355 = vmatprep.subr.mxu0 0.0
    %356 = vmatpush1.msra.mxu0 0.0
    %357 = vmatprep.subr.mxu0 0.0
    %358 = vmatpush1.msra.mxu0 0.0
    %359 = vmatprep.subr.mxu0 0.0
    %360 = vmatpush1.msra.mxu0 0.0
    %361 = vmatprep.mubr.f32.mxu0 0.0
    %362 = vmatmul.mubr.f32.gmra.mrb[0].mxu0 %v161
    %v363 = vpop.f32.mrb[0].mxu0
    %v364 = vadd.f32 %v130, %v363
    %v365 = vpop.f32.mrb[0].mxu0
    %v366 = vadd.f32 %v134, %v365
    %367 = vmatprep.mubr.f32.mxu0 0.0
    %368 = vmatmul.mubr.f32.gmra.mrb[0].mxu0 %v164
    %v369 = vpop.f32.mrb[0].mxu0
    %v370 = vadd.f32 %v130, %v369
    %v371 = vpop.f32.mrb[0].mxu0
    %v372 = vadd.f32 %v134, %v371
    %373 = vmatprep.mubr.f32.mxu0 0.0
    %374 = vmatmul.mubr.f32.gmra.mrb[0].mxu0 %v167
    %v375 = vpop.f32.mrb[0].mxu0
    %v376 = vadd.f32 %v130, %v375
    %v377 = vpop.f32.mrb[0].mxu0
    %v378 = vadd.f32 %v134, %v377
    %379 = vmatprep.mubr.f32.mxu0 0.0
    %380 = vmatmul.mubr.f32.gmra.mrb[0].mxu0 %v170
    %v381 = vpop.f32.mrb[0].mxu0
    %v382 = vadd.f32 %v130, %v381
    %v383 = vpop.f32.mrb[0].mxu0
    %v384 = vadd.f32 %v134, %v383
    %385 = vmatprep.mubr.f32.mxu0 0.0
    %386 = vmatmul.mubr.f32.gmra.mrb[0].mxu0 %v173
    %v387 = vpop.f32.mrb[0].mxu0
    %v388 = vadd.f32 %v130, %v387
    %v389 = vpop.f32.mrb[0].mxu0
    %v390 = vadd.f32 %v134, %v389
    %391 = vmatprep.mubr.f32.mxu0 0.0
    %392 = vmatmul.mubr.f32.gmra.mrb[0].mxu0 %v176
    %v393 = vpop.f32.mrb[0].mxu0
    %v394 = vadd.f32 %v130, %v393
    %v395 = vpop.f32.mrb[0].mxu0
    %v396 = vadd.f32 %v134, %v395
    %397 = vmatprep.mubr.f32.mxu0 0.0
    %398 = vmatmul.mubr.f32.gmra.mrb[0].mxu0 %v179
    %v399 = vpop.f32.mrb[0].mxu0
    %v400 = vadd.f32 %v130, %v399
    %v401 = vpop.f32.mrb[0].mxu0
    %v402 = vadd.f32 %v134, %v401
    %403 = vmatprep.mubr.f32.mxu0 0.0
    %404 = vmatmul.mubr.f32.gmra.mrb[0].mxu0 %v182
    %v405 = vpop.f32.mrb[0].mxu0
    %v406 = vadd.f32 %v130, %v405
    %v407 = vpop.f32.mrb[0].mxu0
    %v408 = vadd.f32 %v134, %v407
    %409 = vdwg.mxu0
    %410 = vmatprep.subr.mxu0 %v58
    %411 = vmatpush1.msra.mxu0 %v57
    %412 = vmatprep.subr.mxu0 %v66
    %413 = vmatpush1.msra.mxu0 %v65
    %414 = vmatprep.subr.mxu0 %v74
    %415 = vmatpush1.msra.mxu0 %v73
    %416 = vmatprep.subr.mxu0 %v82
    %417 = vmatpush1.msra.mxu0 %v81
    %418 = vmatprep.subr.mxu0 %v90
    %419 = vmatpush1.msra.mxu0 %v89
    %420 = vmatprep.subr.mxu0 %v98
    %421 = vmatpush1.msra.mxu0 %v97
    %422 = vmatprep.subr.mxu0 %v106
    %423 = vmatpush1.msra.mxu0 %v105
    %424 = vmatprep.subr.mxu0 %v114
    %425 = vmatpush1.msra.mxu0 %v113
    %426 = vmatprep.subr.mxu0 0.0
    %427 = vmatpush1.msra.mxu0 0.0
    %428 = vmatprep.subr.mxu0 0.0
    %429 = vmatpush1.msra.mxu0 0.0
    %430 = vmatprep.subr.mxu0 0.0
    %431 = vmatpush1.msra.mxu0 0.0
    %432 = vmatprep.subr.mxu0 0.0
    %433 = vmatpush1.msra.mxu0 0.0
    %434 = vmatprep.subr.mxu0 0.0
    %435 = vmatpush1.msra.mxu0 0.0
    %436 = vmatprep.subr.mxu0 0.0
    %437 = vmatpush1.msra.mxu0 0.0
    %438 = vmatprep.subr.mxu0 0.0
    %439 = vmatpush1.msra.mxu0 0.0
    %440 = vmatprep.subr.mxu0 0.0
    %441 = vmatpush1.msra.mxu0 0.0
    %442 = vmatprep.subr.mxu0 0.0
    %443 = vmatpush1.msra.mxu0 0.0
    %444 = vmatprep.subr.mxu0 0.0
    %445 = vmatpush1.msra.mxu0 0.0
    %446 = vmatprep.subr.mxu0 0.0
    %447 = vmatpush1.msra.mxu0 0.0
    %448 = vmatprep.subr.mxu0 0.0
    %449 = vmatpush1.msra.mxu0 0.0
    %450 = vmatprep.subr.mxu0 0.0
    %451 = vmatpush1.msra.mxu0 0.0
    %452 = vmatprep.subr.mxu0 0.0
    %453 = vmatpush1.msra.mxu0 0.0
    %454 = vmatprep.subr.mxu0 0.0
    %455 = vmatpush1.msra.mxu0 0.0
    %456 = vmatprep.subr.mxu0 0.0
    %457 = vmatpush1.msra.mxu0 0.0
    %458 = vmatprep.subr.mxu0 0.0
    %459 = vmatpush1.msra.mxu0 0.0
    %460 = vmatprep.subr.mxu0 0.0
    %461 = vmatpush1.msra.mxu0 0.0
    %462 = vmatprep.subr.mxu0 0.0
    %463 = vmatpush1.msra.mxu0 0.0
    %464 = vmatprep.subr.mxu0 0.0
    %465 = vmatpush1.msra.mxu0 0.0
    %466 = vmatprep.subr.mxu0 0.0
    %467 = vmatpush1.msra.mxu0 0.0
    %468 = vmatprep.subr.mxu0 0.0
    %469 = vmatpush1.msra.mxu0 0.0
    %470 = vmatprep.subr.mxu0 0.0
    %471 = vmatpush1.msra.mxu0 0.0
    %472 = vmatprep.subr.mxu0 0.0
    %473 = vmatpush1.msra.mxu0 0.0
    %474 = vmatprep.mubr.f32.mxu0 0.0
    %475 = vmatmul.mubr.f32.gmra.mrb[0].mxu0 %v161
    %v476 = vpop.f32.mrb[0].mxu0
    %v477 = vadd.f32 %v138, %v476
    %v478 = vpop.f32.mrb[0].mxu0
    %v479 = vadd.f32 %v142, %v478
    %480 = vmatprep.mubr.f32.mxu0 0.0
    %481 = vmatmul.mubr.f32.gmra.mrb[0].mxu0 %v164
    %v482 = vpop.f32.mrb[0].mxu0
    %v483 = vadd.f32 %v138, %v482
    %v484 = vpop.f32.mrb[0].mxu0
    %v485 = vadd.f32 %v142, %v484
    %486 = vmatprep.mubr.f32.mxu0 0.0
    %487 = vmatmul.mubr.f32.gmra.mrb[0].mxu0 %v167
    %v488 = vpop.f32.mrb[0].mxu0
    %v489 = vadd.f32 %v138, %v488
    %v490 = vpop.f32.mrb[0].mxu0
    %v491 = vadd.f32 %v142, %v490
    %492 = vmatprep.mubr.f32.mxu0 0.0
    %493 = vmatmul.mubr.f32.gmra.mrb[0].mxu0 %v170
    %v494 = vpop.f32.mrb[0].mxu0
    %v495 = vadd.f32 %v138, %v494
    %v496 = vpop.f32.mrb[0].mxu0
    %v497 = vadd.f32 %v142, %v496
    %498 = vmatprep.mubr.f32.mxu0 0.0
    %499 = vmatmul.mubr.f32.gmra.mrb[0].mxu0 %v173
    %v500 = vpop.f32.mrb[0].mxu0
    %v501 = vadd.f32 %v138, %v500
    %v502 = vpop.f32.mrb[0].mxu0
    %v503 = vadd.f32 %v142, %v502
    %504 = vmatprep.mubr.f32.mxu0 0.0
    %505 = vmatmul.mubr.f32.gmra.mrb[0].mxu0 %v176
    %v506 = vpop.f32.mrb[0].mxu0
    %v507 = vadd.f32 %v138, %v506
    %v508 = vpop.f32.mrb[0].mxu0
    %v509 = vadd.f32 %v142, %v508
    %510 = vmatprep.mubr.f32.mxu0 0.0
    %511 = vmatmul.mubr.f32.gmra.mrb[0].mxu0 %v179
    %v512 = vpop.f32.mrb[0].mxu0
    %v513 = vadd.f32 %v138, %v512
    %v514 = vpop.f32.mrb[0].mxu0
    %v515 = vadd.f32 %v142, %v514
    %516 = vmatprep.mubr.f32.mxu0 0.0
    %517 = vmatmul.mubr.f32.gmra.mrb[0].mxu0 %v182
    %v518 = vpop.f32.mrb[0].mxu0
    %v519 = vadd.f32 %v138, %v518
    %v520 = vpop.f32.mrb[0].mxu0
    %v521 = vadd.f32 %v142, %v520
    %522 = vdwg.mxu0
    %523 = vmatprep.subr.mxu0 %v60
    %524 = vmatpush1.msra.mxu0 %v59
    %525 = vmatprep.subr.mxu0 %v68
    %526 = vmatpush1.msra.mxu0 %v67
    %527 = vmatprep.subr.mxu0 %v76
    %528 = vmatpush1.msra.mxu0 %v75
    %529 = vmatprep.subr.mxu0 %v84
    %530 = vmatpush1.msra.mxu0 %v83
    %531 = vmatprep.subr.mxu0 %v92
    %532 = vmatpush1.msra.mxu0 %v91
    %533 = vmatprep.subr.mxu0 %v100
    %534 = vmatpush1.msra.mxu0 %v99
    %535 = vmatprep.subr.mxu0 %v108
    %536 = vmatpush1.msra.mxu0 %v107
    %537 = vmatprep.subr.mxu0 %v116
    %538 = vmatpush1.msra.mxu0 %v115
    %539 = vmatprep.subr.mxu0 0.0
    %540 = vmatpush1.msra.mxu0 0.0
    %541 = vmatprep.subr.mxu0 0.0
    %542 = vmatpush1.msra.mxu0 0.0
    %543 = vmatprep.subr.mxu0 0.0
    %544 = vmatpush1.msra.mxu0 0.0
    %545 = vmatprep.subr.mxu0 0.0
    %546 = vmatpush1.msra.mxu0 0.0
    %547 = vmatprep.subr.mxu0 0.0
    %548 = vmatpush1.msra.mxu0 0.0
    %549 = vmatprep.subr.mxu0 0.0
    %550 = vmatpush1.msra.mxu0 0.0
    %551 = vmatprep.subr.mxu0 0.0
    %552 = vmatpush1.msra.mxu0 0.0
    %553 = vmatprep.subr.mxu0 0.0
    %554 = vmatpush1.msra.mxu0 0.0
    %555 = vmatprep.subr.mxu0 0.0
    %556 = vmatpush1.msra.mxu0 0.0
    %557 = vmatprep.subr.mxu0 0.0
    %558 = vmatpush1.msra.mxu0 0.0
    %559 = vmatprep.subr.mxu0 0.0
    %560 = vmatpush1.msra.mxu0 0.0
    %561 = vmatprep.subr.mxu0 0.0
    %562 = vmatpush1.msra.mxu0 0.0
    %563 = vmatprep.subr.mxu0 0.0
    %564 = vmatpush1.msra.mxu0 0.0
    %565 = vmatprep.subr.mxu0 0.0
    %566 = vmatpush1.msra.mxu0 0.0
    %567 = vmatprep.subr.mxu0 0.0
    %568 = vmatpush1.msra.mxu0 0.0
    %569 = vmatprep.subr.mxu0 0.0
    %570 = vmatpush1.msra.mxu0 0.0
    %571 = vmatprep.subr.mxu0 0.0
    %572 = vmatpush1.msra.mxu0 0.0
    %573 = vmatprep.subr.mxu0 0.0
    %574 = vmatpush1.msra.mxu0 0.0
    %575 = vmatprep.subr.mxu0 0.0
    %576 = vmatpush1.msra.mxu0 0.0
    %577 = vmatprep.subr.mxu0 0.0
    %578 = vmatpush1.msra.mxu0 0.0
    %579 = vmatprep.subr.mxu0 0.0
    %580 = vmatpush1.msra.mxu0 0.0
    %581 = vmatprep.subr.mxu0 0.0
    %582 = vmatpush1.msra.mxu0 0.0
    %583 = vmatprep.subr.mxu0 0.0
    %584 = vmatpush1.msra.mxu0 0.0
    %585 = vmatprep.subr.mxu0 0.0
    %586 = vmatpush1.msra.mxu0 0.0
    %587 = vmatprep.mubr.f32.mxu0 0.0
    %588 = vmatmul.mubr.f32.gmra.mrb[0].mxu0 %v161
    %v589 = vpop.f32.mrb[0].mxu0
    %v590 = vadd.f32 %v146, %v589
    %v591 = vpop.f32.mrb[0].mxu0
    %v592 = vadd.f32 %v150, %v591
    %593 = vmatprep.mubr.f32.mxu0 0.0
    %594 = vmatmul.mubr.f32.gmra.mrb[0].mxu0 %v164
    %v595 = vpop.f32.mrb[0].mxu0
    %v596 = vadd.f32 %v146, %v595
    %v597 = vpop.f32.mrb[0].mxu0
    %v598 = vadd.f32 %v150, %v597
    %599 = vmatprep.mubr.f32.mxu0 0.0
    %600 = vmatmul.mubr.f32.gmra.mrb[0].mxu0 %v167
    %v601 = vpop.f32.mrb[0].mxu0
    %v602 = vadd.f32 %v146, %v601
    %v603 = vpop.f32.mrb[0].mxu0
    %v604 = vadd.f32 %v150, %v603
    %605 = vmatprep.mubr.f32.mxu0 0.0
    %606 = vmatmul.mubr.f32.gmra.mrb[0].mxu0 %v170
    %v607 = vpop.f32.mrb[0].mxu0
    %v608 = vadd.f32 %v146, %v607
    %v609 = vpop.f32.mrb[0].mxu0
    %v610 = vadd.f32 %v150, %v609
    %611 = vmatprep.mubr.f32.mxu0 0.0
    %612 = vmatmul.mubr.f32.gmra.mrb[0].mxu0 %v173
    %v613 = vpop.f32.mrb[0].mxu0
    %v614 = vadd.f32 %v146, %v613
    %v615 = vpop.f32.mrb[0].mxu0
    %v616 = vadd.f32 %v150, %v615
    %617 = vmatprep.mubr.f32.mxu0 0.0
    %618 = vmatmul.mubr.f32.gmra.mrb[0].mxu0 %v176
    %v619 = vpop.f32.mrb[0].mxu0
    %v620 = vadd.f32 %v146, %v619
    %v621 = vpop.f32.mrb[0].mxu0
    %v622 = vadd.f32 %v150, %v621
    %623 = vmatprep.mubr.f32.mxu0 0.0
    %624 = vmatmul.mubr.f32.gmra.mrb[0].mxu0 %v179
    %v625 = vpop.f32.mrb[0].mxu0
    %v626 = vadd.f32 %v146, %v625
    %v627 = vpop.f32.mrb[0].mxu0
    %v628 = vadd.f32 %v150, %v627
    %629 = vmatprep.mubr.f32.mxu0 0.0
    %630 = vmatmul.mubr.f32.gmra.mrb[0].mxu0 %v182
    %v631 = vpop.f32.mrb[0].mxu0
    %v632 = vadd.f32 %v146, %v631
    %v633 = vpop.f32.mrb[0].mxu0
    %v634 = vadd.f32 %v150, %v633
    %635 = vdwg.mxu0
    %636 = vst [vmem:[#allocation2] sm:$0xff] %v251
    %637 = vst [vmem:[#allocation2 + $0x8] sm:$0xff] %v253
    %638 = vst [vmem:[#allocation2 + $0x10] sm:$0xff] %v364
    %639 = vst [vmem:[#allocation2 + $0x18] sm:$0xff] %v366
    %640 = vst [vmem:[#allocation2 + $0x20] sm:$0xff] %v477
    %641 = vst [vmem:[#allocation2 + $0x28] sm:$0xff] %v479
    %642 = vst [vmem:[#allocation2 + $0x30] sm:$0xff] %v590
    %643 = vst [vmem:[#allocation2 + $0x38] sm:$0xff] %v592
    %644 = vst [vmem:[#allocation2 + $0x40] sm:$0xff] %v257
    %645 = vst [vmem:[#allocation2 + $0x48] sm:$0xff] %v259
    %646 = vst [vmem:[#allocation2 + $0x50] sm:$0xff] %v370
    %647 = vst [vmem:[#allocation2 + $0x58] sm:$0xff] %v372
    %648 = vst [vmem:[#allocation2 + $0x60] sm:$0xff] %v483
    %649 = vst [vmem:[#allocation2 + $0x68] sm:$0xff] %v485
    %650 = vst [vmem:[#allocation2 + $0x70] sm:$0xff] %v596
    %651 = vst [vmem:[#allocation2 + $0x78] sm:$0xff] %v598
    %652 = vst [vmem:[#allocation2 + $0x80] sm:$0xff] %v263
    %653 = vst [vmem:[#allocation2 + $0x88] sm:$0xff] %v265
    %654 = vst [vmem:[#allocation2 + $0x90] sm:$0xff] %v376
    %655 = vst [vmem:[#allocation2 + $0x98] sm:$0xff] %v378
    %656 = vst [vmem:[#allocation2 + $0xa0] sm:$0xff] %v489
    %657 = vst [vmem:[#allocation2 + $0xa8] sm:$0xff] %v491
    %658 = vst [vmem:[#allocation2 + $0xb0] sm:$0xff] %v602
    %659 = vst [vmem:[#allocation2 + $0xb8] sm:$0xff] %v604
    %660 = vst [vmem:[#allocation2 + $0xc0] sm:$0xff] %v269
    %661 = vst [vmem:[#allocation2 + $0xc8] sm:$0xff] %v271
    %662 = vst [vmem:[#allocation2 + $0xd0] sm:$0xff] %v382
    %663 = vst [vmem:[#allocation2 + $0xd8] sm:$0xff] %v384
    %664 = vst [vmem:[#allocation2 + $0xe0] sm:$0xff] %v495
    %665 = vst [vmem:[#allocation2 + $0xe8] sm:$0xff] %v497
    %666 = vst [vmem:[#allocation2 + $0xf0] sm:$0xff] %v608
    %667 = vst [vmem:[#allocation2 + $0xf8] sm:$0xff] %v610
    %668 = vst [vmem:[#allocation2 + $0x100] sm:$0xff] %v275
    %669 = vst [vmem:[#allocation2 + $0x108] sm:$0xff] %v277
    %670 = vst [vmem:[#allocation2 + $0x110] sm:$0xff] %v388
    %671 = vst [vmem:[#allocation2 + $0x118] sm:$0xff] %v390
    %672 = vst [vmem:[#allocation2 + $0x120] sm:$0xff] %v501
    %673 = vst [vmem:[#allocation2 + $0x128] sm:$0xff] %v503
    %674 = vst [vmem:[#allocation2 + $0x130] sm:$0xff] %v614
    %675 = vst [vmem:[#allocation2 + $0x138] sm:$0xff] %v616
    %676 = vst [vmem:[#allocation2 + $0x140] sm:$0xff] %v281
    %677 = vst [vmem:[#allocation2 + $0x148] sm:$0xff] %v283
    %678 = vst [vmem:[#allocation2 + $0x150] sm:$0xff] %v394
    %679 = vst [vmem:[#allocation2 + $0x158] sm:$0xff] %v396
    %680 = vst [vmem:[#allocation2 + $0x160] sm:$0xff] %v507
    %681 = vst [vmem:[#allocation2 + $0x168] sm:$0xff] %v509
    %682 = vst [vmem:[#allocation2 + $0x170] sm:$0xff] %v620
    %683 = vst [vmem:[#allocation2 + $0x178] sm:$0xff] %v622
    %684 = vst [vmem:[#allocation2 + $0x180] sm:$0xff] %v287
    %685 = vst [vmem:[#allocation2 + $0x188] sm:$0xff] %v289
    %686 = vst [vmem:[#allocation2 + $0x190] sm:$0xff] %v400
    %687 = vst [vmem:[#allocation2 + $0x198] sm:$0xff] %v402
    %688 = vst [vmem:[#allocation2 + $0x1a0] sm:$0xff] %v513
    %689 = vst [vmem:[#allocation2 + $0x1a8] sm:$0xff] %v515
    %690 = vst [vmem:[#allocation2 + $0x1b0] sm:$0xff] %v626
    %691 = vst [vmem:[#allocation2 + $0x1b8] sm:$0xff] %v628
    %692 = vst [vmem:[#allocation2 + $0x1c0] sm:$0xff] %v293
    %693 = vst [vmem:[#allocation2 + $0x1c8] sm:$0xff] %v295
    %694 = vst [vmem:[#allocation2 + $0x1d0] sm:$0xff] %v406
    %695 = vst [vmem:[#allocation2 + $0x1d8] sm:$0xff] %v408
    %696 = vst [vmem:[#allocation2 + $0x1e0] sm:$0xff] %v519
    %697 = vst [vmem:[#allocation2 + $0x1e8] sm:$0xff] %v521
    %698 = vst [vmem:[#allocation2 + $0x1f0] sm:$0xff] %v632
    %699 = vst [vmem:[#allocation2 + $0x1f8] sm:$0xff] %v634
    %v700 = vld [vmem:[#allocation7] sm:$0xff]
    %v701 = vld [vmem:[#allocation7 + $0x8] sm:$0xff]
    %v702 = vld [vmem:[#allocation7 + $0x10] sm:$0xff]
    %v703 = vld [vmem:[#allocation7 + $0x18] sm:$0xff]
    %v704 = vld [vmem:[#allocation7 + $0x20] sm:$0xff]
    %v705 = vld [vmem:[#allocation7 + $0x28] sm:$0xff]
    %v706 = vld [vmem:[#allocation7 + $0x30] sm:$0xff]
    %v707 = vld [vmem:[#allocation7 + $0x38] sm:$0xff]
    %v708 = vld [vmem:[#allocation7 + $0x40] sm:$0xff]
    %v709 = vld [vmem:[#allocation7 + $0x48] sm:$0xff]
    %v710 = vld [vmem:[#allocation7 + $0x50] sm:$0xff]
    %v711 = vld [vmem:[#allocation7 + $0x58] sm:$0xff]
    %v712 = vld [vmem:[#allocation7 + $0x60] sm:$0xff]
    %v713 = vld [vmem:[#allocation7 + $0x68] sm:$0xff]
    %v714 = vld [vmem:[#allocation7 + $0x70] sm:$0xff]
    %v715 = vld [vmem:[#allocation7 + $0x78] sm:$0xff]
    %v716 = vld [vmem:[#allocation7 + $0x80] sm:$0xff]
    %v717 = vld [vmem:[#allocation7 + $0x88] sm:$0xff]
    %v718 = vld [vmem:[#allocation7 + $0x90] sm:$0xff]
    %v719 = vld [vmem:[#allocation7 + $0x98] sm:$0xff]
    %v720 = vld [vmem:[#allocation7 + $0xa0] sm:$0xff]
    %v721 = vld [vmem:[#allocation7 + $0xa8] sm:$0xff]
    %v722 = vld [vmem:[#allocation7 + $0xb0] sm:$0xff]
    %v723 = vld [vmem:[#allocation7 + $0xb8] sm:$0xff]
    %v724 = vld [vmem:[#allocation7 + $0xc0] sm:$0xff]
    %v725 = vld [vmem:[#allocation7 + $0xc8] sm:$0xff]
    %v726 = vld [vmem:[#allocation7 + $0xd0] sm:$0xff]
    %v727 = vld [vmem:[#allocation7 + $0xd8] sm:$0xff]
    %v728 = vld [vmem:[#allocation7 + $0xe0] sm:$0xff]
    %v729 = vld [vmem:[#allocation7 + $0xe8] sm:$0xff]
    %v730 = vld [vmem:[#allocation7 + $0xf0] sm:$0xff]
    %v731 = vld [vmem:[#allocation7 + $0xf8] sm:$0xff]
    %v732 = vld [vmem:[#allocation7 + $0x100] sm:$0xff]
    %v733 = vld [vmem:[#allocation7 + $0x108] sm:$0xff]
    %v734 = vld [vmem:[#allocation7 + $0x110] sm:$0xff]
    %v735 = vld [vmem:[#allocation7 + $0x118] sm:$0xff]
    %v736 = vld [vmem:[#allocation7 + $0x120] sm:$0xff]
    %v737 = vld [vmem:[#allocation7 + $0x128] sm:$0xff]
    %v738 = vld [vmem:[#allocation7 + $0x130] sm:$0xff]
    %v739 = vld [vmem:[#allocation7 + $0x138] sm:$0xff]
    %v740 = vld [vmem:[#allocation7 + $0x140] sm:$0xff]
    %v741 = vld [vmem:[#allocation7 + $0x148] sm:$0xff]
    %v742 = vld [vmem:[#allocation7 + $0x150] sm:$0xff]
    %v743 = vld [vmem:[#allocation7 + $0x158] sm:$0xff]
    %v744 = vld [vmem:[#allocation7 + $0x160] sm:$0xff]
    %v745 = vld [vmem:[#allocation7 + $0x168] sm:$0xff]
    %v746 = vld [vmem:[#allocation7 + $0x170] sm:$0xff]
    %v747 = vld [vmem:[#allocation7 + $0x178] sm:$0xff]
    %v748 = vld [vmem:[#allocation7 + $0x180] sm:$0xff]
    %v749 = vld [vmem:[#allocation7 + $0x188] sm:$0xff]
    %v750 = vld [vmem:[#allocation7 + $0x190] sm:$0xff]
    %v751 = vld [vmem:[#allocation7 + $0x198] sm:$0xff]
    %v752 = vld [vmem:[#allocation7 + $0x1a0] sm:$0xff]
    %v753 = vld [vmem:[#allocation7 + $0x1a8] sm:$0xff]
    %v754 = vld [vmem:[#allocation7 + $0x1b0] sm:$0xff]
    %v755 = vld [vmem:[#allocation7 + $0x1b8] sm:$0xff]
    %v756 = vld [vmem:[#allocation7 + $0x1c0] sm:$0xff]
    %v757 = vld [vmem:[#allocation7 + $0x1c8] sm:$0xff]
    %v758 = vld [vmem:[#allocation7 + $0x1d0] sm:$0xff]
    %v759 = vld [vmem:[#allocation7 + $0x1d8] sm:$0xff]
    %v760 = vld [vmem:[#allocation7 + $0x1e0] sm:$0xff]
    %v761 = vld [vmem:[#allocation7 + $0x1e8] sm:$0xff]
    %v762 = vld [vmem:[#allocation7 + $0x1f0] sm:$0xff]
    %v763 = vld [vmem:[#allocation7 + $0x1f8] sm:$0xff]
    %v764 = vld [vmem:[#allocation2] sm:$0xff]
    %v765 = vld [vmem:[#allocation2 + $0x8] sm:$0xff]
    %v766 = vld [vmem:[#allocation2 + $0x10] sm:$0xff]
    %v767 = vld [vmem:[#allocation2 + $0x18] sm:$0xff]
    %v768 = vld [vmem:[#allocation2 + $0x1e0] sm:$0xff]
    %v769 = vld [vmem:[#allocation2 + $0x1e8] sm:$0xff]
    %v770 = vld [vmem:[#allocation2 + $0x1f0] sm:$0xff]
    %v771 = vld [vmem:[#allocation2 + $0x1f8] sm:$0xff]
    %772 = vmatprep.subr.mxu0 %v701
    %773 = vmatpush1.msra.mxu0 %v700
    %774 = vmatprep.subr.mxu0 %v705
    %775 = vmatpush1.msra.mxu0 %v704
    %776 = vmatprep.subr.mxu0 %v709
    %777 = vmatpush1.msra.mxu0 %v708
    %778 = vmatprep.subr.mxu0 %v713
    %779 = vmatpush1.msra.mxu0 %v712
    %780 = vmatprep.subr.mxu0 %v717
    %781 = vmatpush1.msra.mxu0 %v716
    %782 = vmatprep.subr.mxu0 %v721
    %783 = vmatpush1.msra.mxu0 %v720
    %784 = vmatprep.subr.mxu0 %v725
    %785 = vmatpush1.msra.mxu0 %v724
    %786 = vmatprep.subr.mxu0 %v729
    %787 = vmatpush1.msra.mxu0 %v728
    %788 = vmatprep.subr.mxu0 %v733
    %789 = vmatpush1.msra.mxu0 %v732
    %790 = vmatprep.subr.mxu0 %v737
    %791 = vmatpush1.msra.mxu0 %v736
    %792 = vmatprep.subr.mxu0 %v741
    %793 = vmatpush1.msra.mxu0 %v740
    %794 = vmatprep.subr.mxu0 %v745
    %795 = vmatpush1.msra.mxu0 %v744
    %796 = vmatprep.subr.mxu0 %v749
    %797 = vmatpush1.msra.mxu0 %v748
    %798 = vmatprep.subr.mxu0 %v753
    %799 = vmatpush1.msra.mxu0 %v752
    %800 = vmatprep.subr.mxu0 %v757
    %801 = vmatpush1.msra.mxu0 %v756
    %802 = vmatprep.subr.mxu0 %v761
    %803 = vmatpush1.msra.mxu0 %v760
    %804 = vmatprep.subr.mxu0 0.0
    %805 = vmatpush1.msra.mxu0 0.0
    %806 = vmatprep.subr.mxu0 0.0
    %807 = vmatpush1.msra.mxu0 0.0
    %808 = vmatprep.subr.mxu0 0.0
    %809 = vmatpush1.msra.mxu0 0.0
    %810 = vmatprep.subr.mxu0 0.0
    %811 = vmatpush1.msra.mxu0 0.0
    %812 = vmatprep.subr.mxu0 0.0
    %813 = vmatpush1.msra.mxu0 0.0
    %814 = vmatprep.subr.mxu0 0.0
    %815 = vmatpush1.msra.mxu0 0.0
    %816 = vmatprep.subr.mxu0 0.0
    %817 = vmatpush1.msra.mxu0 0.0
    %818 = vmatprep.subr.mxu0 0.0
    %819 = vmatpush1.msra.mxu0 0.0
    %820 = vmatprep.subr.mxu0 0.0
    %821 = vmatpush1.msra.mxu0 0.0
    %822 = vmatprep.subr.mxu0 0.0
    %823 = vmatpush1.msra.mxu0 0.0
    %824 = vmatprep.subr.mxu0 0.0
    %825 = vmatpush1.msra.mxu0 0.0
    %826 = vmatprep.subr.mxu0 0.0
    %827 = vmatpush1.msra.mxu0 0.0
    %828 = vmatprep.subr.mxu0 0.0
    %829 = vmatpush1.msra.mxu0 0.0
    %830 = vmatprep.subr.mxu0 0.0
    %831 = vmatpush1.msra.mxu0 0.0
    %832 = vmatprep.subr.mxu0 0.0
    %833 = vmatpush1.msra.mxu0 0.0
    %834 = vmatprep.subr.mxu0 0.0
    %835 = vmatpush1.msra.mxu0 0.0
    %836 = vmatprep.mubr.f32.mxu0 0.0
    %837 = vmatmul.mubr.f32.gmra.mrb[0].mxu0 0.0
    %v838 = vpop.f32.mrb[0].mxu0
    %v839 = vadd.f32 %v764, %v838
    %v840 = vpop.f32.mrb[0].mxu0
    %v841 = vadd.f32 %v765, %v840
    %842 = vdwg.mxu0
    %843 = vmatprep.subr.mxu0 %v703
    %844 = vmatpush1.msra.mxu0 %v702
    %845 = vmatprep.subr.mxu0 %v707
    %846 = vmatpush1.msra.mxu0 %v706
    %847 = vmatprep.subr.mxu0 %v711
    %848 = vmatpush1.msra.mxu0 %v710
    %849 = vmatprep.subr.mxu0 %v715
    %850 = vmatpush1.msra.mxu0 %v714
    %851 = vmatprep.subr.mxu0 %v719
    %852 = vmatpush1.msra.mxu0 %v718
    %853 = vmatprep.subr.mxu0 %v723
    %854 = vmatpush1.msra.mxu0 %v722
    %855 = vmatprep.subr.mxu0 %v727
    %856 = vmatpush1.msra.mxu0 %v726
    %857 = vmatprep.subr.mxu0 %v731
    %858 = vmatpush1.msra.mxu0 %v730
    %859 = vmatprep.subr.mxu0 %v735
    %860 = vmatpush1.msra.mxu0 %v734
    %861 = vmatprep.subr.mxu0 %v739
    %862 = vmatpush1.msra.mxu0 %v738
    %863 = vmatprep.subr.mxu0 %v743
    %864 = vmatpush1.msra.mxu0 %v742
    %865 = vmatprep.subr.mxu0 %v747
    %866 = vmatpush1.msra.mxu0 %v746
    %867 = vmatprep.subr.mxu0 %v751
    %868 = vmatpush1.msra.mxu0 %v750
    %869 = vmatprep.subr.mxu0 %v755
    %870 = vmatpush1.msra.mxu0 %v754
    %871 = vmatprep.subr.mxu0 %v759
    %872 = vmatpush1.msra.mxu0 %v758
    %873 = vmatprep.subr.mxu0 %v763
    %874 = vmatpush1.msra.mxu0 %v762
    %875 = vmatprep.subr.mxu0 0.0
    %876 = vmatpush1.msra.mxu0 0.0
    %877 = vmatprep.subr.mxu0 0.0
    %878 = vmatpush1.msra.mxu0 0.0
    %879 = vmatprep.subr.mxu0 0.0
    %880 = vmatpush1.msra.mxu0 0.0
    %881 = vmatprep.subr.mxu0 0.0
    %882 = vmatpush1.msra.mxu0 0.0
    %883 = vmatprep.subr.mxu0 0.0
    %884 = vmatpush1.msra.mxu0 0.0
    %885 = vmatprep.subr.mxu0 0.0
    %886 = vmatpush1.msra.mxu0 0.0
    %887 = vmatprep.subr.mxu0 0.0
    %888 = vmatpush1.msra.mxu0 0.0
    %889 = vmatprep.subr.mxu0 0.0
    %890 = vmatpush1.msra.mxu0 0.0
    %891 = vmatprep.subr.mxu0 0.0
    %892 = vmatpush1.msra.mxu0 0.0
    %893 = vmatprep.subr.mxu0 0.0
    %894 = vmatpush1.msra.mxu0 0.0
    %895 = vmatprep.subr.mxu0 0.0
    %896 = vmatpush1.msra.mxu0 0.0
    %897 = vmatprep.subr.mxu0 0.0
    %898 = vmatpush1.msra.mxu0 0.0
    %899 = vmatprep.subr.mxu0 0.0
    %900 = vmatpush1.msra.mxu0 0.0
    %901 = vmatprep.subr.mxu0 0.0
    %902 = vmatpush1.msra.mxu0 0.0
    %903 = vmatprep.subr.mxu0 0.0
    %904 = vmatpush1.msra.mxu0 0.0
    %905 = vmatprep.subr.mxu0 0.0
    %906 = vmatpush1.msra.mxu0 0.0
    %907 = vmatprep.mubr.f32.mxu0 0.0
    %908 = vmatmul.mubr.f32.gmra.mrb[0].mxu0 0.0
    %v909 = vpop.f32.mrb[0].mxu0
    %v910 = vadd.f32 %v766, %v909
    %v911 = vpop.f32.mrb[0].mxu0
    %v912 = vadd.f32 %v767, %v911
    %913 = vdwg.mxu0
    %v914 = vadd.f32 %v839, %v768
    %v915 = vadd.f32 %v841, %v769
    %v916 = vadd.f32 %v910, %v770
    %v917 = vadd.f32 %v912, %v771
    %v918 = vxor.u32 %v914, 2147483648
    %v919 = vxor.u32 %v915, 2147483648
    %v920 = vxor.u32 %v916, 2147483648
    %v921 = vmul.f32 %v918, 1.442695
    %v922 = vpow.pop %v921
    %v923 = vmul.f32 %v919, 1.442695
    %v924 = vpow.pop %v923
    %v925 = vmul.f32 %v920, 1.442695
    %v926 = vpow.pop %v925
    %v927 = vadd.f32 %v922, 1.0
    %v928 = vadd.f32 %v924, 1.0
    %v929 = vadd.f32 %v926, 1.0
    %v930 = vrcp.pop %v927
    %v931 = vmul.f32 1.0, %v930
    %v932 = vrcp.pop %v928
    %v933 = vmul.f32 1.0, %v932
    %v934 = vrcp.pop %v929
    %v935 = vmul.f32 1.0, %v934
    %v936 = vtanh.pop %v917
    %v937 = vmul.f32 %v933, 0.0
    %v938 = vmul.f32 %v931, %v936
    %v939 = vadd.f32 %v937, %v938
    %v940 = vtanh.pop %v939
    %v941 = vmul.f32 %v935, %v940
    %vm942 = vcmask 261120
    %943 = vst.msk [vmem:[#allocation3] sm:$0xff] %vm942, %v941
    %vm944 = vcmask 523520
    %945 = vst.msk [vmem:[#allocation3 + $0x38] sm:$0xff] %vm944, %v941
    %v946 = vld [vmem:[#allocation2 + $0x40] sm:$0xff]
    %v947 = vld [vmem:[#allocation2 + $0x48] sm:$0xff]
    %v948 = vld [vmem:[#allocation2 + $0x50] sm:$0xff]
    %v949 = vld [vmem:[#allocation2 + $0x58] sm:$0xff]
    %v950 = vld [vmem:[#allocation2 + $0x1a0] sm:$0xff]
    %v951 = vld [vmem:[#allocation2 + $0x1a8] sm:$0xff]
    %v952 = vld [vmem:[#allocation2 + $0x1b0] sm:$0xff]
    %v953 = vld [vmem:[#allocation2 + $0x1b8] sm:$0xff]
    %954 = vmatprep.subr.mxu0 %v701
    %955 = vmatpush1.msra.mxu0 %v700
    %956 = vmatprep.subr.mxu0 %v705
    %957 = vmatpush1.msra.mxu0 %v704
    %958 = vmatprep.subr.mxu0 %v709
    %959 = vmatpush1.msra.mxu0 %v708
    %960 = vmatprep.subr.mxu0 %v713
    %961 = vmatpush1.msra.mxu0 %v712
    %962 = vmatprep.subr.mxu0 %v717
    %963 = vmatpush1.msra.mxu0 %v716
    %964 = vmatprep.subr.mxu0 %v721
    %965 = vmatpush1.msra.mxu0 %v720
    %966 = vmatprep.subr.mxu0 %v725
    %967 = vmatpush1.msra.mxu0 %v724
    %968 = vmatprep.subr.mxu0 %v729
    %969 = vmatpush1.msra.mxu0 %v728
    %970 = vmatprep.subr.mxu0 %v733
    %971 = vmatpush1.msra.mxu0 %v732
    %972 = vmatprep.subr.mxu0 %v737
    %973 = vmatpush1.msra.mxu0 %v736
    %974 = vmatprep.subr.mxu0 %v741
    %975 = vmatpush1.msra.mxu0 %v740
    %976 = vmatprep.subr.mxu0 %v745
    %977 = vmatpush1.msra.mxu0 %v744
    %978 = vmatprep.subr.mxu0 %v749
    %979 = vmatpush1.msra.mxu0 %v748
    %980 = vmatprep.subr.mxu0 %v753
    %981 = vmatpush1.msra.mxu0 %v752
    %982 = vmatprep.subr.mxu0 %v757
    %983 = vmatpush1.msra.mxu0 %v756
    %984 = vmatprep.subr.mxu0 %v761
    %985 = vmatpush1.msra.mxu0 %v760
    %986 = vmatprep.subr.mxu0 0.0
    %987 = vmatpush1.msra.mxu0 0.0
    %988 = vmatprep.subr.mxu0 0.0
    %989 = vmatpush1.msra.mxu0 0.0
    %990 = vmatprep.subr.mxu0 0.0
    %991 = vmatpush1.msra.mxu0 0.0
    %992 = vmatprep.subr.mxu0 0.0
    %993 = vmatpush1.msra.mxu0 0.0
    %994 = vmatprep.subr.mxu0 0.0
    %995 = vmatpush1.msra.mxu0 0.0
    %996 = vmatprep.subr.mxu0 0.0
    %997 = vmatpush1.msra.mxu0 0.0
    %998 = vmatprep.subr.mxu0 0.0
    %999 = vmatpush1.msra.mxu0 0.0
    %1000 = vmatprep.subr.mxu0 0.0
    %1001 = vmatpush1.msra.mxu0 0.0
    %1002 = vmatprep.subr.mxu0 0.0
    %1003 = vmatpush1.msra.mxu0 0.0
    %1004 = vmatprep.subr.mxu0 0.0
    %1005 = vmatpush1.msra.mxu0 0.0
    %1006 = vmatprep.subr.mxu0 0.0
    %1007 = vmatpush1.msra.mxu0 0.0
    %1008 = vmatprep.subr.mxu0 0.0
    %1009 = vmatpush1.msra.mxu0 0.0
    %1010 = vmatprep.subr.mxu0 0.0
    %1011 = vmatpush1.msra.mxu0 0.0
    %1012 = vmatprep.subr.mxu0 0.0
    %1013 = vmatpush1.msra.mxu0 0.0
    %1014 = vmatprep.subr.mxu0 0.0
    %1015 = vmatpush1.msra.mxu0 0.0
    %1016 = vmatprep.subr.mxu0 0.0
    %1017 = vmatpush1.msra.mxu0 0.0
    %1018 = vmatprep.mubr.f32.mxu0 0.0
    %1019 = vmatmul.mubr.f32.gmra.mrb[0].mxu0 %v941
    %v1020 = vpop.f32.mrb[0].mxu0
    %v1021 = vadd.f32 %v946, %v1020
    %v1022 = vpop.f32.mrb[0].mxu0
    %v1023 = vadd.f32 %v947, %v1022
    %1024 = vdwg.mxu0
    %1025 = vmatprep.subr.mxu0 %v703
    %1026 = vmatpush1.msra.mxu0 %v702
    %1027 = vmatprep.subr.mxu0 %v707
    %1028 = vmatpush1.msra.mxu0 %v706
    %1029 = vmatprep.subr.mxu0 %v711
    %1030 = vmatpush1.msra.mxu0 %v710
    %1031 = vmatprep.subr.mxu0 %v715
    %1032 = vmatpush1.msra.mxu0 %v714
    %1033 = vmatprep.subr.mxu0 %v719
    %1034 = vmatpush1.msra.mxu0 %v718
    %1035 = vmatprep.subr.mxu0 %v723
    %1036 = vmatpush1.msra.mxu0 %v722
    %1037 = vmatprep.subr.mxu0 %v727
    %1038 = vmatpush1.msra.mxu0 %v726
    %1039 = vmatprep.subr.mxu0 %v731
    %1040 = vmatpush1.msra.mxu0 %v730
    %1041 = vmatprep.subr.mxu0 %v735
    %1042 = vmatpush1.msra.mxu0 %v734
    %1043 = vmatprep.subr.mxu0 %v739
    %1044 = vmatpush1.msra.mxu0 %v738
    %1045 = vmatprep.subr.mxu0 %v743
    %1046 = vmatpush1.msra.mxu0 %v742
    %1047 = vmatprep.subr.mxu0 %v747
    %1048 = vmatpush1.msra.mxu0 %v746
    %1049 = vmatprep.subr.mxu0 %v751
    %1050 = vmatpush1.msra.mxu0 %v750
    %1051 = vmatprep.subr.mxu0 %v755
    %1052 = vmatpush1.msra.mxu0 %v754
    %1053 = vmatprep.subr.mxu0 %v759
    %1054 = vmatpush1.msra.mxu0 %v758
    %1055 = vmatprep.subr.mxu0 %v763
    %1056 = vmatpush1.msra.mxu0 %v762
    %1057 = vmatprep.subr.mxu0 0.0
    %1058 = vmatpush1.msra.mxu0 0.0
    %1059 = vmatprep.subr.mxu0 0.0
    %1060 = vmatpush1.msra.mxu0 0.0
    %1061 = vmatprep.subr.mxu0 0.0
    %1062 = vmatpush1.msra.mxu0 0.0
    %1063 = vmatprep.subr.mxu0 0.0
    %1064 = vmatpush1.msra.mxu0 0.0
    %1065 = vmatprep.subr.mxu0 0.0
    %1066 = vmatpush1.msra.mxu0 0.0
    %1067 = vmatprep.subr.mxu0 0.0
    %1068 = vmatpush1.msra.mxu0 0.0
    %1069 = vmatprep.subr.mxu0 0.0
    %1070 = vmatpush1.msra.mxu0 0.0
    %1071 = vmatprep.subr.mxu0 0.0
    %1072 = vmatpush1.msra.mxu0 0.0
    %1073 = vmatprep.subr.mxu0 0.0
    %1074 = vmatpush1.msra.mxu0 0.0
    %1075 = vmatprep.subr.mxu0 0.0
    %1076 = vmatpush1.msra.mxu0 0.0
    %1077 = vmatprep.subr.mxu0 0.0
    %1078 = vmatpush1.msra.mxu0 0.0
    %1079 = vmatprep.subr.mxu0 0.0
    %1080 = vmatpush1.msra.mxu0 0.0
    %1081 = vmatprep.subr.mxu0 0.0
    %1082 = vmatpush1.msra.mxu0 0.0
    %1083 = vmatprep.subr.mxu0 0.0
    %1084 = vmatpush1.msra.mxu0 0.0
    %1085 = vmatprep.subr.mxu0 0.0
    %1086 = vmatpush1.msra.mxu0 0.0
    %1087 = vmatprep.subr.mxu0 0.0
    %1088 = vmatpush1.msra.mxu0 0.0
    %1089 = vmatprep.mubr.f32.mxu0 0.0
    %1090 = vmatmul.mubr.f32.gmra.mrb[0].mxu0 %v941
    %v1091 = vpop.f32.mrb[0].mxu0
    %v1092 = vadd.f32 %v948, %v1091
    %v1093 = vpop.f32.mrb[0].mxu0
    %v1094 = vadd.f32 %v949, %v1093
    %1095 = vdwg.mxu0
    %v1096 = vadd.f32 %v1021, %v950
    %v1097 = vadd.f32 %v1023, %v951
    %v1098 = vadd.f32 %v1092, %v952
    %v1099 = vadd.f32 %v1094, %v953
    %v1100 = vxor.u32 %v1096, 2147483648
    %v1101 = vxor.u32 %v1097, 2147483648
    %v1102 = vxor.u32 %v1098, 2147483648
    %v1103 = vmul.f32 %v1100, 1.442695
    %v1104 = vpow.pop %v1103
    %v1105 = vmul.f32 %v1101, 1.442695
    %v1106 = vpow.pop %v1105
    %v1107 = vmul.f32 %v1102, 1.442695
    %v1108 = vpow.pop %v1107
    %v1109 = vadd.f32 %v1104, 1.0
    %v1110 = vadd.f32 %v1106, 1.0
    %v1111 = vadd.f32 %v1108, 1.0
    %v1112 = vrcp.pop %v1109
    %v1113 = vmul.f32 1.0, %v1112
    %v1114 = vrcp.pop %v1110
    %v1115 = vmul.f32 1.0, %v1114
    %v1116 = vrcp.pop %v1111
    %v1117 = vmul.f32 1.0, %v1116
    %v1118 = vtanh.pop %v1099
    %v1119 = vmul.f32 %v1115, %v939
    %v1120 = vmul.f32 %v1113, %v1118
    %v1121 = vadd.f32 %v1119, %v1120
    %v1122 = vtanh.pop %v1121
    %v1123 = vmul.f32 %v1117, %v1122
    %1124 = vst.msk [vmem:[#allocation3 + $0x8] sm:$0xff] %vm942, %v1123
    %1125 = vst.msk [vmem:[#allocation3 + $0x30] sm:$0xff] %vm944, %v1123
    %v1126 = vld [vmem:[#allocation2 + $0x80] sm:$0xff]
    %v1127 = vld [vmem:[#allocation2 + $0x88] sm:$0xff]
    %v1128 = vld [vmem:[#allocation2 + $0x90] sm:$0xff]
    %v1129 = vld [vmem:[#allocation2 + $0x98] sm:$0xff]
    %v1130 = vld [vmem:[#allocation2 + $0x160] sm:$0xff]
    %v1131 = vld [vmem:[#allocation2 + $0x168] sm:$0xff]
    %v1132 = vld [vmem:[#allocation2 + $0x170] sm:$0xff]
    %v1133 = vld [vmem:[#allocation2 + $0x178] sm:$0xff]
    %1134 = vmatprep.subr.mxu0 %v701
    %1135 = vmatpush1.msra.mxu0 %v700
    %1136 = vmatprep.subr.mxu0 %v705
    %1137 = vmatpush1.msra.mxu0 %v704
    %1138 = vmatprep.subr.mxu0 %v709
    %1139 = vmatpush1.msra.mxu0 %v708
    %1140 = vmatprep.subr.mxu0 %v713
    %1141 = vmatpush1.msra.mxu0 %v712
    %1142 = vmatprep.subr.mxu0 %v717
    %1143 = vmatpush1.msra.mxu0 %v716
    %1144 = vmatprep.subr.mxu0 %v721
    %1145 = vmatpush1.msra.mxu0 %v720
    %1146 = vmatprep.subr.mxu0 %v725
    %1147 = vmatpush1.msra.mxu0 %v724
    %1148 = vmatprep.subr.mxu0 %v729
    %1149 = vmatpush1.msra.mxu0 %v728
    %1150 = vmatprep.subr.mxu0 %v733
    %1151 = vmatpush1.msra.mxu0 %v732
    %1152 = vmatprep.subr.mxu0 %v737
    %1153 = vmatpush1.msra.mxu0 %v736
    %1154 = vmatprep.subr.mxu0 %v741
    %1155 = vmatpush1.msra.mxu0 %v740
    %1156 = vmatprep.subr.mxu0 %v745
    %1157 = vmatpush1.msra.mxu0 %v744
    %1158 = vmatprep.subr.mxu0 %v749
    %1159 = vmatpush1.msra.mxu0 %v748
    %1160 = vmatprep.subr.mxu0 %v753
    %1161 = vmatpush1.msra.mxu0 %v752
    %1162 = vmatprep.subr.mxu0 %v757
    %1163 = vmatpush1.msra.mxu0 %v756
    %1164 = vmatprep.subr.mxu0 %v761
    %1165 = vmatpush1.msra.mxu0 %v760
    %1166 = vmatprep.subr.mxu0 0.0
    %1167 = vmatpush1.msra.mxu0 0.0
    %1168 = vmatprep.subr.mxu0 0.0
    %1169 = vmatpush1.msra.mxu0 0.0
    %1170 = vmatprep.subr.mxu0 0.0
    %1171 = vmatpush1.msra.mxu0 0.0
    %1172 = vmatprep.subr.mxu0 0.0
    %1173 = vmatpush1.msra.mxu0 0.0
    %1174 = vmatprep.subr.mxu0 0.0
    %1175 = vmatpush1.msra.mxu0 0.0
    %1176 = vmatprep.subr.mxu0 0.0
    %1177 = vmatpush1.msra.mxu0 0.0
    %1178 = vmatprep.subr.mxu0 0.0
    %1179 = vmatpush1.msra.mxu0 0.0
    %1180 = vmatprep.subr.mxu0 0.0
    %1181 = vmatpush1.msra.mxu0 0.0
    %1182 = vmatprep.subr.mxu0 0.0
    %1183 = vmatpush1.msra.mxu0 0.0
    %1184 = vmatprep.subr.mxu0 0.0
    %1185 = vmatpush1.msra.mxu0 0.0
    %1186 = vmatprep.subr.mxu0 0.0
    %1187 = vmatpush1.msra.mxu0 0.0
    %1188 = vmatprep.subr.mxu0 0.0
    %1189 = vmatpush1.msra.mxu0 0.0
    %1190 = vmatprep.subr.mxu0 0.0
    %1191 = vmatpush1.msra.mxu0 0.0
    %1192 = vmatprep.subr.mxu0 0.0
    %1193 = vmatpush1.msra.mxu0 0.0
    %1194 = vmatprep.subr.mxu0 0.0
    %1195 = vmatpush1.msra.mxu0 0.0
    %1196 = vmatprep.subr.mxu0 0.0
    %1197 = vmatpush1.msra.mxu0 0.0
    %1198 = vmatprep.mubr.f32.mxu0 0.0
    %1199 = vmatmul.mubr.f32.gmra.mrb[0].mxu0 %v1123
    %v1200 = vpop.f32.mrb[0].mxu0
    %v1201 = vadd.f32 %v1126, %v1200
    %v1202 = vpop.f32.mrb[0].mxu0
    %v1203 = vadd.f32 %v1127, %v1202
    %1204 = vdwg.mxu0
    %1205 = vmatprep.subr.mxu0 %v703
    %1206 = vmatpush1.msra.mxu0 %v702
    %1207 = vmatprep.subr.mxu0 %v707
    %1208 = vmatpush1.msra.mxu0 %v706
    %1209 = vmatprep.subr.mxu0 %v711
    %1210 = vmatpush1.msra.mxu0 %v710
    %1211 = vmatprep.subr.mxu0 %v715
    %1212 = vmatpush1.msra.mxu0 %v714
    %1213 = vmatprep.subr.mxu0 %v719
    %1214 = vmatpush1.msra.mxu0 %v718
    %1215 = vmatprep.subr.mxu0 %v723
    %1216 = vmatpush1.msra.mxu0 %v722
    %1217 = vmatprep.subr.mxu0 %v727
    %1218 = vmatpush1.msra.mxu0 %v726
    %1219 = vmatprep.subr.mxu0 %v731
    %1220 = vmatpush1.msra.mxu0 %v730
    %1221 = vmatprep.subr.mxu0 %v735
    %1222 = vmatpush1.msra.mxu0 %v734
    %1223 = vmatprep.subr.mxu0 %v739
    %1224 = vmatpush1.msra.mxu0 %v738
    %1225 = vmatprep.subr.mxu0 %v743
    %1226 = vmatpush1.msra.mxu0 %v742
    %1227 = vmatprep.subr.mxu0 %v747
    %1228 = vmatpush1.msra.mxu0 %v746
    %1229 = vmatprep.subr.mxu0 %v751
    %1230 = vmatpush1.msra.mxu0 %v750
    %1231 = vmatprep.subr.mxu0 %v755
    %1232 = vmatpush1.msra.mxu0 %v754
    %1233 = vmatprep.subr.mxu0 %v759
    %1234 = vmatpush1.msra.mxu0 %v758
    %1235 = vmatprep.subr.mxu0 %v763
    %1236 = vmatpush1.msra.mxu0 %v762
    %1237 = vmatprep.subr.mxu0 0.0
    %1238 = vmatpush1.msra.mxu0 0.0
    %1239 = vmatprep.subr.mxu0 0.0
    %1240 = vmatpush1.msra.mxu0 0.0
    %1241 = vmatprep.subr.mxu0 0.0
    %1242 = vmatpush1.msra.mxu0 0.0
    %1243 = vmatprep.subr.mxu0 0.0
    %1244 = vmatpush1.msra.mxu0 0.0
    %1245 = vmatprep.subr.mxu0 0.0
    %1246 = vmatpush1.msra.mxu0 0.0
    %1247 = vmatprep.subr.mxu0 0.0
    %1248 = vmatpush1.msra.mxu0 0.0
    %1249 = vmatprep.subr.mxu0 0.0
    %1250 = vmatpush1.msra.mxu0 0.0
    %1251 = vmatprep.subr.mxu0 0.0
    %1252 = vmatpush1.msra.mxu0 0.0
    %1253 = vmatprep.subr.mxu0 0.0
    %1254 = vmatpush1.msra.mxu0 0.0
    %1255 = vmatprep.subr.mxu0 0.0
    %1256 = vmatpush1.msra.mxu0 0.0
    %1257 = vmatprep.subr.mxu0 0.0
    %1258 = vmatpush1.msra.mxu0 0.0
    %1259 = vmatprep.subr.mxu0 0.0
    %1260 = vmatpush1.msra.mxu0 0.0
    %1261 = vmatprep.subr.mxu0 0.0
    %1262 = vmatpush1.msra.mxu0 0.0
    %1263 = vmatprep.subr.mxu0 0.0
    %1264 = vmatpush1.msra.mxu0 0.0
    %1265 = vmatprep.subr.mxu0 0.0
    %1266 = vmatpush1.msra.mxu0 0.0
    %1267 = vmatprep.subr.mxu0 0.0
    %1268 = vmatpush1.msra.mxu0 0.0
    %1269 = vmatprep.mubr.f32.mxu0 0.0
    %1270 = vmatmul.mubr.f32.gmra.mrb[0].mxu0 %v1123
    %v1271 = vpop.f32.mrb[0].mxu0
    %v1272 = vadd.f32 %v1128, %v1271
    %v1273 = vpop.f32.mrb[0].mxu0
    %v1274 = vadd.f32 %v1129, %v1273
    %1275 = vdwg.mxu0
    %v1276 = vadd.f32 %v1201, %v1130
    %v1277 = vadd.f32 %v1203, %v1131
    %v1278 = vadd.f32 %v1272, %v1132
    %v1279 = vadd.f32 %v1274, %v1133
    %v1280 = vxor.u32 %v1276, 2147483648
    %v1281 = vxor.u32 %v1277, 2147483648
    %v1282 = vxor.u32 %v1278, 2147483648
    %v1283 = vmul.f32 %v1280, 1.442695
    %v1284 = vpow.pop %v1283
    %v1285 = vmul.f32 %v1281, 1.442695
    %v1286 = vpow.pop %v1285
    %v1287 = vmul.f32 %v1282, 1.442695
    %v1288 = vpow.pop %v1287
    %v1289 = vadd.f32 %v1284, 1.0
    %v1290 = vadd.f32 %v1286, 1.0
    %v1291 = vadd.f32 %v1288, 1.0
    %v1292 = vrcp.pop %v1289
    %v1293 = vmul.f32 1.0, %v1292
    %v1294 = vrcp.pop %v1290
    %v1295 = vmul.f32 1.0, %v1294
    %v1296 = vrcp.pop %v1291
    %v1297 = vmul.f32 1.0, %v1296
    %v1298 = vtanh.pop %v1279
    %v1299 = vmul.f32 %v1295, %v1121
    %v1300 = vmul.f32 %v1293, %v1298
    %v1301 = vadd.f32 %v1299, %v1300
    %v1302 = vtanh.pop %v1301
    %v1303 = vmul.f32 %v1297, %v1302
    %1304 = vst.msk [vmem:[#allocation3 + $0x10] sm:$0xff] %vm942, %v1303
    %1305 = vst.msk [vmem:[#allocation3 + $0x28] sm:$0xff] %vm944, %v1303
    %v1306 = vld [vmem:[#allocation2 + $0xc0] sm:$0xff]
    %v1307 = vld [vmem:[#allocation2 + $0xc8] sm:$0xff]
    %v1308 = vld [vmem:[#allocation2 + $0xd0] sm:$0xff]
    %v1309 = vld [vmem:[#allocation2 + $0xd8] sm:$0xff]
    %v1310 = vld [vmem:[#allocation2 + $0x120] sm:$0xff]
    %v1311 = vld [vmem:[#allocation2 + $0x128] sm:$0xff]
    %v1312 = vld [vmem:[#allocation2 + $0x130] sm:$0xff]
    %v1313 = vld [vmem:[#allocation2 + $0x138] sm:$0xff]
    %1314 = vmatprep.subr.mxu0 %v701
    %1315 = vmatpush1.msra.mxu0 %v700
    %1316 = vmatprep.subr.mxu0 %v705
    %1317 = vmatpush1.msra.mxu0 %v704
    %1318 = vmatprep.subr.mxu0 %v709
    %1319 = vmatpush1.msra.mxu0 %v708
    %1320 = vmatprep.subr.mxu0 %v713
    %1321 = vmatpush1.msra.mxu0 %v712
    %1322 = vmatprep.subr.mxu0 %v717
    %1323 = vmatpush1.msra.mxu0 %v716
    %1324 = vmatprep.subr.mxu0 %v721
    %1325 = vmatpush1.msra.mxu0 %v720
    %1326 = vmatprep.subr.mxu0 %v725
    %1327 = vmatpush1.msra.mxu0 %v724
    %1328 = vmatprep.subr.mxu0 %v729
    %1329 = vmatpush1.msra.mxu0 %v728
    %1330 = vmatprep.subr.mxu0 %v733
    %1331 = vmatpush1.msra.mxu0 %v732
    %1332 = vmatprep.subr.mxu0 %v737
    %1333 = vmatpush1.msra.mxu0 %v736
    %1334 = vmatprep.subr.mxu0 %v741
    %1335 = vmatpush1.msra.mxu0 %v740
    %1336 = vmatprep.subr.mxu0 %v745
    %1337 = vmatpush1.msra.mxu0 %v744
    %1338 = vmatprep.subr.mxu0 %v749
    %1339 = vmatpush1.msra.mxu0 %v748
    %1340 = vmatprep.subr.mxu0 %v753
    %1341 = vmatpush1.msra.mxu0 %v752
    %1342 = vmatprep.subr.mxu0 %v757
    %1343 = vmatpush1.msra.mxu0 %v756
    %1344 = vmatprep.subr.mxu0 %v761
    %1345 = vmatpush1.msra.mxu0 %v760
    %1346 = vmatprep.subr.mxu0 0.0
    %1347 = vmatpush1.msra.mxu0 0.0
    %1348 = vmatprep.subr.mxu0 0.0
    %1349 = vmatpush1.msra.mxu0 0.0
    %1350 = vmatprep.subr.mxu0 0.0
    %1351 = vmatpush1.msra.mxu0 0.0
    %1352 = vmatprep.subr.mxu0 0.0
    %1353 = vmatpush1.msra.mxu0 0.0
    %1354 = vmatprep.subr.mxu0 0.0
    %1355 = vmatpush1.msra.mxu0 0.0
    %1356 = vmatprep.subr.mxu0 0.0
    %1357 = vmatpush1.msra.mxu0 0.0
    %1358 = vmatprep.subr.mxu0 0.0
    %1359 = vmatpush1.msra.mxu0 0.0
    %1360 = vmatprep.subr.mxu0 0.0
    %1361 = vmatpush1.msra.mxu0 0.0
    %1362 = vmatprep.subr.mxu0 0.0
    %1363 = vmatpush1.msra.mxu0 0.0
    %1364 = vmatprep.subr.mxu0 0.0
    %1365 = vmatpush1.msra.mxu0 0.0
    %1366 = vmatprep.subr.mxu0 0.0
    %1367 = vmatpush1.msra.mxu0 0.0
    %1368 = vmatprep.subr.mxu0 0.0
    %1369 = vmatpush1.msra.mxu0 0.0
    %1370 = vmatprep.subr.mxu0 0.0
    %1371 = vmatpush1.msra.mxu0 0.0
    %1372 = vmatprep.subr.mxu0 0.0
    %1373 = vmatpush1.msra.mxu0 0.0
    %1374 = vmatprep.subr.mxu0 0.0
    %1375 = vmatpush1.msra.mxu0 0.0
    %1376 = vmatprep.subr.mxu0 0.0
    %1377 = vmatpush1.msra.mxu0 0.0
    %1378 = vmatprep.mubr.f32.mxu0 0.0
    %1379 = vmatmul.mubr.f32.gmra.mrb[0].mxu0 %v1303
    %v1380 = vpop.f32.mrb[0].mxu0
    %v1381 = vadd.f32 %v1306, %v1380
    %v1382 = vpop.f32.mrb[0].mxu0
    %v1383 = vadd.f32 %v1307, %v1382
    %1384 = vdwg.mxu0
    %1385 = vmatprep.subr.mxu0 %v703
    %1386 = vmatpush1.msra.mxu0 %v702
    %1387 = vmatprep.subr.mxu0 %v707
    %1388 = vmatpush1.msra.mxu0 %v706
    %1389 = vmatprep.subr.mxu0 %v711
    %1390 = vmatpush1.msra.mxu0 %v710
    %1391 = vmatprep.subr.mxu0 %v715
    %1392 = vmatpush1.msra.mxu0 %v714
    %1393 = vmatprep.subr.mxu0 %v719
    %1394 = vmatpush1.msra.mxu0 %v718
    %1395 = vmatprep.subr.mxu0 %v723
    %1396 = vmatpush1.msra.mxu0 %v722
    %1397 = vmatprep.subr.mxu0 %v727
    %1398 = vmatpush1.msra.mxu0 %v726
    %1399 = vmatprep.subr.mxu0 %v731
    %1400 = vmatpush1.msra.mxu0 %v730
    %1401 = vmatprep.subr.mxu0 %v735
    %1402 = vmatpush1.msra.mxu0 %v734
    %1403 = vmatprep.subr.mxu0 %v739
    %1404 = vmatpush1.msra.mxu0 %v738
    %1405 = vmatprep.subr.mxu0 %v743
    %1406 = vmatpush1.msra.mxu0 %v742
    %1407 = vmatprep.subr.mxu0 %v747
    %1408 = vmatpush1.msra.mxu0 %v746
    %1409 = vmatprep.subr.mxu0 %v751
    %1410 = vmatpush1.msra.mxu0 %v750
    %1411 = vmatprep.subr.mxu0 %v755
    %1412 = vmatpush1.msra.mxu0 %v754
    %1413 = vmatprep.subr.mxu0 %v759
    %1414 = vmatpush1.msra.mxu0 %v758
    %1415 = vmatprep.subr.mxu0 %v763
    %1416 = vmatpush1.msra.mxu0 %v762
    %1417 = vmatprep.subr.mxu0 0.0
    %1418 = vmatpush1.msra.mxu0 0.0
    %1419 = vmatprep.subr.mxu0 0.0
    %1420 = vmatpush1.msra.mxu0 0.0
    %1421 = vmatprep.subr.mxu0 0.0
    %1422 = vmatpush1.msra.mxu0 0.0
    %1423 = vmatprep.subr.mxu0 0.0
    %1424 = vmatpush1.msra.mxu0 0.0
    %1425 = vmatprep.subr.mxu0 0.0
    %1426 = vmatpush1.msra.mxu0 0.0
    %1427 = vmatprep.subr.mxu0 0.0
    %1428 = vmatpush1.msra.mxu0 0.0
    %1429 = vmatprep.subr.mxu0 0.0
    %1430 = vmatpush1.msra.mxu0 0.0
    %1431 = vmatprep.subr.mxu0 0.0
    %1432 = vmatpush1.msra.mxu0 0.0
    %1433 = vmatprep.subr.mxu0 0.0
    %1434 = vmatpush1.msra.mxu0 0.0
    %1435 = vmatprep.subr.mxu0 0.0
    %1436 = vmatpush1.msra.mxu0 0.0
    %1437 = vmatprep.subr.mxu0 0.0
    %1438 = vmatpush1.msra.mxu0 0.0
    %1439 = vmatprep.subr.mxu0 0.0
    %1440 = vmatpush1.msra.mxu0 0.0
    %1441 = vmatprep.subr.mxu0 0.0
    %1442 = vmatpush1.msra.mxu0 0.0
    %1443 = vmatprep.subr.mxu0 0.0
    %1444 = vmatpush1.msra.mxu0 0.0
    %1445 = vmatprep.subr.mxu0 0.0
    %1446 = vmatpush1.msra.mxu0 0.0
    %1447 = vmatprep.subr.mxu0 0.0
    %1448 = vmatpush1.msra.mxu0 0.0
    %1449 = vmatprep.mubr.f32.mxu0 0.0
    %1450 = vmatmul.mubr.f32.gmra.mrb[0].mxu0 %v1303
    %v1451 = vpop.f32.mrb[0].mxu0
    %v1452 = vadd.f32 %v1308, %v1451
    %v1453 = vpop.f32.mrb[0].mxu0
    %v1454 = vadd.f32 %v1309, %v1453
    %1455 = vdwg.mxu0
    %v1456 = vadd.f32 %v1381, %v1310
    %v1457 = vadd.f32 %v1383, %v1311
    %v1458 = vadd.f32 %v1452, %v1312
    %v1459 = vadd.f32 %v1454, %v1313
    %v1460 = vxor.u32 %v1456, 2147483648
    %v1461 = vxor.u32 %v1457, 2147483648
    %v1462 = vxor.u32 %v1458, 2147483648
    %v1463 = vmul.f32 %v1460, 1.442695
    %v1464 = vpow.pop %v1463
    %v1465 = vmul.f32 %v1461, 1.442695
    %v1466 = vpow.pop %v1465
    %v1467 = vmul.f32 %v1462, 1.442695
    %v1468 = vpow.pop %v1467
    %v1469 = vadd.f32 %v1464, 1.0
    %v1470 = vadd.f32 %v1466, 1.0
    %v1471 = vadd.f32 %v1468, 1.0
    %v1472 = vrcp.pop %v1469
    %v1473 = vmul.f32 1.0, %v1472
    %v1474 = vrcp.pop %v1470
    %v1475 = vmul.f32 1.0, %v1474
    %v1476 = vrcp.pop %v1471
    %v1477 = vmul.f32 1.0, %v1476
    %v1478 = vtanh.pop %v1459
    %v1479 = vmul.f32 %v1475, %v1301
    %v1480 = vmul.f32 %v1473, %v1478
    %v1481 = vadd.f32 %v1479, %v1480
    %v1482 = vtanh.pop %v1481
    %v1483 = vmul.f32 %v1477, %v1482
    %1484 = vst.msk [vmem:[#allocation3 + $0x18] sm:$0xff] %vm942, %v1483
    %1485 = vst.msk [vmem:[#allocation3 + $0x20] sm:$0xff] %vm944, %v1483
    %v1486 = vld [vmem:[#allocation2 + $0x100] sm:$0xff]
    %v1487 = vld [vmem:[#allocation2 + $0x108] sm:$0xff]
    %v1488 = vld [vmem:[#allocation2 + $0x110] sm:$0xff]
    %v1489 = vld [vmem:[#allocation2 + $0x118] sm:$0xff]
    %v1490 = vld [vmem:[#allocation2 + $0xe0] sm:$0xff]
    %v1491 = vld [vmem:[#allocation2 + $0xe8] sm:$0xff]
    %v1492 = vld [vmem:[#allocation2 + $0xf0] sm:$0xff]
    %v1493 = vld [vmem:[#allocation2 + $0xf8] sm:$0xff]
    %1494 = vmatprep.subr.mxu0 %v701
    %1495 = vmatpush1.msra.mxu0 %v700
    %1496 = vmatprep.subr.mxu0 %v705
    %1497 = vmatpush1.msra.mxu0 %v704
    %1498 = vmatprep.subr.mxu0 %v709
    %1499 = vmatpush1.msra.mxu0 %v708
    %1500 = vmatprep.subr.mxu0 %v713
    %1501 = vmatpush1.msra.mxu0 %v712
    %1502 = vmatprep.subr.mxu0 %v717
    %1503 = vmatpush1.msra.mxu0 %v716
    %1504 = vmatprep.subr.mxu0 %v721
    %1505 = vmatpush1.msra.mxu0 %v720
    %1506 = vmatprep.subr.mxu0 %v725
    %1507 = vmatpush1.msra.mxu0 %v724
    %1508 = vmatprep.subr.mxu0 %v729
    %1509 = vmatpush1.msra.mxu0 %v728
    %1510 = vmatprep.subr.mxu0 %v733
    %1511 = vmatpush1.msra.mxu0 %v732
    %1512 = vmatprep.subr.mxu0 %v737
    %1513 = vmatpush1.msra.mxu0 %v736
    %1514 = vmatprep.subr.mxu0 %v741
    %1515 = vmatpush1.msra.mxu0 %v740
    %1516 = vmatprep.subr.mxu0 %v745
    %1517 = vmatpush1.msra.mxu0 %v744
    %1518 = vmatprep.subr.mxu0 %v749
    %1519 = vmatpush1.msra.mxu0 %v748
    %1520 = vmatprep.subr.mxu0 %v753
    %1521 = vmatpush1.msra.mxu0 %v752
    %1522 = vmatprep.subr.mxu0 %v757
    %1523 = vmatpush1.msra.mxu0 %v756
    %1524 = vmatprep.subr.mxu0 %v761
    %1525 = vmatpush1.msra.mxu0 %v760
    %1526 = vmatprep.subr.mxu0 0.0
    %1527 = vmatpush1.msra.mxu0 0.0
    %1528 = vmatprep.subr.mxu0 0.0
    %1529 = vmatpush1.msra.mxu0 0.0
    %1530 = vmatprep.subr.mxu0 0.0
    %1531 = vmatpush1.msra.mxu0 0.0
    %1532 = vmatprep.subr.mxu0 0.0
    %1533 = vmatpush1.msra.mxu0 0.0
    %1534 = vmatprep.subr.mxu0 0.0
    %1535 = vmatpush1.msra.mxu0 0.0
    %1536 = vmatprep.subr.mxu0 0.0
    %1537 = vmatpush1.msra.mxu0 0.0
    %1538 = vmatprep.subr.mxu0 0.0
    %1539 = vmatpush1.msra.mxu0 0.0
    %1540 = vmatprep.subr.mxu0 0.0
    %1541 = vmatpush1.msra.mxu0 0.0
    %1542 = vmatprep.subr.mxu0 0.0
    %1543 = vmatpush1.msra.mxu0 0.0
    %1544 = vmatprep.subr.mxu0 0.0
    %1545 = vmatpush1.msra.mxu0 0.0
    %1546 = vmatprep.subr.mxu0 0.0
    %1547 = vmatpush1.msra.mxu0 0.0
    %1548 = vmatprep.subr.mxu0 0.0
    %1549 = vmatpush1.msra.mxu0 0.0
    %1550 = vmatprep.subr.mxu0 0.0
    %1551 = vmatpush1.msra.mxu0 0.0
    %1552 = vmatprep.subr.mxu0 0.0
    %1553 = vmatpush1.msra.mxu0 0.0
    %1554 = vmatprep.subr.mxu0 0.0
    %1555 = vmatpush1.msra.mxu0 0.0
    %1556 = vmatprep.subr.mxu0 0.0
    %1557 = vmatpush1.msra.mxu0 0.0
    %1558 = vmatprep.mubr.f32.mxu0 0.0
    %1559 = vmatmul.mubr.f32.gmra.mrb[0].mxu0 %v1483
    %v1560 = vpop.f32.mrb[0].mxu0
    %v1561 = vadd.f32 %v1486, %v1560
    %v1562 = vpop.f32.mrb[0].mxu0
    %v1563 = vadd.f32 %v1487, %v1562
    %1564 = vdwg.mxu0
    %1565 = vmatprep.subr.mxu0 %v703
    %1566 = vmatpush1.msra.mxu0 %v702
    %1567 = vmatprep.subr.mxu0 %v707
    %1568 = vmatpush1.msra.mxu0 %v706
    %1569 = vmatprep.subr.mxu0 %v711
    %1570 = vmatpush1.msra.mxu0 %v710
    %1571 = vmatprep.subr.mxu0 %v715
    %1572 = vmatpush1.msra.mxu0 %v714
    %1573 = vmatprep.subr.mxu0 %v719
    %1574 = vmatpush1.msra.mxu0 %v718
    %1575 = vmatprep.subr.mxu0 %v723
    %1576 = vmatpush1.msra.mxu0 %v722
    %1577 = vmatprep.subr.mxu0 %v727
    %1578 = vmatpush1.msra.mxu0 %v726
    %1579 = vmatprep.subr.mxu0 %v731
    %1580 = vmatpush1.msra.mxu0 %v730
    %1581 = vmatprep.subr.mxu0 %v735
    %1582 = vmatpush1.msra.mxu0 %v734
    %1583 = vmatprep.subr.mxu0 %v739
    %1584 = vmatpush1.msra.mxu0 %v738
    %1585 = vmatprep.subr.mxu0 %v743
    %1586 = vmatpush1.msra.mxu0 %v742
    %1587 = vmatprep.subr.mxu0 %v747
    %1588 = vmatpush1.msra.mxu0 %v746
    %1589 = vmatprep.subr.mxu0 %v751
    %1590 = vmatpush1.msra.mxu0 %v750
    %1591 = vmatprep.subr.mxu0 %v755
    %1592 = vmatpush1.msra.mxu0 %v754
    %1593 = vmatprep.subr.mxu0 %v759
    %1594 = vmatpush1.msra.mxu0 %v758
    %1595 = vmatprep.subr.mxu0 %v763
    %1596 = vmatpush1.msra.mxu0 %v762
    %1597 = vmatprep.subr.mxu0 0.0
    %1598 = vmatpush1.msra.mxu0 0.0
    %1599 = vmatprep.subr.mxu0 0.0
    %1600 = vmatpush1.msra.mxu0 0.0
    %1601 = vmatprep.subr.mxu0 0.0
    %1602 = vmatpush1.msra.mxu0 0.0
    %1603 = vmatprep.subr.mxu0 0.0
    %1604 = vmatpush1.msra.mxu0 0.0
    %1605 = vmatprep.subr.mxu0 0.0
    %1606 = vmatpush1.msra.mxu0 0.0
    %1607 = vmatprep.subr.mxu0 0.0
    %1608 = vmatpush1.msra.mxu0 0.0
    %1609 = vmatprep.subr.mxu0 0.0
    %1610 = vmatpush1.msra.mxu0 0.0
    %1611 = vmatprep.subr.mxu0 0.0
    %1612 = vmatpush1.msra.mxu0 0.0
    %1613 = vmatprep.subr.mxu0 0.0
    %1614 = vmatpush1.msra.mxu0 0.0
    %1615 = vmatprep.subr.mxu0 0.0
    %1616 = vmatpush1.msra.mxu0 0.0
    %1617 = vmatprep.subr.mxu0 0.0
    %1618 = vmatpush1.msra.mxu0 0.0
    %1619 = vmatprep.subr.mxu0 0.0
    %1620 = vmatpush1.msra.mxu0 0.0
    %1621 = vmatprep.subr.mxu0 0.0
    %1622 = vmatpush1.msra.mxu0 0.0
    %1623 = vmatprep.subr.mxu0 0.0
    %1624 = vmatpush1.msra.mxu0 0.0
    %1625 = vmatprep.subr.mxu0 0.0
    %1626 = vmatpush1.msra.mxu0 0.0
    %1627 = vmatprep.subr.mxu0 0.0
    %1628 = vmatpush1.msra.mxu0 0.0
    %1629 = vmatprep.mubr.f32.mxu0 0.0
    %1630 = vmatmul.mubr.f32.gmra.mrb[0].mxu0 %v1483
    %v1631 = vpop.f32.mrb[0].mxu0
    %v1632 = vadd.f32 %v1488, %v1631
    %v1633 = vpop.f32.mrb[0].mxu0
    %v1634 = vadd.f32 %v1489, %v1633
    %1635 = vdwg.mxu0
    %v1636 = vadd.f32 %v1561, %v1490
    %v1637 = vadd.f32 %v1563, %v1491
    %v1638 = vadd.f32 %v1632, %v1492
    %v1639 = vadd.f32 %v1634, %v1493
    %v1640 = vxor.u32 %v1636, 2147483648
    %v1641 = vxor.u32 %v1637, 2147483648
    %v1642 = vxor.u32 %v1638, 2147483648
    %v1643 = vmul.f32 %v1640, 1.442695
    %v1644 = vpow.pop %v1643
    %v1645 = vmul.f32 %v1641, 1.442695
    %v1646 = vpow.pop %v1645
    %v1647 = vmul.f32 %v1642, 1.442695
    %v1648 = vpow.pop %v1647
    %v1649 = vadd.f32 %v1644, 1.0
    %v1650 = vadd.f32 %v1646, 1.0
    %v1651 = vadd.f32 %v1648, 1.0
    %v1652 = vrcp.pop %v1649
    %v1653 = vmul.f32 1.0, %v1652
    %v1654 = vrcp.pop %v1650
    %v1655 = vmul.f32 1.0, %v1654
    %v1656 = vrcp.pop %v1651
    %v1657 = vmul.f32 1.0, %v1656
    %v1658 = vtanh.pop %v1639
    %v1659 = vmul.f32 %v1655, %v1481
    %v1660 = vmul.f32 %v1653, %v1658
    %v1661 = vadd.f32 %v1659, %v1660
    %v1662 = vtanh.pop %v1661
    %v1663 = vmul.f32 %v1657, %v1662
    %1664 = vst.msk [vmem:[#allocation3 + $0x20] sm:$0xff] %vm942, %v1663
    %1665 = vst.msk [vmem:[#allocation3 + $0x18] sm:$0xff] %vm944, %v1663
    %v1666 = vld [vmem:[#allocation2 + $0x140] sm:$0xff]
    %v1667 = vld [vmem:[#allocation2 + $0x148] sm:$0xff]
    %v1668 = vld [vmem:[#allocation2 + $0x150] sm:$0xff]
    %v1669 = vld [vmem:[#allocation2 + $0x158] sm:$0xff]
    %v1670 = vld [vmem:[#allocation2 + $0xa0] sm:$0xff]
    %v1671 = vld [vmem:[#allocation2 + $0xa8] sm:$0xff]
    %v1672 = vld [vmem:[#allocation2 + $0xb0] sm:$0xff]
    %v1673 = vld [vmem:[#allocation2 + $0xb8] sm:$0xff]
    %1674 = vmatprep.subr.mxu0 %v701
    %1675 = vmatpush1.msra.mxu0 %v700
    %1676 = vmatprep.subr.mxu0 %v705
    %1677 = vmatpush1.msra.mxu0 %v704
    %1678 = vmatprep.subr.mxu0 %v709
    %1679 = vmatpush1.msra.mxu0 %v708
    %1680 = vmatprep.subr.mxu0 %v713
    %1681 = vmatpush1.msra.mxu0 %v712
    %1682 = vmatprep.subr.mxu0 %v717
    %1683 = vmatpush1.msra.mxu0 %v716
    %1684 = vmatprep.subr.mxu0 %v721
    %1685 = vmatpush1.msra.mxu0 %v720
    %1686 = vmatprep.subr.mxu0 %v725
    %1687 = vmatpush1.msra.mxu0 %v724
    %1688 = vmatprep.subr.mxu0 %v729
    %1689 = vmatpush1.msra.mxu0 %v728
    %1690 = vmatprep.subr.mxu0 %v733
    %1691 = vmatpush1.msra.mxu0 %v732
    %1692 = vmatprep.subr.mxu0 %v737
    %1693 = vmatpush1.msra.mxu0 %v736
    %1694 = vmatprep.subr.mxu0 %v741
    %1695 = vmatpush1.msra.mxu0 %v740
    %1696 = vmatprep.subr.mxu0 %v745
    %1697 = vmatpush1.msra.mxu0 %v744
    %1698 = vmatprep.subr.mxu0 %v749
    %1699 = vmatpush1.msra.mxu0 %v748
    %1700 = vmatprep.subr.mxu0 %v753
    %1701 = vmatpush1.msra.mxu0 %v752
    %1702 = vmatprep.subr.mxu0 %v757
    %1703 = vmatpush1.msra.mxu0 %v756
    %1704 = vmatprep.subr.mxu0 %v761
    %1705 = vmatpush1.msra.mxu0 %v760
    %1706 = vmatprep.subr.mxu0 0.0
    %1707 = vmatpush1.msra.mxu0 0.0
    %1708 = vmatprep.subr.mxu0 0.0
    %1709 = vmatpush1.msra.mxu0 0.0
    %1710 = vmatprep.subr.mxu0 0.0
    %1711 = vmatpush1.msra.mxu0 0.0
    %1712 = vmatprep.subr.mxu0 0.0
    %1713 = vmatpush1.msra.mxu0 0.0
    %1714 = vmatprep.subr.mxu0 0.0
    %1715 = vmatpush1.msra.mxu0 0.0
    %1716 = vmatprep.subr.mxu0 0.0
    %1717 = vmatpush1.msra.mxu0 0.0
    %1718 = vmatprep.subr.mxu0 0.0
    %1719 = vmatpush1.msra.mxu0 0.0
    %1720 = vmatprep.subr.mxu0 0.0
    %1721 = vmatpush1.msra.mxu0 0.0
    %1722 = vmatprep.subr.mxu0 0.0
    %1723 = vmatpush1.msra.mxu0 0.0
    %1724 = vmatprep.subr.mxu0 0.0
    %1725 = vmatpush1.msra.mxu0 0.0
    %1726 = vmatprep.subr.mxu0 0.0
    %1727 = vmatpush1.msra.mxu0 0.0
    %1728 = vmatprep.subr.mxu0 0.0
    %1729 = vmatpush1.msra.mxu0 0.0
    %1730 = vmatprep.subr.mxu0 0.0
    %1731 = vmatpush1.msra.mxu0 0.0
    %1732 = vmatprep.subr.mxu0 0.0
    %1733 = vmatpush1.msra.mxu0 0.0
    %1734 = vmatprep.subr.mxu0 0.0
    %1735 = vmatpush1.msra.mxu0 0.0
    %1736 = vmatprep.subr.mxu0 0.0
    %1737 = vmatpush1.msra.mxu0 0.0
    %1738 = vmatprep.mubr.f32.mxu0 0.0
    %1739 = vmatmul.mubr.f32.gmra.mrb[0].mxu0 %v1663
    %v1740 = vpop.f32.mrb[0].mxu0
    %v1741 = vadd.f32 %v1666, %v1740
    %v1742 = vpop.f32.mrb[0].mxu0
    %v1743 = vadd.f32 %v1667, %v1742
    %1744 = vdwg.mxu0
    %1745 = vmatprep.subr.mxu0 %v703
    %1746 = vmatpush1.msra.mxu0 %v702
    %1747 = vmatprep.subr.mxu0 %v707
    %1748 = vmatpush1.msra.mxu0 %v706
    %1749 = vmatprep.subr.mxu0 %v711
    %1750 = vmatpush1.msra.mxu0 %v710
    %1751 = vmatprep.subr.mxu0 %v715
    %1752 = vmatpush1.msra.mxu0 %v714
    %1753 = vmatprep.subr.mxu0 %v719
    %1754 = vmatpush1.msra.mxu0 %v718
    %1755 = vmatprep.subr.mxu0 %v723
    %1756 = vmatpush1.msra.mxu0 %v722
    %1757 = vmatprep.subr.mxu0 %v727
    %1758 = vmatpush1.msra.mxu0 %v726
    %1759 = vmatprep.subr.mxu0 %v731
    %1760 = vmatpush1.msra.mxu0 %v730
    %1761 = vmatprep.subr.mxu0 %v735
    %1762 = vmatpush1.msra.mxu0 %v734
    %1763 = vmatprep.subr.mxu0 %v739
    %1764 = vmatpush1.msra.mxu0 %v738
    %1765 = vmatprep.subr.mxu0 %v743
    %1766 = vmatpush1.msra.mxu0 %v742
    %1767 = vmatprep.subr.mxu0 %v747
    %1768 = vmatpush1.msra.mxu0 %v746
    %1769 = vmatprep.subr.mxu0 %v751
    %1770 = vmatpush1.msra.mxu0 %v750
    %1771 = vmatprep.subr.mxu0 %v755
    %1772 = vmatpush1.msra.mxu0 %v754
    %1773 = vmatprep.subr.mxu0 %v759
    %1774 = vmatpush1.msra.mxu0 %v758
    %1775 = vmatprep.subr.mxu0 %v763
    %1776 = vmatpush1.msra.mxu0 %v762
    %1777 = vmatprep.subr.mxu0 0.0
    %1778 = vmatpush1.msra.mxu0 0.0
    %1779 = vmatprep.subr.mxu0 0.0
    %1780 = vmatpush1.msra.mxu0 0.0
    %1781 = vmatprep.subr.mxu0 0.0
    %1782 = vmatpush1.msra.mxu0 0.0
    %1783 = vmatprep.subr.mxu0 0.0
    %1784 = vmatpush1.msra.mxu0 0.0
    %1785 = vmatprep.subr.mxu0 0.0
    %1786 = vmatpush1.msra.mxu0 0.0
    %1787 = vmatprep.subr.mxu0 0.0
    %1788 = vmatpush1.msra.mxu0 0.0
    %1789 = vmatprep.subr.mxu0 0.0
    %1790 = vmatpush1.msra.mxu0 0.0
    %1791 = vmatprep.subr.mxu0 0.0
    %1792 = vmatpush1.msra.mxu0 0.0
    %1793 = vmatprep.subr.mxu0 0.0
    %1794 = vmatpush1.msra.mxu0 0.0
    %1795 = vmatprep.subr.mxu0 0.0
    %1796 = vmatpush1.msra.mxu0 0.0
    %1797 = vmatprep.subr.mxu0 0.0
    %1798 = vmatpush1.msra.mxu0 0.0
    %1799 = vmatprep.subr.mxu0 0.0
    %1800 = vmatpush1.msra.mxu0 0.0
    %1801 = vmatprep.subr.mxu0 0.0
    %1802 = vmatpush1.msra.mxu0 0.0
    %1803 = vmatprep.subr.mxu0 0.0
    %1804 = vmatpush1.msra.mxu0 0.0
    %1805 = vmatprep.subr.mxu0 0.0
    %1806 = vmatpush1.msra.mxu0 0.0
    %1807 = vmatprep.subr.mxu0 0.0
    %1808 = vmatpush1.msra.mxu0 0.0
    %1809 = vmatprep.mubr.f32.mxu0 0.0
    %1810 = vmatmul.mubr.f32.gmra.mrb[0].mxu0 %v1663
    %v1811 = vpop.f32.mrb[0].mxu0
    %v1812 = vadd.f32 %v1668, %v1811
    %v1813 = vpop.f32.mrb[0].mxu0
    %v1814 = vadd.f32 %v1669, %v1813
    %1815 = vdwg.mxu0
    %v1816 = vadd.f32 %v1741, %v1670
    %v1817 = vadd.f32 %v1743, %v1671
    %v1818 = vadd.f32 %v1812, %v1672
    %v1819 = vadd.f32 %v1814, %v1673
    %v1820 = vxor.u32 %v1816, 2147483648
    %v1821 = vxor.u32 %v1817, 2147483648
    %v1822 = vxor.u32 %v1818, 2147483648
    %v1823 = vmul.f32 %v1820, 1.442695
    %v1824 = vpow.pop %v1823
    %v1825 = vmul.f32 %v1821, 1.442695
    %v1826 = vpow.pop %v1825
    %v1827 = vmul.f32 %v1822, 1.442695
    %v1828 = vpow.pop %v1827
    %v1829 = vadd.f32 %v1824, 1.0
    %v1830 = vadd.f32 %v1826, 1.0
    %v1831 = vadd.f32 %v1828, 1.0
    %v1832 = vrcp.pop %v1829
    %v1833 = vmul.f32 1.0, %v1832
    %v1834 = vrcp.pop %v1830
    %v1835 = vmul.f32 1.0, %v1834
    %v1836 = vrcp.pop %v1831
    %v1837 = vmul.f32 1.0, %v1836
    %v1838 = vtanh.pop %v1819
    %v1839 = vmul.f32 %v1835, %v1661
    %v1840 = vmul.f32 %v1833, %v1838
    %v1841 = vadd.f32 %v1839, %v1840
    %v1842 = vtanh.pop %v1841
    %v1843 = vmul.f32 %v1837, %v1842
    %1844 = vst.msk [vmem:[#allocation3 + $0x28] sm:$0xff] %vm942, %v1843
    %1845 = vst.msk [vmem:[#allocation3 + $0x10] sm:$0xff] %vm944, %v1843
    %v1846 = vld [vmem:[#allocation2 + $0x180] sm:$0xff]
    %v1847 = vld [vmem:[#allocation2 + $0x188] sm:$0xff]
    %v1848 = vld [vmem:[#allocation2 + $0x190] sm:$0xff]
    %v1849 = vld [vmem:[#allocation2 + $0x198] sm:$0xff]
    %v1850 = vld [vmem:[#allocation2 + $0x60] sm:$0xff]
    %v1851 = vld [vmem:[#allocation2 + $0x68] sm:$0xff]
    %v1852 = vld [vmem:[#allocation2 + $0x70] sm:$0xff]
    %v1853 = vld [vmem:[#allocation2 + $0x78] sm:$0xff]
    %1854 = vmatprep.subr.mxu0 %v701
    %1855 = vmatpush1.msra.mxu0 %v700
    %1856 = vmatprep.subr.mxu0 %v705
    %1857 = vmatpush1.msra.mxu0 %v704
    %1858 = vmatprep.subr.mxu0 %v709
    %1859 = vmatpush1.msra.mxu0 %v708
    %1860 = vmatprep.subr.mxu0 %v713
    %1861 = vmatpush1.msra.mxu0 %v712
    %1862 = vmatprep.subr.mxu0 %v717
    %1863 = vmatpush1.msra.mxu0 %v716
    %1864 = vmatprep.subr.mxu0 %v721
    %1865 = vmatpush1.msra.mxu0 %v720
    %1866 = vmatprep.subr.mxu0 %v725
    %1867 = vmatpush1.msra.mxu0 %v724
    %1868 = vmatprep.subr.mxu0 %v729
    %1869 = vmatpush1.msra.mxu0 %v728
    %1870 = vmatprep.subr.mxu0 %v733
    %1871 = vmatpush1.msra.mxu0 %v732
    %1872 = vmatprep.subr.mxu0 %v737
    %1873 = vmatpush1.msra.mxu0 %v736
    %1874 = vmatprep.subr.mxu0 %v741
    %1875 = vmatpush1.msra.mxu0 %v740
    %1876 = vmatprep.subr.mxu0 %v745
    %1877 = vmatpush1.msra.mxu0 %v744
    %1878 = vmatprep.subr.mxu0 %v749
    %1879 = vmatpush1.msra.mxu0 %v748
    %1880 = vmatprep.subr.mxu0 %v753
    %1881 = vmatpush1.msra.mxu0 %v752
    %1882 = vmatprep.subr.mxu0 %v757
    %1883 = vmatpush1.msra.mxu0 %v756
    %1884 = vmatprep.subr.mxu0 %v761
    %1885 = vmatpush1.msra.mxu0 %v760
    %1886 = vmatprep.subr.mxu0 0.0
    %1887 = vmatpush1.msra.mxu0 0.0
    %1888 = vmatprep.subr.mxu0 0.0
    %1889 = vmatpush1.msra.mxu0 0.0
    %1890 = vmatprep.subr.mxu0 0.0
    %1891 = vmatpush1.msra.mxu0 0.0
    %1892 = vmatprep.subr.mxu0 0.0
    %1893 = vmatpush1.msra.mxu0 0.0
    %1894 = vmatprep.subr.mxu0 0.0
    %1895 = vmatpush1.msra.mxu0 0.0
    %1896 = vmatprep.subr.mxu0 0.0
    %1897 = vmatpush1.msra.mxu0 0.0
    %1898 = vmatprep.subr.mxu0 0.0
    %1899 = vmatpush1.msra.mxu0 0.0
    %1900 = vmatprep.subr.mxu0 0.0
    %1901 = vmatpush1.msra.mxu0 0.0
    %1902 = vmatprep.subr.mxu0 0.0
    %1903 = vmatpush1.msra.mxu0 0.0
    %1904 = vmatprep.subr.mxu0 0.0
    %1905 = vmatpush1.msra.mxu0 0.0
    %1906 = vmatprep.subr.mxu0 0.0
    %1907 = vmatpush1.msra.mxu0 0.0
    %1908 = vmatprep.subr.mxu0 0.0
    %1909 = vmatpush1.msra.mxu0 0.0
    %1910 = vmatprep.subr.mxu0 0.0
    %1911 = vmatpush1.msra.mxu0 0.0
    %1912 = vmatprep.subr.mxu0 0.0
    %1913 = vmatpush1.msra.mxu0 0.0
    %1914 = vmatprep.subr.mxu0 0.0
    %1915 = vmatpush1.msra.mxu0 0.0
    %1916 = vmatprep.subr.mxu0 0.0
    %1917 = vmatpush1.msra.mxu0 0.0
    %1918 = vmatprep.mubr.f32.mxu0 0.0
    %1919 = vmatmul.mubr.f32.gmra.mrb[0].mxu0 %v1843
    %v1920 = vpop.f32.mrb[0].mxu0
    %v1921 = vadd.f32 %v1846, %v1920
    %v1922 = vpop.f32.mrb[0].mxu0
    %v1923 = vadd.f32 %v1847, %v1922
    %1924 = vdwg.mxu0
    %1925 = vmatprep.subr.mxu0 %v703
    %1926 = vmatpush1.msra.mxu0 %v702
    %1927 = vmatprep.subr.mxu0 %v707
    %1928 = vmatpush1.msra.mxu0 %v706
    %1929 = vmatprep.subr.mxu0 %v711
    %1930 = vmatpush1.msra.mxu0 %v710
    %1931 = vmatprep.subr.mxu0 %v715
    %1932 = vmatpush1.msra.mxu0 %v714
    %1933 = vmatprep.subr.mxu0 %v719
    %1934 = vmatpush1.msra.mxu0 %v718
    %1935 = vmatprep.subr.mxu0 %v723
    %1936 = vmatpush1.msra.mxu0 %v722
    %1937 = vmatprep.subr.mxu0 %v727
    %1938 = vmatpush1.msra.mxu0 %v726
    %1939 = vmatprep.subr.mxu0 %v731
    %1940 = vmatpush1.msra.mxu0 %v730
    %1941 = vmatprep.subr.mxu0 %v735
    %1942 = vmatpush1.msra.mxu0 %v734
    %1943 = vmatprep.subr.mxu0 %v739
    %1944 = vmatpush1.msra.mxu0 %v738
    %1945 = vmatprep.subr.mxu0 %v743
    %1946 = vmatpush1.msra.mxu0 %v742
    %1947 = vmatprep.subr.mxu0 %v747
    %1948 = vmatpush1.msra.mxu0 %v746
    %1949 = vmatprep.subr.mxu0 %v751
    %1950 = vmatpush1.msra.mxu0 %v750
    %1951 = vmatprep.subr.mxu0 %v755
    %1952 = vmatpush1.msra.mxu0 %v754
    %1953 = vmatprep.subr.mxu0 %v759
    %1954 = vmatpush1.msra.mxu0 %v758
    %1955 = vmatprep.subr.mxu0 %v763
    %1956 = vmatpush1.msra.mxu0 %v762
    %1957 = vmatprep.subr.mxu0 0.0
    %1958 = vmatpush1.msra.mxu0 0.0
    %1959 = vmatprep.subr.mxu0 0.0
    %1960 = vmatpush1.msra.mxu0 0.0
    %1961 = vmatprep.subr.mxu0 0.0
    %1962 = vmatpush1.msra.mxu0 0.0
    %1963 = vmatprep.subr.mxu0 0.0
    %1964 = vmatpush1.msra.mxu0 0.0
    %1965 = vmatprep.subr.mxu0 0.0
    %1966 = vmatpush1.msra.mxu0 0.0
    %1967 = vmatprep.subr.mxu0 0.0
    %1968 = vmatpush1.msra.mxu0 0.0
    %1969 = vmatprep.subr.mxu0 0.0
    %1970 = vmatpush1.msra.mxu0 0.0
    %1971 = vmatprep.subr.mxu0 0.0
    %1972 = vmatpush1.msra.mxu0 0.0
    %1973 = vmatprep.subr.mxu0 0.0
    %1974 = vmatpush1.msra.mxu0 0.0
    %1975 = vmatprep.subr.mxu0 0.0
    %1976 = vmatpush1.msra.mxu0 0.0
    %1977 = vmatprep.subr.mxu0 0.0
    %1978 = vmatpush1.msra.mxu0 0.0
    %1979 = vmatprep.subr.mxu0 0.0
    %1980 = vmatpush1.msra.mxu0 0.0
    %1981 = vmatprep.subr.mxu0 0.0
    %1982 = vmatpush1.msra.mxu0 0.0
    %1983 = vmatprep.subr.mxu0 0.0
    %1984 = vmatpush1.msra.mxu0 0.0
    %1985 = vmatprep.subr.mxu0 0.0
    %1986 = vmatpush1.msra.mxu0 0.0
    %1987 = vmatprep.subr.mxu0 0.0
    %1988 = vmatpush1.msra.mxu0 0.0
    %1989 = vmatprep.mubr.f32.mxu0 0.0
    %1990 = vmatmul.mubr.f32.gmra.mrb[0].mxu0 %v1843
    %v1991 = vpop.f32.mrb[0].mxu0
    %v1992 = vadd.f32 %v1848, %v1991
    %v1993 = vpop.f32.mrb[0].mxu0
    %v1994 = vadd.f32 %v1849, %v1993
    %1995 = vdwg.mxu0
    %v1996 = vadd.f32 %v1921, %v1850
    %v1997 = vadd.f32 %v1923, %v1851
    %v1998 = vadd.f32 %v1992, %v1852
    %v1999 = vadd.f32 %v1994, %v1853
    %v2000 = vxor.u32 %v1996, 2147483648
    %v2001 = vxor.u32 %v1997, 2147483648
    %v2002 = vxor.u32 %v1998, 2147483648
    %v2003 = vmul.f32 %v2000, 1.442695
    %v2004 = vpow.pop %v2003
    %v2005 = vmul.f32 %v2001, 1.442695
    %v2006 = vpow.pop %v2005
    %v2007 = vmul.f32 %v2002, 1.442695
    %v2008 = vpow.pop %v2007
    %v2009 = vadd.f32 %v2004, 1.0
    %v2010 = vadd.f32 %v2006, 1.0
    %v2011 = vadd.f32 %v2008, 1.0
    %v2012 = vrcp.pop %v2009
    %v2013 = vmul.f32 1.0, %v2012
    %v2014 = vrcp.pop %v2010
    %v2015 = vmul.f32 1.0, %v2014
    %v2016 = vrcp.pop %v2011
    %v2017 = vmul.f32 1.0, %v2016
    %v2018 = vtanh.pop %v1999
    %v2019 = vmul.f32 %v2015, %v1841
    %v2020 = vmul.f32 %v2013, %v2018
    %v2021 = vadd.f32 %v2019, %v2020
    %v2022 = vtanh.pop %v2021
    %v2023 = vmul.f32 %v2017, %v2022
    %2024 = vst.msk [vmem:[#allocation3 + $0x30] sm:$0xff] %vm942, %v2023
    %2025 = vst.msk [vmem:[#allocation3 + $0x8] sm:$0xff] %vm944, %v2023
    %v2026 = vld [vmem:[#allocation2 + $0x1c0] sm:$0xff]
    %v2027 = vld [vmem:[#allocation2 + $0x1c8] sm:$0xff]
    %v2028 = vld [vmem:[#allocation2 + $0x1d0] sm:$0xff]
    %v2029 = vld [vmem:[#allocation2 + $0x1d8] sm:$0xff]
    %v2030 = vld [vmem:[#allocation2 + $0x20] sm:$0xff]
    %v2031 = vld [vmem:[#allocation2 + $0x28] sm:$0xff]
    %v2032 = vld [vmem:[#allocation2 + $0x30] sm:$0xff]
    %v2033 = vld [vmem:[#allocation2 + $0x38] sm:$0xff]
    %2034 = vmatprep.subr.mxu0 %v701
    %2035 = vmatpush1.msra.mxu0 %v700
    %2036 = vmatprep.subr.mxu0 %v705
    %2037 = vmatpush1.msra.mxu0 %v704
    %2038 = vmatprep.subr.mxu0 %v709
    %2039 = vmatpush1.msra.mxu0 %v708
    %2040 = vmatprep.subr.mxu0 %v713
    %2041 = vmatpush1.msra.mxu0 %v712
    %2042 = vmatprep.subr.mxu0 %v717
    %2043 = vmatpush1.msra.mxu0 %v716
    %2044 = vmatprep.subr.mxu0 %v721
    %2045 = vmatpush1.msra.mxu0 %v720
    %2046 = vmatprep.subr.mxu0 %v725
    %2047 = vmatpush1.msra.mxu0 %v724
    %2048 = vmatprep.subr.mxu0 %v729
    %2049 = vmatpush1.msra.mxu0 %v728
    %2050 = vmatprep.subr.mxu0 %v733
    %2051 = vmatpush1.msra.mxu0 %v732
    %2052 = vmatprep.subr.mxu0 %v737
    %2053 = vmatpush1.msra.mxu0 %v736
    %2054 = vmatprep.subr.mxu0 %v741
    %2055 = vmatpush1.msra.mxu0 %v740
    %2056 = vmatprep.subr.mxu0 %v745
    %2057 = vmatpush1.msra.mxu0 %v744
    %2058 = vmatprep.subr.mxu0 %v749
    %2059 = vmatpush1.msra.mxu0 %v748
    %2060 = vmatprep.subr.mxu0 %v753
    %2061 = vmatpush1.msra.mxu0 %v752
    %2062 = vmatprep.subr.mxu0 %v757
    %2063 = vmatpush1.msra.mxu0 %v756
    %2064 = vmatprep.subr.mxu0 %v761
    %2065 = vmatpush1.msra.mxu0 %v760
    %2066 = vmatprep.subr.mxu0 0.0
    %2067 = vmatpush1.msra.mxu0 0.0
    %2068 = vmatprep.subr.mxu0 0.0
    %2069 = vmatpush1.msra.mxu0 0.0
    %2070 = vmatprep.subr.mxu0 0.0
    %2071 = vmatpush1.msra.mxu0 0.0
    %2072 = vmatprep.subr.mxu0 0.0
    %2073 = vmatpush1.msra.mxu0 0.0
    %2074 = vmatprep.subr.mxu0 0.0
    %2075 = vmatpush1.msra.mxu0 0.0
    %2076 = vmatprep.subr.mxu0 0.0
    %2077 = vmatpush1.msra.mxu0 0.0
    %2078 = vmatprep.subr.mxu0 0.0
    %2079 = vmatpush1.msra.mxu0 0.0
    %2080 = vmatprep.subr.mxu0 0.0
    %2081 = vmatpush1.msra.mxu0 0.0
    %2082 = vmatprep.subr.mxu0 0.0
    %2083 = vmatpush1.msra.mxu0 0.0
    %2084 = vmatprep.subr.mxu0 0.0
    %2085 = vmatpush1.msra.mxu0 0.0
    %2086 = vmatprep.subr.mxu0 0.0
    %2087 = vmatpush1.msra.mxu0 0.0
    %2088 = vmatprep.subr.mxu0 0.0
    %2089 = vmatpush1.msra.mxu0 0.0
    %2090 = vmatprep.subr.mxu0 0.0
    %2091 = vmatpush1.msra.mxu0 0.0
    %2092 = vmatprep.subr.mxu0 0.0
    %2093 = vmatpush1.msra.mxu0 0.0
    %2094 = vmatprep.subr.mxu0 0.0
    %2095 = vmatpush1.msra.mxu0 0.0
    %2096 = vmatprep.subr.mxu0 0.0
    %2097 = vmatpush1.msra.mxu0 0.0
    %2098 = vmatprep.mubr.f32.mxu0 0.0
    %2099 = vmatmul.mubr.f32.gmra.mrb[0].mxu0 %v2023
    %v2100 = vpop.f32.mrb[0].mxu0
    %v2101 = vadd.f32 %v2026, %v2100
    %v2102 = vpop.f32.mrb[0].mxu0
    %v2103 = vadd.f32 %v2027, %v2102
    %2104 = vdwg.mxu0
    %2105 = vmatprep.subr.mxu0 %v703
    %2106 = vmatpush1.msra.mxu0 %v702
    %2107 = vmatprep.subr.mxu0 %v707
    %2108 = vmatpush1.msra.mxu0 %v706
    %2109 = vmatprep.subr.mxu0 %v711
    %2110 = vmatpush1.msra.mxu0 %v710
    %2111 = vmatprep.subr.mxu0 %v715
    %2112 = vmatpush1.msra.mxu0 %v714
    %2113 = vmatprep.subr.mxu0 %v719
    %2114 = vmatpush1.msra.mxu0 %v718
    %2115 = vmatprep.subr.mxu0 %v723
    %2116 = vmatpush1.msra.mxu0 %v722
    %2117 = vmatprep.subr.mxu0 %v727
    %2118 = vmatpush1.msra.mxu0 %v726
    %2119 = vmatprep.subr.mxu0 %v731
    %2120 = vmatpush1.msra.mxu0 %v730
    %2121 = vmatprep.subr.mxu0 %v735
    %2122 = vmatpush1.msra.mxu0 %v734
    %2123 = vmatprep.subr.mxu0 %v739
    %2124 = vmatpush1.msra.mxu0 %v738
    %2125 = vmatprep.subr.mxu0 %v743
    %2126 = vmatpush1.msra.mxu0 %v742
    %2127 = vmatprep.subr.mxu0 %v747
    %2128 = vmatpush1.msra.mxu0 %v746
    %2129 = vmatprep.subr.mxu0 %v751
    %2130 = vmatpush1.msra.mxu0 %v750
    %2131 = vmatprep.subr.mxu0 %v755
    %2132 = vmatpush1.msra.mxu0 %v754
    %2133 = vmatprep.subr.mxu0 %v759
    %2134 = vmatpush1.msra.mxu0 %v758
    %2135 = vmatprep.subr.mxu0 %v763
    %2136 = vmatpush1.msra.mxu0 %v762
    %2137 = vmatprep.subr.mxu0 0.0
    %2138 = vmatpush1.msra.mxu0 0.0
    %2139 = vmatprep.subr.mxu0 0.0
    %2140 = vmatpush1.msra.mxu0 0.0
    %2141 = vmatprep.subr.mxu0 0.0
    %2142 = vmatpush1.msra.mxu0 0.0
    %2143 = vmatprep.subr.mxu0 0.0
    %2144 = vmatpush1.msra.mxu0 0.0
    %2145 = vmatprep.subr.mxu0 0.0
    %2146 = vmatpush1.msra.mxu0 0.0
    %2147 = vmatprep.subr.mxu0 0.0
    %2148 = vmatpush1.msra.mxu0 0.0
    %2149 = vmatprep.subr.mxu0 0.0
    %2150 = vmatpush1.msra.mxu0 0.0
    %2151 = vmatprep.subr.mxu0 0.0
    %2152 = vmatpush1.msra.mxu0 0.0
    %2153 = vmatprep.subr.mxu0 0.0
    %2154 = vmatpush1.msra.mxu0 0.0
    %2155 = vmatprep.subr.mxu0 0.0
    %2156 = vmatpush1.msra.mxu0 0.0
    %2157 = vmatprep.subr.mxu0 0.0
    %2158 = vmatpush1.msra.mxu0 0.0
    %2159 = vmatprep.subr.mxu0 0.0
    %2160 = vmatpush1.msra.mxu0 0.0
    %2161 = vmatprep.subr.mxu0 0.0
    %2162 = vmatpush1.msra.mxu0 0.0
    %2163 = vmatprep.subr.mxu0 0.0
    %2164 = vmatpush1.msra.mxu0 0.0
    %2165 = vmatprep.subr.mxu0 0.0
    %2166 = vmatpush1.msra.mxu0 0.0
    %2167 = vmatprep.subr.mxu0 0.0
    %2168 = vmatpush1.msra.mxu0 0.0
    %2169 = vmatprep.mubr.f32.mxu0 0.0
    %2170 = vmatmul.mubr.f32.gmra.mrb[0].mxu0 %v2023
    %v2171 = vpop.f32.mrb[0].mxu0
    %v2172 = vadd.f32 %v2028, %v2171
    %v2173 = vpop.f32.mrb[0].mxu0
    %v2174 = vadd.f32 %v2029, %v2173
    %2175 = vdwg.mxu0
    %v2176 = vadd.f32 %v2101, %v2030
    %v2177 = vadd.f32 %v2103, %v2031
    %v2178 = vadd.f32 %v2172, %v2032
    %v2179 = vadd.f32 %v2174, %v2033
    %v2180 = vxor.u32 %v2176, 2147483648
    %v2181 = vxor.u32 %v2177, 2147483648
    %v2182 = vxor.u32 %v2178, 2147483648
    %v2183 = vmul.f32 %v2180, 1.442695
    %v2184 = vpow.pop %v2183
    %v2185 = vmul.f32 %v2181, 1.442695
    %v2186 = vpow.pop %v2185
    %v2187 = vmul.f32 %v2182, 1.442695
    %v2188 = vpow.pop %v2187
    %v2189 = vadd.f32 %v2184, 1.0
    %v2190 = vadd.f32 %v2186, 1.0
    %v2191 = vadd.f32 %v2188, 1.0
    %v2192 = vrcp.pop %v2189
    %v2193 = vmul.f32 1.0, %v2192
    %v2194 = vrcp.pop %v2190
    %v2195 = vmul.f32 1.0, %v2194
    %v2196 = vrcp.pop %v2191
    %v2197 = vmul.f32 1.0, %v2196
    %v2198 = vtanh.pop %v2179
    %v2199 = vmul.f32 %v2195, %v2021
    %v2200 = vmul.f32 %v2193, %v2198
    %v2201 = vadd.f32 %v2199, %v2200
    %v2202 = vtanh.pop %v2201
    %v2203 = vmul.f32 %v2197, %v2202
    %2204 = vst.msk [vmem:[#allocation3 + $0x38] sm:$0xff] %vm942, %v2203
    %2205 = vst.msk [vmem:[#allocation3] sm:$0xff] %vm944, %v2203
    %v2206 = vld [vmem:[#allocation3] sm:$0xff]
    %v2207 = vld [vmem:[#allocation3 + $0x8] sm:$0xff]
    %v2208 = vld [vmem:[#allocation3 + $0x10] sm:$0xff]
    %v2209 = vld [vmem:[#allocation3 + $0x18] sm:$0xff]
    %v2210 = vld [vmem:[#allocation3 + $0x20] sm:$0xff]
    %v2211 = vld [vmem:[#allocation3 + $0x28] sm:$0xff]
    %v2212 = vld [vmem:[#allocation3 + $0x30] sm:$0xff]
    %v2213 = vld [vmem:[#allocation3 + $0x38] sm:$0xff]
    %s2214 = scalar_lea.vmem [#allocation5], 512
    %v2215 = vld [vmem:[%s2214] sm:$0xff]
    %v2216 = vld [vmem:[%s2214 + $0x8] sm:$0xff]
    %v2217 = vld [vmem:[%s2214 + $0x10] sm:$0xff]
    %v2218 = vld [vmem:[%s2214 + $0x18] sm:$0xff]
    %v2219 = vld [vmem:[%s2214 + $0x20] sm:$0xff]
    %v2220 = vld [vmem:[%s2214 + $0x28] sm:$0xff]
    %v2221 = vld [vmem:[%s2214 + $0x30] sm:$0xff]
    %v2222 = vld [vmem:[%s2214 + $0x38] sm:$0xff]
    %v2223 = vld [vmem:[%s2214 + $0x40] sm:$0xff]
    %v2224 = vld [vmem:[%s2214 + $0x48] sm:$0xff]
    %v2225 = vld [vmem:[%s2214 + $0x50] sm:$0xff]
    %v2226 = vld [vmem:[%s2214 + $0x58] sm:$0xff]
    %v2227 = vld [vmem:[%s2214 + $0x60] sm:$0xff]
    %v2228 = vld [vmem:[%s2214 + $0x68] sm:$0xff]
    %v2229 = vld [vmem:[%s2214 + $0x70] sm:$0xff]
    %v2230 = vld [vmem:[%s2214 + $0x78] sm:$0xff]
    %v2231 = vld [vmem:[%s2214 + $0x80] sm:$0xff]
    %v2232 = vld [vmem:[%s2214 + $0x88] sm:$0xff]
    %v2233 = vld [vmem:[%s2214 + $0x90] sm:$0xff]
    %v2234 = vld [vmem:[%s2214 + $0x98] sm:$0xff]
    %v2235 = vld [vmem:[%s2214 + $0xa0] sm:$0xff]
    %v2236 = vld [vmem:[%s2214 + $0xa8] sm:$0xff]
    %v2237 = vld [vmem:[%s2214 + $0xb0] sm:$0xff]
    %v2238 = vld [vmem:[%s2214 + $0xb8] sm:$0xff]
    %v2239 = vld [vmem:[%s2214 + $0xc0] sm:$0xff]
    %v2240 = vld [vmem:[%s2214 + $0xc8] sm:$0xff]
    %v2241 = vld [vmem:[%s2214 + $0xd0] sm:$0xff]
    %v2242 = vld [vmem:[%s2214 + $0xd8] sm:$0xff]
    %v2243 = vld [vmem:[%s2214 + $0xe0] sm:$0xff]
    %v2244 = vld [vmem:[%s2214 + $0xe8] sm:$0xff]
    %v2245 = vld [vmem:[%s2214 + $0xf0] sm:$0xff]
    %v2246 = vld [vmem:[%s2214 + $0xf8] sm:$0xff]
    %v2247 = vld [vmem:[%s2214 + $0x100] sm:$0xff]
    %v2248 = vld [vmem:[%s2214 + $0x108] sm:$0xff]
    %v2249 = vld [vmem:[%s2214 + $0x110] sm:$0xff]
    %v2250 = vld [vmem:[%s2214 + $0x118] sm:$0xff]
    %v2251 = vld [vmem:[%s2214 + $0x120] sm:$0xff]
    %v2252 = vld [vmem:[%s2214 + $0x128] sm:$0xff]
    %v2253 = vld [vmem:[%s2214 + $0x130] sm:$0xff]
    %v2254 = vld [vmem:[%s2214 + $0x138] sm:$0xff]
    %v2255 = vld [vmem:[%s2214 + $0x140] sm:$0xff]
    %v2256 = vld [vmem:[%s2214 + $0x148] sm:$0xff]
    %v2257 = vld [vmem:[%s2214 + $0x150] sm:$0xff]
    %v2258 = vld [vmem:[%s2214 + $0x158] sm:$0xff]
    %v2259 = vld [vmem:[%s2214 + $0x160] sm:$0xff]
    %v2260 = vld [vmem:[%s2214 + $0x168] sm:$0xff]
    %v2261 = vld [vmem:[%s2214 + $0x170] sm:$0xff]
    %v2262 = vld [vmem:[%s2214 + $0x178] sm:$0xff]
    %v2263 = vld [vmem:[%s2214 + $0x180] sm:$0xff]
    %v2264 = vld [vmem:[%s2214 + $0x188] sm:$0xff]
    %v2265 = vld [vmem:[%s2214 + $0x190] sm:$0xff]
    %v2266 = vld [vmem:[%s2214 + $0x198] sm:$0xff]
    %v2267 = vld [vmem:[%s2214 + $0x1a0] sm:$0xff]
    %v2268 = vld [vmem:[%s2214 + $0x1a8] sm:$0xff]
    %v2269 = vld [vmem:[%s2214 + $0x1b0] sm:$0xff]
    %v2270 = vld [vmem:[%s2214 + $0x1b8] sm:$0xff]
    %v2271 = vld [vmem:[%s2214 + $0x1c0] sm:$0xff]
    %v2272 = vld [vmem:[%s2214 + $0x1c8] sm:$0xff]
    %v2273 = vld [vmem:[%s2214 + $0x1d0] sm:$0xff]
    %v2274 = vld [vmem:[%s2214 + $0x1d8] sm:$0xff]
    %v2275 = vld [vmem:[%s2214 + $0x1e0] sm:$0xff]
    %v2276 = vld [vmem:[%s2214 + $0x1e8] sm:$0xff]
    %v2277 = vld [vmem:[%s2214 + $0x1f0] sm:$0xff]
    %v2278 = vld [vmem:[%s2214 + $0x1f8] sm:$0xff]
    %s2279 = scalar_lea.vmem %s3, 8
    %v2280 = vld [vmem:[%s2279] sm:$0xff]
    %v2282 = vlaneseq
    %v2283 = vshrl.u32 %v2282, 7
    %v2284 = vsub.s32 0, %v2283
    %v2285 = vrot.slane %v2280, %v2284
    %v2286 = vlaneseq
    %v2287 = vshrl.u32 %v2286, 7
    %v2288 = vsub.s32 1, %v2287
    %v2289 = vrot.slane %v2280, %v2288
    %v2290 = vlaneseq
    %v2291 = vshrl.u32 %v2290, 7
    %v2292 = vsub.s32 2, %v2291
    %v2293 = vrot.slane %v2280, %v2292
    %v2294 = vlaneseq
    %v2295 = vshrl.u32 %v2294, 7
    %v2296 = vsub.s32 3, %v2295
    %v2297 = vrot.slane %v2280, %v2296
    %v2298 = vlaneseq
    %v2299 = vshrl.u32 %v2298, 7
    %v2300 = vsub.s32 4, %v2299
    %v2301 = vrot.slane %v2280, %v2300
    %v2302 = vlaneseq
    %v2303 = vshrl.u32 %v2302, 7
    %v2304 = vsub.s32 5, %v2303
    %v2305 = vrot.slane %v2280, %v2304
    %v2306 = vlaneseq
    %v2307 = vshrl.u32 %v2306, 7
    %v2308 = vsub.s32 6, %v2307
    %v2309 = vrot.slane %v2280, %v2308
    %v2310 = vlaneseq
    %v2311 = vshrl.u32 %v2310, 7
    %v2312 = vsub.s32 7, %v2311
    %v2313 = vrot.slane %v2280, %v2312
    %v2323 = vsel %vm159, %v2206, 0
    %v2326 = vsel %vm159, %v2207, 0
    %v2329 = vsel %vm159, %v2208, 0
    %v2332 = vsel %vm159, %v2209, 0
    %v2335 = vsel %vm159, %v2210, 0
    %v2338 = vsel %vm159, %v2211, 0
    %v2341 = vsel %vm159, %v2212, 0
    %v2344 = vsel %vm159, %v2213, 0
    %2346 = vmatprep.subr.mxu0 %v2216
    %2347 = vmatpush1.msra.mxu0 %v2215
    %2348 = vmatprep.subr.mxu0 %v2224
    %2349 = vmatpush1.msra.mxu0 %v2223
    %2350 = vmatprep.subr.mxu0 %v2232
    %2351 = vmatpush1.msra.mxu0 %v2231
    %2352 = vmatprep.subr.mxu0 %v2240
    %2353 = vmatpush1.msra.mxu0 %v2239
    %2354 = vmatprep.subr.mxu0 %v2248
    %2355 = vmatpush1.msra.mxu0 %v2247
    %2356 = vmatprep.subr.mxu0 %v2256
    %2357 = vmatpush1.msra.mxu0 %v2255
    %2358 = vmatprep.subr.mxu0 %v2264
    %2359 = vmatpush1.msra.mxu0 %v2263
    %2360 = vmatprep.subr.mxu0 %v2272
    %2361 = vmatpush1.msra.mxu0 %v2271
    %2362 = vmatprep.subr.mxu0 0.0
    %2363 = vmatpush1.msra.mxu0 0.0
    %2364 = vmatprep.subr.mxu0 0.0
    %2365 = vmatpush1.msra.mxu0 0.0
    %2366 = vmatprep.subr.mxu0 0.0
    %2367 = vmatpush1.msra.mxu0 0.0
    %2368 = vmatprep.subr.mxu0 0.0
    %2369 = vmatpush1.msra.mxu0 0.0
    %2370 = vmatprep.subr.mxu0 0.0
    %2371 = vmatpush1.msra.mxu0 0.0
    %2372 = vmatprep.subr.mxu0 0.0
    %2373 = vmatpush1.msra.mxu0 0.0
    %2374 = vmatprep.subr.mxu0 0.0
    %2375 = vmatpush1.msra.mxu0 0.0
    %2376 = vmatprep.subr.mxu0 0.0
    %2377 = vmatpush1.msra.mxu0 0.0
    %2378 = vmatprep.subr.mxu0 0.0
    %2379 = vmatpush1.msra.mxu0 0.0
    %2380 = vmatprep.subr.mxu0 0.0
    %2381 = vmatpush1.msra.mxu0 0.0
    %2382 = vmatprep.subr.mxu0 0.0
    %2383 = vmatpush1.msra.mxu0 0.0
    %2384 = vmatprep.subr.mxu0 0.0
    %2385 = vmatpush1.msra.mxu0 0.0
    %2386 = vmatprep.subr.mxu0 0.0
    %2387 = vmatpush1.msra.mxu0 0.0
    %2388 = vmatprep.subr.mxu0 0.0
    %2389 = vmatpush1.msra.mxu0 0.0
    %2390 = vmatprep.subr.mxu0 0.0
    %2391 = vmatpush1.msra.mxu0 0.0
    %2392 = vmatprep.subr.mxu0 0.0
    %2393 = vmatpush1.msra.mxu0 0.0
    %2394 = vmatprep.subr.mxu0 0.0
    %2395 = vmatpush1.msra.mxu0 0.0
    %2396 = vmatprep.subr.mxu0 0.0
    %2397 = vmatpush1.msra.mxu0 0.0
    %2398 = vmatprep.subr.mxu0 0.0
    %2399 = vmatpush1.msra.mxu0 0.0
    %2400 = vmatprep.subr.mxu0 0.0
    %2401 = vmatpush1.msra.mxu0 0.0
    %2402 = vmatprep.subr.mxu0 0.0
    %2403 = vmatpush1.msra.mxu0 0.0
    %2404 = vmatprep.subr.mxu0 0.0
    %2405 = vmatpush1.msra.mxu0 0.0
    %2406 = vmatprep.subr.mxu0 0.0
    %2407 = vmatpush1.msra.mxu0 0.0
    %2408 = vmatprep.subr.mxu0 0.0
    %2409 = vmatpush1.msra.mxu0 0.0
    %2410 = vmatprep.mubr.f32.mxu0 0.0
    %2411 = vmatmul.mubr.f32.gmra.mrb[0].mxu0 %v2323
    %v2412 = vpop.f32.mrb[0].mxu0
    %v2413 = vadd.f32 %v2285, %v2412
    %v2414 = vpop.f32.mrb[0].mxu0
    %v2415 = vadd.f32 %v2289, %v2414
    %2416 = vmatprep.mubr.f32.mxu0 0.0
    %2417 = vmatmul.mubr.f32.gmra.mrb[0].mxu0 %v2326
    %v2418 = vpop.f32.mrb[0].mxu0
    %v2419 = vadd.f32 %v2285, %v2418
    %v2420 = vpop.f32.mrb[0].mxu0
    %v2421 = vadd.f32 %v2289, %v2420
    %2422 = vmatprep.mubr.f32.mxu0 0.0
    %2423 = vmatmul.mubr.f32.gmra.mrb[0].mxu0 %v2329
    %v2424 = vpop.f32.mrb[0].mxu0
    %v2425 = vadd.f32 %v2285, %v2424
    %v2426 = vpop.f32.mrb[0].mxu0
    %v2427 = vadd.f32 %v2289, %v2426
    %2428 = vmatprep.mubr.f32.mxu0 0.0
    %2429 = vmatmul.mubr.f32.gmra.mrb[0].mxu0 %v2332
    %v2430 = vpop.f32.mrb[0].mxu0
    %v2431 = vadd.f32 %v2285, %v2430
    %v2432 = vpop.f32.mrb[0].mxu0
    %v2433 = vadd.f32 %v2289, %v2432
    %2434 = vmatprep.mubr.f32.mxu0 0.0
    %2435 = vmatmul.mubr.f32.gmra.mrb[0].mxu0 %v2335
    %v2436 = vpop.f32.mrb[0].mxu0
    %v2437 = vadd.f32 %v2285, %v2436
    %v2438 = vpop.f32.mrb[0].mxu0
    %v2439 = vadd.f32 %v2289, %v2438
    %2440 = vmatprep.mubr.f32.mxu0 0.0
    %2441 = vmatmul.mubr.f32.gmra.mrb[0].mxu0 %v2338
    %v2442 = vpop.f32.mrb[0].mxu0
    %v2443 = vadd.f32 %v2285, %v2442
    %v2444 = vpop.f32.mrb[0].mxu0
    %v2445 = vadd.f32 %v2289, %v2444
    %2446 = vmatprep.mubr.f32.mxu0 0.0
    %2447 = vmatmul.mubr.f32.gmra.mrb[0].mxu0 %v2341
    %v2448 = vpop.f32.mrb[0].mxu0
    %v2449 = vadd.f32 %v2285, %v2448
    %v2450 = vpop.f32.mrb[0].mxu0
    %v2451 = vadd.f32 %v2289, %v2450
    %2452 = vmatprep.mubr.f32.mxu0 0.0
    %2453 = vmatmul.mubr.f32.gmra.mrb[0].mxu0 %v2344
    %v2454 = vpop.f32.mrb[0].mxu0
    %v2455 = vadd.f32 %v2285, %v2454
    %v2456 = vpop.f32.mrb[0].mxu0
    %v2457 = vadd.f32 %v2289, %v2456
    %2458 = vdwg.mxu0
    %2459 = vmatprep.subr.mxu0 %v2218
    %2460 = vmatpush1.msra.mxu0 %v2217
    %2461 = vmatprep.subr.mxu0 %v2226
    %2462 = vmatpush1.msra.mxu0 %v2225
    %2463 = vmatprep.subr.mxu0 %v2234
    %2464 = vmatpush1.msra.mxu0 %v2233
    %2465 = vmatprep.subr.mxu0 %v2242
    %2466 = vmatpush1.msra.mxu0 %v2241
    %2467 = vmatprep.subr.mxu0 %v2250
    %2468 = vmatpush1.msra.mxu0 %v2249
    %2469 = vmatprep.subr.mxu0 %v2258
    %2470 = vmatpush1.msra.mxu0 %v2257
    %2471 = vmatprep.subr.mxu0 %v2266
    %2472 = vmatpush1.msra.mxu0 %v2265
    %2473 = vmatprep.subr.mxu0 %v2274
    %2474 = vmatpush1.msra.mxu0 %v2273
    %2475 = vmatprep.subr.mxu0 0.0
    %2476 = vmatpush1.msra.mxu0 0.0
    %2477 = vmatprep.subr.mxu0 0.0
    %2478 = vmatpush1.msra.mxu0 0.0
    %2479 = vmatprep.subr.mxu0 0.0
    %2480 = vmatpush1.msra.mxu0 0.0
    %2481 = vmatprep.subr.mxu0 0.0
    %2482 = vmatpush1.msra.mxu0 0.0
    %2483 = vmatprep.subr.mxu0 0.0
    %2484 = vmatpush1.msra.mxu0 0.0
    %2485 = vmatprep.subr.mxu0 0.0
    %2486 = vmatpush1.msra.mxu0 0.0
    %2487 = vmatprep.subr.mxu0 0.0
    %2488 = vmatpush1.msra.mxu0 0.0
    %2489 = vmatprep.subr.mxu0 0.0
    %2490 = vmatpush1.msra.mxu0 0.0
    %2491 = vmatprep.subr.mxu0 0.0
    %2492 = vmatpush1.msra.mxu0 0.0
    %2493 = vmatprep.subr.mxu0 0.0
    %2494 = vmatpush1.msra.mxu0 0.0
    %2495 = vmatprep.subr.mxu0 0.0
    %2496 = vmatpush1.msra.mxu0 0.0
    %2497 = vmatprep.subr.mxu0 0.0
    %2498 = vmatpush1.msra.mxu0 0.0
    %2499 = vmatprep.subr.mxu0 0.0
    %2500 = vmatpush1.msra.mxu0 0.0
    %2501 = vmatprep.subr.mxu0 0.0
    %2502 = vmatpush1.msra.mxu0 0.0
    %2503 = vmatprep.subr.mxu0 0.0
    %2504 = vmatpush1.msra.mxu0 0.0
    %2505 = vmatprep.subr.mxu0 0.0
    %2506 = vmatpush1.msra.mxu0 0.0
    %2507 = vmatprep.subr.mxu0 0.0
    %2508 = vmatpush1.msra.mxu0 0.0
    %2509 = vmatprep.subr.mxu0 0.0
    %2510 = vmatpush1.msra.mxu0 0.0
    %2511 = vmatprep.subr.mxu0 0.0
    %2512 = vmatpush1.msra.mxu0 0.0
    %2513 = vmatprep.subr.mxu0 0.0
    %2514 = vmatpush1.msra.mxu0 0.0
    %2515 = vmatprep.subr.mxu0 0.0
    %2516 = vmatpush1.msra.mxu0 0.0
    %2517 = vmatprep.subr.mxu0 0.0
    %2518 = vmatpush1.msra.mxu0 0.0
    %2519 = vmatprep.subr.mxu0 0.0
    %2520 = vmatpush1.msra.mxu0 0.0
    %2521 = vmatprep.subr.mxu0 0.0
    %2522 = vmatpush1.msra.mxu0 0.0
    %2523 = vmatprep.mubr.f32.mxu0 0.0
    %2524 = vmatmul.mubr.f32.gmra.mrb[0].mxu0 %v2323
    %v2525 = vpop.f32.mrb[0].mxu0
    %v2526 = vadd.f32 %v2293, %v2525
    %v2527 = vpop.f32.mrb[0].mxu0
    %v2528 = vadd.f32 %v2297, %v2527
    %2529 = vmatprep.mubr.f32.mxu0 0.0
    %2530 = vmatmul.mubr.f32.gmra.mrb[0].mxu0 %v2326
    %v2531 = vpop.f32.mrb[0].mxu0
    %v2532 = vadd.f32 %v2293, %v2531
    %v2533 = vpop.f32.mrb[0].mxu0
    %v2534 = vadd.f32 %v2297, %v2533
    %2535 = vmatprep.mubr.f32.mxu0 0.0
    %2536 = vmatmul.mubr.f32.gmra.mrb[0].mxu0 %v2329
    %v2537 = vpop.f32.mrb[0].mxu0
    %v2538 = vadd.f32 %v2293, %v2537
    %v2539 = vpop.f32.mrb[0].mxu0
    %v2540 = vadd.f32 %v2297, %v2539
    %2541 = vmatprep.mubr.f32.mxu0 0.0
    %2542 = vmatmul.mubr.f32.gmra.mrb[0].mxu0 %v2332
    %v2543 = vpop.f32.mrb[0].mxu0
    %v2544 = vadd.f32 %v2293, %v2543
    %v2545 = vpop.f32.mrb[0].mxu0
    %v2546 = vadd.f32 %v2297, %v2545
    %2547 = vmatprep.mubr.f32.mxu0 0.0
    %2548 = vmatmul.mubr.f32.gmra.mrb[0].mxu0 %v2335
    %v2549 = vpop.f32.mrb[0].mxu0
    %v2550 = vadd.f32 %v2293, %v2549
    %v2551 = vpop.f32.mrb[0].mxu0
    %v2552 = vadd.f32 %v2297, %v2551
    %2553 = vmatprep.mubr.f32.mxu0 0.0
    %2554 = vmatmul.mubr.f32.gmra.mrb[0].mxu0 %v2338
    %v2555 = vpop.f32.mrb[0].mxu0
    %v2556 = vadd.f32 %v2293, %v2555
    %v2557 = vpop.f32.mrb[0].mxu0
    %v2558 = vadd.f32 %v2297, %v2557
    %2559 = vmatprep.mubr.f32.mxu0 0.0
    %2560 = vmatmul.mubr.f32.gmra.mrb[0].mxu0 %v2341
    %v2561 = vpop.f32.mrb[0].mxu0
    %v2562 = vadd.f32 %v2293, %v2561
    %v2563 = vpop.f32.mrb[0].mxu0
    %v2564 = vadd.f32 %v2297, %v2563
    %2565 = vmatprep.mubr.f32.mxu0 0.0
    %2566 = vmatmul.mubr.f32.gmra.mrb[0].mxu0 %v2344
    %v2567 = vpop.f32.mrb[0].mxu0
    %v2568 = vadd.f32 %v2293, %v2567
    %v2569 = vpop.f32.mrb[0].mxu0
    %v2570 = vadd.f32 %v2297, %v2569
    %2571 = vdwg.mxu0
    %2572 = vmatprep.subr.mxu0 %v2220
    %2573 = vmatpush1.msra.mxu0 %v2219
    %2574 = vmatprep.subr.mxu0 %v2228
    %2575 = vmatpush1.msra.mxu0 %v2227
    %2576 = vmatprep.subr.mxu0 %v2236
    %2577 = vmatpush1.msra.mxu0 %v2235
    %2578 = vmatprep.subr.mxu0 %v2244
    %2579 = vmatpush1.msra.mxu0 %v2243
    %2580 = vmatprep.subr.mxu0 %v2252
    %2581 = vmatpush1.msra.mxu0 %v2251
    %2582 = vmatprep.subr.mxu0 %v2260
    %2583 = vmatpush1.msra.mxu0 %v2259
    %2584 = vmatprep.subr.mxu0 %v2268
    %2585 = vmatpush1.msra.mxu0 %v2267
    %2586 = vmatprep.subr.mxu0 %v2276
    %2587 = vmatpush1.msra.mxu0 %v2275
    %2588 = vmatprep.subr.mxu0 0.0
    %2589 = vmatpush1.msra.mxu0 0.0
    %2590 = vmatprep.subr.mxu0 0.0
    %2591 = vmatpush1.msra.mxu0 0.0
    %2592 = vmatprep.subr.mxu0 0.0
    %2593 = vmatpush1.msra.mxu0 0.0
    %2594 = vmatprep.subr.mxu0 0.0
    %2595 = vmatpush1.msra.mxu0 0.0
    %2596 = vmatprep.subr.mxu0 0.0
    %2597 = vmatpush1.msra.mxu0 0.0
    %2598 = vmatprep.subr.mxu0 0.0
    %2599 = vmatpush1.msra.mxu0 0.0
    %2600 = vmatprep.subr.mxu0 0.0
    %2601 = vmatpush1.msra.mxu0 0.0
    %2602 = vmatprep.subr.mxu0 0.0
    %2603 = vmatpush1.msra.mxu0 0.0
    %2604 = vmatprep.subr.mxu0 0.0
    %2605 = vmatpush1.msra.mxu0 0.0
    %2606 = vmatprep.subr.mxu0 0.0
    %2607 = vmatpush1.msra.mxu0 0.0
    %2608 = vmatprep.subr.mxu0 0.0
    %2609 = vmatpush1.msra.mxu0 0.0
    %2610 = vmatprep.subr.mxu0 0.0
    %2611 = vmatpush1.msra.mxu0 0.0
    %2612 = vmatprep.subr.mxu0 0.0
    %2613 = vmatpush1.msra.mxu0 0.0
    %2614 = vmatprep.subr.mxu0 0.0
    %2615 = vmatpush1.msra.mxu0 0.0
    %2616 = vmatprep.subr.mxu0 0.0
    %2617 = vmatpush1.msra.mxu0 0.0
    %2618 = vmatprep.subr.mxu0 0.0
    %2619 = vmatpush1.msra.mxu0 0.0
    %2620 = vmatprep.subr.mxu0 0.0
    %2621 = vmatpush1.msra.mxu0 0.0
    %2622 = vmatprep.subr.mxu0 0.0
    %2623 = vmatpush1.msra.mxu0 0.0
    %2624 = vmatprep.subr.mxu0 0.0
    %2625 = vmatpush1.msra.mxu0 0.0
    %2626 = vmatprep.subr.mxu0 0.0
    %2627 = vmatpush1.msra.mxu0 0.0
    %2628 = vmatprep.subr.mxu0 0.0
    %2629 = vmatpush1.msra.mxu0 0.0
    %2630 = vmatprep.subr.mxu0 0.0
    %2631 = vmatpush1.msra.mxu0 0.0
    %2632 = vmatprep.subr.mxu0 0.0
    %2633 = vmatpush1.msra.mxu0 0.0
    %2634 = vmatprep.subr.mxu0 0.0
    %2635 = vmatpush1.msra.mxu0 0.0
    %2636 = vmatprep.mubr.f32.mxu0 0.0
    %2637 = vmatmul.mubr.f32.gmra.mrb[0].mxu0 %v2323
    %v2638 = vpop.f32.mrb[0].mxu0
    %v2639 = vadd.f32 %v2301, %v2638
    %v2640 = vpop.f32.mrb[0].mxu0
    %v2641 = vadd.f32 %v2305, %v2640
    %2642 = vmatprep.mubr.f32.mxu0 0.0
    %2643 = vmatmul.mubr.f32.gmra.mrb[0].mxu0 %v2326
    %v2644 = vpop.f32.mrb[0].mxu0
    %v2645 = vadd.f32 %v2301, %v2644
    %v2646 = vpop.f32.mrb[0].mxu0
    %v2647 = vadd.f32 %v2305, %v2646
    %2648 = vmatprep.mubr.f32.mxu0 0.0
    %2649 = vmatmul.mubr.f32.gmra.mrb[0].mxu0 %v2329
    %v2650 = vpop.f32.mrb[0].mxu0
    %v2651 = vadd.f32 %v2301, %v2650
    %v2652 = vpop.f32.mrb[0].mxu0
    %v2653 = vadd.f32 %v2305, %v2652
    %2654 = vmatprep.mubr.f32.mxu0 0.0
    %2655 = vmatmul.mubr.f32.gmra.mrb[0].mxu0 %v2332
    %v2656 = vpop.f32.mrb[0].mxu0
    %v2657 = vadd.f32 %v2301, %v2656
    %v2658 = vpop.f32.mrb[0].mxu0
    %v2659 = vadd.f32 %v2305, %v2658
    %2660 = vmatprep.mubr.f32.mxu0 0.0
    %2661 = vmatmul.mubr.f32.gmra.mrb[0].mxu0 %v2335
    %v2662 = vpop.f32.mrb[0].mxu0
    %v2663 = vadd.f32 %v2301, %v2662
    %v2664 = vpop.f32.mrb[0].mxu0
    %v2665 = vadd.f32 %v2305, %v2664
    %2666 = vmatprep.mubr.f32.mxu0 0.0
    %2667 = vmatmul.mubr.f32.gmra.mrb[0].mxu0 %v2338
    %v2668 = vpop.f32.mrb[0].mxu0
    %v2669 = vadd.f32 %v2301, %v2668
    %v2670 = vpop.f32.mrb[0].mxu0
    %v2671 = vadd.f32 %v2305, %v2670
    %2672 = vmatprep.mubr.f32.mxu0 0.0
    %2673 = vmatmul.mubr.f32.gmra.mrb[0].mxu0 %v2341
    %v2674 = vpop.f32.mrb[0].mxu0
    %v2675 = vadd.f32 %v2301, %v2674
    %v2676 = vpop.f32.mrb[0].mxu0
    %v2677 = vadd.f32 %v2305, %v2676
    %2678 = vmatprep.mubr.f32.mxu0 0.0
    %2679 = vmatmul.mubr.f32.gmra.mrb[0].mxu0 %v2344
    %v2680 = vpop.f32.mrb[0].mxu0
    %v2681 = vadd.f32 %v2301, %v2680
    %v2682 = vpop.f32.mrb[0].mxu0
    %v2683 = vadd.f32 %v2305, %v2682
    %2684 = vdwg.mxu0
    %2685 = vmatprep.subr.mxu0 %v2222
    %2686 = vmatpush1.msra.mxu0 %v2221
    %2687 = vmatprep.subr.mxu0 %v2230
    %2688 = vmatpush1.msra.mxu0 %v2229
    %2689 = vmatprep.subr.mxu0 %v2238
    %2690 = vmatpush1.msra.mxu0 %v2237
    %2691 = vmatprep.subr.mxu0 %v2246
    %2692 = vmatpush1.msra.mxu0 %v2245
    %2693 = vmatprep.subr.mxu0 %v2254
    %2694 = vmatpush1.msra.mxu0 %v2253
    %2695 = vmatprep.subr.mxu0 %v2262
    %2696 = vmatpush1.msra.mxu0 %v2261
    %2697 = vmatprep.subr.mxu0 %v2270
    %2698 = vmatpush1.msra.mxu0 %v2269
    %2699 = vmatprep.subr.mxu0 %v2278
    %2700 = vmatpush1.msra.mxu0 %v2277
    %2701 = vmatprep.subr.mxu0 0.0
    %2702 = vmatpush1.msra.mxu0 0.0
    %2703 = vmatprep.subr.mxu0 0.0
    %2704 = vmatpush1.msra.mxu0 0.0
    %2705 = vmatprep.subr.mxu0 0.0
    %2706 = vmatpush1.msra.mxu0 0.0
    %2707 = vmatprep.subr.mxu0 0.0
    %2708 = vmatpush1.msra.mxu0 0.0
    %2709 = vmatprep.subr.mxu0 0.0
    %2710 = vmatpush1.msra.mxu0 0.0
    %2711 = vmatprep.subr.mxu0 0.0
    %2712 = vmatpush1.msra.mxu0 0.0
    %2713 = vmatprep.subr.mxu0 0.0
    %2714 = vmatpush1.msra.mxu0 0.0
    %2715 = vmatprep.subr.mxu0 0.0
    %2716 = vmatpush1.msra.mxu0 0.0
    %2717 = vmatprep.subr.mxu0 0.0
    %2718 = vmatpush1.msra.mxu0 0.0
    %2719 = vmatprep.subr.mxu0 0.0
    %2720 = vmatpush1.msra.mxu0 0.0
    %2721 = vmatprep.subr.mxu0 0.0
    %2722 = vmatpush1.msra.mxu0 0.0
    %2723 = vmatprep.subr.mxu0 0.0
    %2724 = vmatpush1.msra.mxu0 0.0
    %2725 = vmatprep.subr.mxu0 0.0
    %2726 = vmatpush1.msra.mxu0 0.0
    %2727 = vmatprep.subr.mxu0 0.0
    %2728 = vmatpush1.msra.mxu0 0.0
    %2729 = vmatprep.subr.mxu0 0.0
    %2730 = vmatpush1.msra.mxu0 0.0
    %2731 = vmatprep.subr.mxu0 0.0
    %2732 = vmatpush1.msra.mxu0 0.0
    %2733 = vmatprep.subr.mxu0 0.0
    %2734 = vmatpush1.msra.mxu0 0.0
    %2735 = vmatprep.subr.mxu0 0.0
    %2736 = vmatpush1.msra.mxu0 0.0
    %2737 = vmatprep.subr.mxu0 0.0
    %2738 = vmatpush1.msra.mxu0 0.0
    %2739 = vmatprep.subr.mxu0 0.0
    %2740 = vmatpush1.msra.mxu0 0.0
    %2741 = vmatprep.subr.mxu0 0.0
    %2742 = vmatpush1.msra.mxu0 0.0
    %2743 = vmatprep.subr.mxu0 0.0
    %2744 = vmatpush1.msra.mxu0 0.0
    %2745 = vmatprep.subr.mxu0 0.0
    %2746 = vmatpush1.msra.mxu0 0.0
    %2747 = vmatprep.subr.mxu0 0.0
    %2748 = vmatpush1.msra.mxu0 0.0
    %2749 = vmatprep.mubr.f32.mxu0 0.0
    %2750 = vmatmul.mubr.f32.gmra.mrb[0].mxu0 %v2323
    %v2751 = vpop.f32.mrb[0].mxu0
    %v2752 = vadd.f32 %v2309, %v2751
    %v2753 = vpop.f32.mrb[0].mxu0
    %v2754 = vadd.f32 %v2313, %v2753
    %2755 = vmatprep.mubr.f32.mxu0 0.0
    %2756 = vmatmul.mubr.f32.gmra.mrb[0].mxu0 %v2326
    %v2757 = vpop.f32.mrb[0].mxu0
    %v2758 = vadd.f32 %v2309, %v2757
    %v2759 = vpop.f32.mrb[0].mxu0
    %v2760 = vadd.f32 %v2313, %v2759
    %2761 = vmatprep.mubr.f32.mxu0 0.0
    %2762 = vmatmul.mubr.f32.gmra.mrb[0].mxu0 %v2329
    %v2763 = vpop.f32.mrb[0].mxu0
    %v2764 = vadd.f32 %v2309, %v2763
    %v2765 = vpop.f32.mrb[0].mxu0
    %v2766 = vadd.f32 %v2313, %v2765
    %2767 = vmatprep.mubr.f32.mxu0 0.0
    %2768 = vmatmul.mubr.f32.gmra.mrb[0].mxu0 %v2332
    %v2769 = vpop.f32.mrb[0].mxu0
    %v2770 = vadd.f32 %v2309, %v2769
    %v2771 = vpop.f32.mrb[0].mxu0
    %v2772 = vadd.f32 %v2313, %v2771
    %2773 = vmatprep.mubr.f32.mxu0 0.0
    %2774 = vmatmul.mubr.f32.gmra.mrb[0].mxu0 %v2335
    %v2775 = vpop.f32.mrb[0].mxu0
    %v2776 = vadd.f32 %v2309, %v2775
    %v2777 = vpop.f32.mrb[0].mxu0
    %v2778 = vadd.f32 %v2313, %v2777
    %2779 = vmatprep.mubr.f32.mxu0 0.0
    %2780 = vmatmul.mubr.f32.gmra.mrb[0].mxu0 %v2338
    %v2781 = vpop.f32.mrb[0].mxu0
    %v2782 = vadd.f32 %v2309, %v2781
    %v2783 = vpop.f32.mrb[0].mxu0
    %v2784 = vadd.f32 %v2313, %v2783
    %2785 = vmatprep.mubr.f32.mxu0 0.0
    %2786 = vmatmul.mubr.f32.gmra.mrb[0].mxu0 %v2341
    %v2787 = vpop.f32.mrb[0].mxu0
    %v2788 = vadd.f32 %v2309, %v2787
    %v2789 = vpop.f32.mrb[0].mxu0
    %v2790 = vadd.f32 %v2313, %v2789
    %2791 = vmatprep.mubr.f32.mxu0 0.0
    %2792 = vmatmul.mubr.f32.gmra.mrb[0].mxu0 %v2344
    %v2793 = vpop.f32.mrb[0].mxu0
    %v2794 = vadd.f32 %v2309, %v2793
    %v2795 = vpop.f32.mrb[0].mxu0
    %v2796 = vadd.f32 %v2313, %v2795
    %2797 = vdwg.mxu0
    %2798 = vst [vmem:[#allocation2] sm:$0xff] %v2413
    %2799 = vst [vmem:[#allocation2 + $0x8] sm:$0xff] %v2415
    %2800 = vst [vmem:[#allocation2 + $0x10] sm:$0xff] %v2526
    %2801 = vst [vmem:[#allocation2 + $0x18] sm:$0xff] %v2528
    %2802 = vst [vmem:[#allocation2 + $0x20] sm:$0xff] %v2639
    %2803 = vst [vmem:[#allocation2 + $0x28] sm:$0xff] %v2641
    %2804 = vst [vmem:[#allocation2 + $0x30] sm:$0xff] %v2752
    %2805 = vst [vmem:[#allocation2 + $0x38] sm:$0xff] %v2754
    %2806 = vst [vmem:[#allocation2 + $0x40] sm:$0xff] %v2419
    %2807 = vst [vmem:[#allocation2 + $0x48] sm:$0xff] %v2421
    %2808 = vst [vmem:[#allocation2 + $0x50] sm:$0xff] %v2532
    %2809 = vst [vmem:[#allocation2 + $0x58] sm:$0xff] %v2534
    %2810 = vst [vmem:[#allocation2 + $0x60] sm:$0xff] %v2645
    %2811 = vst [vmem:[#allocation2 + $0x68] sm:$0xff] %v2647
    %2812 = vst [vmem:[#allocation2 + $0x70] sm:$0xff] %v2758
    %2813 = vst [vmem:[#allocation2 + $0x78] sm:$0xff] %v2760
    %2814 = vst [vmem:[#allocation2 + $0x80] sm:$0xff] %v2425
    %2815 = vst [vmem:[#allocation2 + $0x88] sm:$0xff] %v2427
    %2816 = vst [vmem:[#allocation2 + $0x90] sm:$0xff] %v2538
    %2817 = vst [vmem:[#allocation2 + $0x98] sm:$0xff] %v2540
    %2818 = vst [vmem:[#allocation2 + $0xa0] sm:$0xff] %v2651
    %2819 = vst [vmem:[#allocation2 + $0xa8] sm:$0xff] %v2653
    %2820 = vst [vmem:[#allocation2 + $0xb0] sm:$0xff] %v2764
    %2821 = vst [vmem:[#allocation2 + $0xb8] sm:$0xff] %v2766
    %2822 = vst [vmem:[#allocation2 + $0xc0] sm:$0xff] %v2431
    %2823 = vst [vmem:[#allocation2 + $0xc8] sm:$0xff] %v2433
    %2824 = vst [vmem:[#allocation2 + $0xd0] sm:$0xff] %v2544
    %2825 = vst [vmem:[#allocation2 + $0xd8] sm:$0xff] %v2546
    %2826 = vst [vmem:[#allocation2 + $0xe0] sm:$0xff] %v2657
    %2827 = vst [vmem:[#allocation2 + $0xe8] sm:$0xff] %v2659
    %2828 = vst [vmem:[#allocation2 + $0xf0] sm:$0xff] %v2770
    %2829 = vst [vmem:[#allocation2 + $0xf8] sm:$0xff] %v2772
    %2830 = vst [vmem:[#allocation2 + $0x100] sm:$0xff] %v2437
    %2831 = vst [vmem:[#allocation2 + $0x108] sm:$0xff] %v2439
    %2832 = vst [vmem:[#allocation2 + $0x110] sm:$0xff] %v2550
    %2833 = vst [vmem:[#allocation2 + $0x118] sm:$0xff] %v2552
    %2834 = vst [vmem:[#allocation2 + $0x120] sm:$0xff] %v2663
    %2835 = vst [vmem:[#allocation2 + $0x128] sm:$0xff] %v2665
    %2836 = vst [vmem:[#allocation2 + $0x130] sm:$0xff] %v2776
    %2837 = vst [vmem:[#allocation2 + $0x138] sm:$0xff] %v2778
    %2838 = vst [vmem:[#allocation2 + $0x140] sm:$0xff] %v2443
    %2839 = vst [vmem:[#allocation2 + $0x148] sm:$0xff] %v2445
    %2840 = vst [vmem:[#allocation2 + $0x150] sm:$0xff] %v2556
    %2841 = vst [vmem:[#allocation2 + $0x158] sm:$0xff] %v2558
    %2842 = vst [vmem:[#allocation2 + $0x160] sm:$0xff] %v2669
    %2843 = vst [vmem:[#allocation2 + $0x168] sm:$0xff] %v2671
    %2844 = vst [vmem:[#allocation2 + $0x170] sm:$0xff] %v2782
    %2845 = vst [vmem:[#allocation2 + $0x178] sm:$0xff] %v2784
    %2846 = vst [vmem:[#allocation2 + $0x180] sm:$0xff] %v2449
    %2847 = vst [vmem:[#allocation2 + $0x188] sm:$0xff] %v2451
    %2848 = vst [vmem:[#allocation2 + $0x190] sm:$0xff] %v2562
    %2849 = vst [vmem:[#allocation2 + $0x198] sm:$0xff] %v2564
    %2850 = vst [vmem:[#allocation2 + $0x1a0] sm:$0xff] %v2675
    %2851 = vst [vmem:[#allocation2 + $0x1a8] sm:$0xff] %v2677
    %2852 = vst [vmem:[#allocation2 + $0x1b0] sm:$0xff] %v2788
    %2853 = vst [vmem:[#allocation2 + $0x1b8] sm:$0xff] %v2790
    %2854 = vst [vmem:[#allocation2 + $0x1c0] sm:$0xff] %v2455
    %2855 = vst [vmem:[#allocation2 + $0x1c8] sm:$0xff] %v2457
    %2856 = vst [vmem:[#allocation2 + $0x1d0] sm:$0xff] %v2568
    %2857 = vst [vmem:[#allocation2 + $0x1d8] sm:$0xff] %v2570
    %2858 = vst [vmem:[#allocation2 + $0x1e0] sm:$0xff] %v2681
    %2859 = vst [vmem:[#allocation2 + $0x1e8] sm:$0xff] %v2683
    %2860 = vst [vmem:[#allocation2 + $0x1f0] sm:$0xff] %v2794
    %2861 = vst [vmem:[#allocation2 + $0x1f8] sm:$0xff] %v2796
    %s2862 = scalar_lea.vmem [#allocation7], 512
    %v2863 = vld [vmem:[%s2862] sm:$0xff]
    %v2864 = vld [vmem:[%s2862 + $0x8] sm:$0xff]
    %v2865 = vld [vmem:[%s2862 + $0x10] sm:$0xff]
    %v2866 = vld [vmem:[%s2862 + $0x18] sm:$0xff]
    %v2867 = vld [vmem:[%s2862 + $0x20] sm:$0xff]
    %v2868 = vld [vmem:[%s2862 + $0x28] sm:$0xff]
    %v2869 = vld [vmem:[%s2862 + $0x30] sm:$0xff]
    %v2870 = vld [vmem:[%s2862 + $0x38] sm:$0xff]
    %v2871 = vld [vmem:[%s2862 + $0x40] sm:$0xff]
    %v2872 = vld [vmem:[%s2862 + $0x48] sm:$0xff]
    %v2873 = vld [vmem:[%s2862 + $0x50] sm:$0xff]
    %v2874 = vld [vmem:[%s2862 + $0x58] sm:$0xff]
    %v2875 = vld [vmem:[%s2862 + $0x60] sm:$0xff]
    %v2876 = vld [vmem:[%s2862 + $0x68] sm:$0xff]
    %v2877 = vld [vmem:[%s2862 + $0x70] sm:$0xff]
    %v2878 = vld [vmem:[%s2862 + $0x78] sm:$0xff]
    %v2879 = vld [vmem:[%s2862 + $0x80] sm:$0xff]
    %v2880 = vld [vmem:[%s2862 + $0x88] sm:$0xff]
    %v2881 = vld [vmem:[%s2862 + $0x90] sm:$0xff]
    %v2882 = vld [vmem:[%s2862 + $0x98] sm:$0xff]
    %v2883 = vld [vmem:[%s2862 + $0xa0] sm:$0xff]
    %v2884 = vld [vmem:[%s2862 + $0xa8] sm:$0xff]
    %v2885 = vld [vmem:[%s2862 + $0xb0] sm:$0xff]
    %v2886 = vld [vmem:[%s2862 + $0xb8] sm:$0xff]
    %v2887 = vld [vmem:[%s2862 + $0xc0] sm:$0xff]
    %v2888 = vld [vmem:[%s2862 + $0xc8] sm:$0xff]
    %v2889 = vld [vmem:[%s2862 + $0xd0] sm:$0xff]
    %v2890 = vld [vmem:[%s2862 + $0xd8] sm:$0xff]
    %v2891 = vld [vmem:[%s2862 + $0xe0] sm:$0xff]
    %v2892 = vld [vmem:[%s2862 + $0xe8] sm:$0xff]
    %v2893 = vld [vmem:[%s2862 + $0xf0] sm:$0xff]
    %v2894 = vld [vmem:[%s2862 + $0xf8] sm:$0xff]
    %v2895 = vld [vmem:[%s2862 + $0x100] sm:$0xff]
    %v2896 = vld [vmem:[%s2862 + $0x108] sm:$0xff]
    %v2897 = vld [vmem:[%s2862 + $0x110] sm:$0xff]
    %v2898 = vld [vmem:[%s2862 + $0x118] sm:$0xff]
    %v2899 = vld [vmem:[%s2862 + $0x120] sm:$0xff]
    %v2900 = vld [vmem:[%s2862 + $0x128] sm:$0xff]
    %v2901 = vld [vmem:[%s2862 + $0x130] sm:$0xff]
    %v2902 = vld [vmem:[%s2862 + $0x138] sm:$0xff]
    %v2903 = vld [vmem:[%s2862 + $0x140] sm:$0xff]
    %v2904 = vld [vmem:[%s2862 + $0x148] sm:$0xff]
    %v2905 = vld [vmem:[%s2862 + $0x150] sm:$0xff]
    %v2906 = vld [vmem:[%s2862 + $0x158] sm:$0xff]
    %v2907 = vld [vmem:[%s2862 + $0x160] sm:$0xff]
    %v2908 = vld [vmem:[%s2862 + $0x168] sm:$0xff]
    %v2909 = vld [vmem:[%s2862 + $0x170] sm:$0xff]
    %v2910 = vld [vmem:[%s2862 + $0x178] sm:$0xff]
    %v2911 = vld [vmem:[%s2862 + $0x180] sm:$0xff]
    %v2912 = vld [vmem:[%s2862 + $0x188] sm:$0xff]
    %v2913 = vld [vmem:[%s2862 + $0x190] sm:$0xff]
    %v2914 = vld [vmem:[%s2862 + $0x198] sm:$0xff]
    %v2915 = vld [vmem:[%s2862 + $0x1a0] sm:$0xff]
    %v2916 = vld [vmem:[%s2862 + $0x1a8] sm:$0xff]
    %v2917 = vld [vmem:[%s2862 + $0x1b0] sm:$0xff]
    %v2918 = vld [vmem:[%s2862 + $0x1b8] sm:$0xff]
    %v2919 = vld [vmem:[%s2862 + $0x1c0] sm:$0xff]
    %v2920 = vld [vmem:[%s2862 + $0x1c8] sm:$0xff]
    %v2921 = vld [vmem:[%s2862 + $0x1d0] sm:$0xff]
    %v2922 = vld [vmem:[%s2862 + $0x1d8] sm:$0xff]
    %v2923 = vld [vmem:[%s2862 + $0x1e0] sm:$0xff]
    %v2924 = vld [vmem:[%s2862 + $0x1e8] sm:$0xff]
    %v2925 = vld [vmem:[%s2862 + $0x1f0] sm:$0xff]
    %v2926 = vld [vmem:[%s2862 + $0x1f8] sm:$0xff]
    %v2927 = vld [vmem:[#allocation2] sm:$0xff]
    %v2928 = vld [vmem:[#allocation2 + $0x8] sm:$0xff]
    %v2929 = vld [vmem:[#allocation2 + $0x10] sm:$0xff]
    %v2930 = vld [vmem:[#allocation2 + $0x18] sm:$0xff]
    %v2931 = vld [vmem:[#allocation2 + $0x1e0] sm:$0xff]
    %v2932 = vld [vmem:[#allocation2 + $0x1e8] sm:$0xff]
    %v2933 = vld [vmem:[#allocation2 + $0x1f0] sm:$0xff]
    %v2934 = vld [vmem:[#allocation2 + $0x1f8] sm:$0xff]
    %2935 = vmatprep.subr.mxu0 %v2864
    %2936 = vmatpush1.msra.mxu0 %v2863
    %2937 = vmatprep.subr.mxu0 %v2868
    %2938 = vmatpush1.msra.mxu0 %v2867
    %2939 = vmatprep.subr.mxu0 %v2872
    %2940 = vmatpush1.msra.mxu0 %v2871
    %2941 = vmatprep.subr.mxu0 %v2876
    %2942 = vmatpush1.msra.mxu0 %v2875
    %2943 = vmatprep.subr.mxu0 %v2880
    %2944 = vmatpush1.msra.mxu0 %v2879
    %2945 = vmatprep.subr.mxu0 %v2884
    %2946 = vmatpush1.msra.mxu0 %v2883
    %2947 = vmatprep.subr.mxu0 %v2888
    %2948 = vmatpush1.msra.mxu0 %v2887
    %2949 = vmatprep.subr.mxu0 %v2892
    %2950 = vmatpush1.msra.mxu0 %v2891
    %2951 = vmatprep.subr.mxu0 %v2896
    %2952 = vmatpush1.msra.mxu0 %v2895
    %2953 = vmatprep.subr.mxu0 %v2900
    %2954 = vmatpush1.msra.mxu0 %v2899
    %2955 = vmatprep.subr.mxu0 %v2904
    %2956 = vmatpush1.msra.mxu0 %v2903
    %2957 = vmatprep.subr.mxu0 %v2908
    %2958 = vmatpush1.msra.mxu0 %v2907
    %2959 = vmatprep.subr.mxu0 %v2912
    %2960 = vmatpush1.msra.mxu0 %v2911
    %2961 = vmatprep.subr.mxu0 %v2916
    %2962 = vmatpush1.msra.mxu0 %v2915
    %2963 = vmatprep.subr.mxu0 %v2920
    %2964 = vmatpush1.msra.mxu0 %v2919
    %2965 = vmatprep.subr.mxu0 %v2924
    %2966 = vmatpush1.msra.mxu0 %v2923
    %2967 = vmatprep.subr.mxu0 0.0
    %2968 = vmatpush1.msra.mxu0 0.0
    %2969 = vmatprep.subr.mxu0 0.0
    %2970 = vmatpush1.msra.mxu0 0.0
    %2971 = vmatprep.subr.mxu0 0.0
    %2972 = vmatpush1.msra.mxu0 0.0
    %2973 = vmatprep.subr.mxu0 0.0
    %2974 = vmatpush1.msra.mxu0 0.0
    %2975 = vmatprep.subr.mxu0 0.0
    %2976 = vmatpush1.msra.mxu0 0.0
    %2977 = vmatprep.subr.mxu0 0.0
    %2978 = vmatpush1.msra.mxu0 0.0
    %2979 = vmatprep.subr.mxu0 0.0
    %2980 = vmatpush1.msra.mxu0 0.0
    %2981 = vmatprep.subr.mxu0 0.0
    %2982 = vmatpush1.msra.mxu0 0.0
    %2983 = vmatprep.subr.mxu0 0.0
    %2984 = vmatpush1.msra.mxu0 0.0
    %2985 = vmatprep.subr.mxu0 0.0
    %2986 = vmatpush1.msra.mxu0 0.0
    %2987 = vmatprep.subr.mxu0 0.0
    %2988 = vmatpush1.msra.mxu0 0.0
    %2989 = vmatprep.subr.mxu0 0.0
    %2990 = vmatpush1.msra.mxu0 0.0
    %2991 = vmatprep.subr.mxu0 0.0
    %2992 = vmatpush1.msra.mxu0 0.0
    %2993 = vmatprep.subr.mxu0 0.0
    %2994 = vmatpush1.msra.mxu0 0.0
    %2995 = vmatprep.subr.mxu0 0.0
    %2996 = vmatpush1.msra.mxu0 0.0
    %2997 = vmatprep.subr.mxu0 0.0
    %2998 = vmatpush1.msra.mxu0 0.0
    %2999 = vmatprep.mubr.f32.mxu0 0.0
    %3000 = vmatmul.mubr.f32.gmra.mrb[0].mxu0 0.0
    %v3001 = vpop.f32.mrb[0].mxu0
    %v3002 = vadd.f32 %v2927, %v3001
    %v3003 = vpop.f32.mrb[0].mxu0
    %v3004 = vadd.f32 %v2928, %v3003
    %3005 = vdwg.mxu0
    %3006 = vmatprep.subr.mxu0 %v2866
    %3007 = vmatpush1.msra.mxu0 %v2865
    %3008 = vmatprep.subr.mxu0 %v2870
    %3009 = vmatpush1.msra.mxu0 %v2869
    %3010 = vmatprep.subr.mxu0 %v2874
    %3011 = vmatpush1.msra.mxu0 %v2873
    %3012 = vmatprep.subr.mxu0 %v2878
    %3013 = vmatpush1.msra.mxu0 %v2877
    %3014 = vmatprep.subr.mxu0 %v2882
    %3015 = vmatpush1.msra.mxu0 %v2881
    %3016 = vmatprep.subr.mxu0 %v2886
    %3017 = vmatpush1.msra.mxu0 %v2885
    %3018 = vmatprep.subr.mxu0 %v2890
    %3019 = vmatpush1.msra.mxu0 %v2889
    %3020 = vmatprep.subr.mxu0 %v2894
    %3021 = vmatpush1.msra.mxu0 %v2893
    %3022 = vmatprep.subr.mxu0 %v2898
    %3023 = vmatpush1.msra.mxu0 %v2897
    %3024 = vmatprep.subr.mxu0 %v2902
    %3025 = vmatpush1.msra.mxu0 %v2901
    %3026 = vmatprep.subr.mxu0 %v2906
    %3027 = vmatpush1.msra.mxu0 %v2905
    %3028 = vmatprep.subr.mxu0 %v2910
    %3029 = vmatpush1.msra.mxu0 %v2909
    %3030 = vmatprep.subr.mxu0 %v2914
    %3031 = vmatpush1.msra.mxu0 %v2913
    %3032 = vmatprep.subr.mxu0 %v2918
    %3033 = vmatpush1.msra.mxu0 %v2917
    %3034 = vmatprep.subr.mxu0 %v2922
    %3035 = vmatpush1.msra.mxu0 %v2921
    %3036 = vmatprep.subr.mxu0 %v2926
    %3037 = vmatpush1.msra.mxu0 %v2925
    %3038 = vmatprep.subr.mxu0 0.0
    %3039 = vmatpush1.msra.mxu0 0.0
    %3040 = vmatprep.subr.mxu0 0.0
    %3041 = vmatpush1.msra.mxu0 0.0
    %3042 = vmatprep.subr.mxu0 0.0
    %3043 = vmatpush1.msra.mxu0 0.0
    %3044 = vmatprep.subr.mxu0 0.0
    %3045 = vmatpush1.msra.mxu0 0.0
    %3046 = vmatprep.subr.mxu0 0.0
    %3047 = vmatpush1.msra.mxu0 0.0
    %3048 = vmatprep.subr.mxu0 0.0
    %3049 = vmatpush1.msra.mxu0 0.0
    %3050 = vmatprep.subr.mxu0 0.0
    %3051 = vmatpush1.msra.mxu0 0.0
    %3052 = vmatprep.subr.mxu0 0.0
    %3053 = vmatpush1.msra.mxu0 0.0
    %3054 = vmatprep.subr.mxu0 0.0
    %3055 = vmatpush1.msra.mxu0 0.0
    %3056 = vmatprep.subr.mxu0 0.0
    %3057 = vmatpush1.msra.mxu0 0.0
    %3058 = vmatprep.subr.mxu0 0.0
    %3059 = vmatpush1.msra.mxu0 0.0
    %3060 = vmatprep.subr.mxu0 0.0
    %3061 = vmatpush1.msra.mxu0 0.0
    %3062 = vmatprep.subr.mxu0 0.0
    %3063 = vmatpush1.msra.mxu0 0.0
    %3064 = vmatprep.subr.mxu0 0.0
    %3065 = vmatpush1.msra.mxu0 0.0
    %3066 = vmatprep.subr.mxu0 0.0
    %3067 = vmatpush1.msra.mxu0 0.0
    %3068 = vmatprep.subr.mxu0 0.0
    %3069 = vmatpush1.msra.mxu0 0.0
    %3070 = vmatprep.mubr.f32.mxu0 0.0
    %3071 = vmatmul.mubr.f32.gmra.mrb[0].mxu0 0.0
    %v3072 = vpop.f32.mrb[0].mxu0
    %v3073 = vadd.f32 %v2929, %v3072
    %v3074 = vpop.f32.mrb[0].mxu0
    %v3075 = vadd.f32 %v2930, %v3074
    %3076 = vdwg.mxu0
    %v3077 = vadd.f32 %v3002, %v2931
    %v3078 = vadd.f32 %v3004, %v2932
    %v3079 = vadd.f32 %v3073, %v2933
    %v3080 = vadd.f32 %v3075, %v2934
    %v3081 = vxor.u32 %v3077, 2147483648
    %v3082 = vxor.u32 %v3078, 2147483648
    %v3083 = vxor.u32 %v3079, 2147483648
    %v3084 = vmul.f32 %v3081, 1.442695
    %v3085 = vpow.pop %v3084
    %v3086 = vmul.f32 %v3082, 1.442695
    %v3087 = vpow.pop %v3086
    %v3088 = vmul.f32 %v3083, 1.442695
    %v3089 = vpow.pop %v3088
    %v3090 = vadd.f32 %v3085, 1.0
    %v3091 = vadd.f32 %v3087, 1.0
    %v3092 = vadd.f32 %v3089, 1.0
    %v3093 = vrcp.pop %v3090
    %v3094 = vmul.f32 1.0, %v3093
    %v3095 = vrcp.pop %v3091
    %v3096 = vmul.f32 1.0, %v3095
    %v3097 = vrcp.pop %v3092
    %v3098 = vmul.f32 1.0, %v3097
    %v3099 = vtanh.pop %v3080
    %v3100 = vmul.f32 %v3096, 0.0
    %v3101 = vmul.f32 %v3094, %v3099
    %v3102 = vadd.f32 %v3100, %v3101
    %v3103 = vtanh.pop %v3102
    %v3104 = vmul.f32 %v3098, %v3103
    %v3105 = vld [vmem:[#allocation2 + $0x40] sm:$0xff]
    %v3106 = vld [vmem:[#allocation2 + $0x48] sm:$0xff]
    %v3107 = vld [vmem:[#allocation2 + $0x50] sm:$0xff]
    %v3108 = vld [vmem:[#allocation2 + $0x58] sm:$0xff]
    %v3109 = vld [vmem:[#allocation2 + $0x1a0] sm:$0xff]
    %v3110 = vld [vmem:[#allocation2 + $0x1a8] sm:$0xff]
    %v3111 = vld [vmem:[#allocation2 + $0x1b0] sm:$0xff]
    %v3112 = vld [vmem:[#allocation2 + $0x1b8] sm:$0xff]
    %3113 = vmatprep.subr.mxu0 %v2864
    %3114 = vmatpush1.msra.mxu0 %v2863
    %3115 = vmatprep.subr.mxu0 %v2868
    %3116 = vmatpush1.msra.mxu0 %v2867
    %3117 = vmatprep.subr.mxu0 %v2872
    %3118 = vmatpush1.msra.mxu0 %v2871
    %3119 = vmatprep.subr.mxu0 %v2876
    %3120 = vmatpush1.msra.mxu0 %v2875
    %3121 = vmatprep.subr.mxu0 %v2880
    %3122 = vmatpush1.msra.mxu0 %v2879
    %3123 = vmatprep.subr.mxu0 %v2884
    %3124 = vmatpush1.msra.mxu0 %v2883
    %3125 = vmatprep.subr.mxu0 %v2888
    %3126 = vmatpush1.msra.mxu0 %v2887
    %3127 = vmatprep.subr.mxu0 %v2892
    %3128 = vmatpush1.msra.mxu0 %v2891
    %3129 = vmatprep.subr.mxu0 %v2896
    %3130 = vmatpush1.msra.mxu0 %v2895
    %3131 = vmatprep.subr.mxu0 %v2900
    %3132 = vmatpush1.msra.mxu0 %v2899
    %3133 = vmatprep.subr.mxu0 %v2904
    %3134 = vmatpush1.msra.mxu0 %v2903
    %3135 = vmatprep.subr.mxu0 %v2908
    %3136 = vmatpush1.msra.mxu0 %v2907
    %3137 = vmatprep.subr.mxu0 %v2912
    %3138 = vmatpush1.msra.mxu0 %v2911
    %3139 = vmatprep.subr.mxu0 %v2916
    %3140 = vmatpush1.msra.mxu0 %v2915
    %3141 = vmatprep.subr.mxu0 %v2920
    %3142 = vmatpush1.msra.mxu0 %v2919
    %3143 = vmatprep.subr.mxu0 %v2924
    %3144 = vmatpush1.msra.mxu0 %v2923
    %3145 = vmatprep.subr.mxu0 0.0
    %3146 = vmatpush1.msra.mxu0 0.0
    %3147 = vmatprep.subr.mxu0 0.0
    %3148 = vmatpush1.msra.mxu0 0.0
    %3149 = vmatprep.subr.mxu0 0.0
    %3150 = vmatpush1.msra.mxu0 0.0
    %3151 = vmatprep.subr.mxu0 0.0
    %3152 = vmatpush1.msra.mxu0 0.0
    %3153 = vmatprep.subr.mxu0 0.0
    %3154 = vmatpush1.msra.mxu0 0.0
    %3155 = vmatprep.subr.mxu0 0.0
    %3156 = vmatpush1.msra.mxu0 0.0
    %3157 = vmatprep.subr.mxu0 0.0
    %3158 = vmatpush1.msra.mxu0 0.0
    %3159 = vmatprep.subr.mxu0 0.0
    %3160 = vmatpush1.msra.mxu0 0.0
    %3161 = vmatprep.subr.mxu0 0.0
    %3162 = vmatpush1.msra.mxu0 0.0
    %3163 = vmatprep.subr.mxu0 0.0
    %3164 = vmatpush1.msra.mxu0 0.0
    %3165 = vmatprep.subr.mxu0 0.0
    %3166 = vmatpush1.msra.mxu0 0.0
    %3167 = vmatprep.subr.mxu0 0.0
    %3168 = vmatpush1.msra.mxu0 0.0
    %3169 = vmatprep.subr.mxu0 0.0
    %3170 = vmatpush1.msra.mxu0 0.0
    %3171 = vmatprep.subr.mxu0 0.0
    %3172 = vmatpush1.msra.mxu0 0.0
    %3173 = vmatprep.subr.mxu0 0.0
    %3174 = vmatpush1.msra.mxu0 0.0
    %3175 = vmatprep.subr.mxu0 0.0
    %3176 = vmatpush1.msra.mxu0 0.0
    %3177 = vmatprep.mubr.f32.mxu0 0.0
    %3178 = vmatmul.mubr.f32.gmra.mrb[0].mxu0 %v3104
    %v3179 = vpop.f32.mrb[0].mxu0
    %v3180 = vadd.f32 %v3105, %v3179
    %v3181 = vpop.f32.mrb[0].mxu0
    %v3182 = vadd.f32 %v3106, %v3181
    %3183 = vdwg.mxu0
    %3184 = vmatprep.subr.mxu0 %v2866
    %3185 = vmatpush1.msra.mxu0 %v2865
    %3186 = vmatprep.subr.mxu0 %v2870
    %3187 = vmatpush1.msra.mxu0 %v2869
    %3188 = vmatprep.subr.mxu0 %v2874
    %3189 = vmatpush1.msra.mxu0 %v2873
    %3190 = vmatprep.subr.mxu0 %v2878
    %3191 = vmatpush1.msra.mxu0 %v2877
    %3192 = vmatprep.subr.mxu0 %v2882
    %3193 = vmatpush1.msra.mxu0 %v2881
    %3194 = vmatprep.subr.mxu0 %v2886
    %3195 = vmatpush1.msra.mxu0 %v2885
    %3196 = vmatprep.subr.mxu0 %v2890
    %3197 = vmatpush1.msra.mxu0 %v2889
    %3198 = vmatprep.subr.mxu0 %v2894
    %3199 = vmatpush1.msra.mxu0 %v2893
    %3200 = vmatprep.subr.mxu0 %v2898
    %3201 = vmatpush1.msra.mxu0 %v2897
    %3202 = vmatprep.subr.mxu0 %v2902
    %3203 = vmatpush1.msra.mxu0 %v2901
    %3204 = vmatprep.subr.mxu0 %v2906
    %3205 = vmatpush1.msra.mxu0 %v2905
    %3206 = vmatprep.subr.mxu0 %v2910
    %3207 = vmatpush1.msra.mxu0 %v2909
    %3208 = vmatprep.subr.mxu0 %v2914
    %3209 = vmatpush1.msra.mxu0 %v2913
    %3210 = vmatprep.subr.mxu0 %v2918
    %3211 = vmatpush1.msra.mxu0 %v2917
    %3212 = vmatprep.subr.mxu0 %v2922
    %3213 = vmatpush1.msra.mxu0 %v2921
    %3214 = vmatprep.subr.mxu0 %v2926
    %3215 = vmatpush1.msra.mxu0 %v2925
    %3216 = vmatprep.subr.mxu0 0.0
    %3217 = vmatpush1.msra.mxu0 0.0
    %3218 = vmatprep.subr.mxu0 0.0
    %3219 = vmatpush1.msra.mxu0 0.0
    %3220 = vmatprep.subr.mxu0 0.0
    %3221 = vmatpush1.msra.mxu0 0.0
    %3222 = vmatprep.subr.mxu0 0.0
    %3223 = vmatpush1.msra.mxu0 0.0
    %3224 = vmatprep.subr.mxu0 0.0
    %3225 = vmatpush1.msra.mxu0 0.0
    %3226 = vmatprep.subr.mxu0 0.0
    %3227 = vmatpush1.msra.mxu0 0.0
    %3228 = vmatprep.subr.mxu0 0.0
    %3229 = vmatpush1.msra.mxu0 0.0
    %3230 = vmatprep.subr.mxu0 0.0
    %3231 = vmatpush1.msra.mxu0 0.0
    %3232 = vmatprep.subr.mxu0 0.0
    %3233 = vmatpush1.msra.mxu0 0.0
    %3234 = vmatprep.subr.mxu0 0.0
    %3235 = vmatpush1.msra.mxu0 0.0
    %3236 = vmatprep.subr.mxu0 0.0
    %3237 = vmatpush1.msra.mxu0 0.0
    %3238 = vmatprep.subr.mxu0 0.0
    %3239 = vmatpush1.msra.mxu0 0.0
    %3240 = vmatprep.subr.mxu0 0.0
    %3241 = vmatpush1.msra.mxu0 0.0
    %3242 = vmatprep.subr.mxu0 0.0
    %3243 = vmatpush1.msra.mxu0 0.0
    %3244 = vmatprep.subr.mxu0 0.0
    %3245 = vmatpush1.msra.mxu0 0.0
    %3246 = vmatprep.subr.mxu0 0.0
    %3247 = vmatpush1.msra.mxu0 0.0
    %3248 = vmatprep.mubr.f32.mxu0 0.0
    %3249 = vmatmul.mubr.f32.gmra.mrb[0].mxu0 %v3104
    %v3250 = vpop.f32.mrb[0].mxu0
    %v3251 = vadd.f32 %v3107, %v3250
    %v3252 = vpop.f32.mrb[0].mxu0
    %v3253 = vadd.f32 %v3108, %v3252
    %3254 = vdwg.mxu0
    %v3255 = vadd.f32 %v3180, %v3109
    %v3256 = vadd.f32 %v3182, %v3110
    %v3257 = vadd.f32 %v3251, %v3111
    %v3258 = vadd.f32 %v3253, %v3112
    %v3259 = vxor.u32 %v3255, 2147483648
    %v3260 = vxor.u32 %v3256, 2147483648
    %v3261 = vxor.u32 %v3257, 2147483648
    %v3262 = vmul.f32 %v3259, 1.442695
    %v3263 = vpow.pop %v3262
    %v3264 = vmul.f32 %v3260, 1.442695
    %v3265 = vpow.pop %v3264
    %v3266 = vmul.f32 %v3261, 1.442695
    %v3267 = vpow.pop %v3266
    %v3268 = vadd.f32 %v3263, 1.0
    %v3269 = vadd.f32 %v3265, 1.0
    %v3270 = vadd.f32 %v3267, 1.0
    %v3271 = vrcp.pop %v3268
    %v3272 = vmul.f32 1.0, %v3271
    %v3273 = vrcp.pop %v3269
    %v3274 = vmul.f32 1.0, %v3273
    %v3275 = vrcp.pop %v3270
    %v3276 = vmul.f32 1.0, %v3275
    %v3277 = vtanh.pop %v3258
    %v3278 = vmul.f32 %v3274, %v3102
    %v3279 = vmul.f32 %v3272, %v3277
    %v3280 = vadd.f32 %v3278, %v3279
    %v3281 = vtanh.pop %v3280
    %v3282 = vmul.f32 %v3276, %v3281
    %v3283 = vld [vmem:[#allocation2 + $0x80] sm:$0xff]
    %v3284 = vld [vmem:[#allocation2 + $0x88] sm:$0xff]
    %v3285 = vld [vmem:[#allocation2 + $0x90] sm:$0xff]
    %v3286 = vld [vmem:[#allocation2 + $0x98] sm:$0xff]
    %v3287 = vld [vmem:[#allocation2 + $0x160] sm:$0xff]
    %v3288 = vld [vmem:[#allocation2 + $0x168] sm:$0xff]
    %v3289 = vld [vmem:[#allocation2 + $0x170] sm:$0xff]
    %v3290 = vld [vmem:[#allocation2 + $0x178] sm:$0xff]
    %3291 = vmatprep.subr.mxu0 %v2864
    %3292 = vmatpush1.msra.mxu0 %v2863
    %3293 = vmatprep.subr.mxu0 %v2868
    %3294 = vmatpush1.msra.mxu0 %v2867
    %3295 = vmatprep.subr.mxu0 %v2872
    %3296 = vmatpush1.msra.mxu0 %v2871
    %3297 = vmatprep.subr.mxu0 %v2876
    %3298 = vmatpush1.msra.mxu0 %v2875
    %3299 = vmatprep.subr.mxu0 %v2880
    %3300 = vmatpush1.msra.mxu0 %v2879
    %3301 = vmatprep.subr.mxu0 %v2884
    %3302 = vmatpush1.msra.mxu0 %v2883
    %3303 = vmatprep.subr.mxu0 %v2888
    %3304 = vmatpush1.msra.mxu0 %v2887
    %3305 = vmatprep.subr.mxu0 %v2892
    %3306 = vmatpush1.msra.mxu0 %v2891
    %3307 = vmatprep.subr.mxu0 %v2896
    %3308 = vmatpush1.msra.mxu0 %v2895
    %3309 = vmatprep.subr.mxu0 %v2900
    %3310 = vmatpush1.msra.mxu0 %v2899
    %3311 = vmatprep.subr.mxu0 %v2904
    %3312 = vmatpush1.msra.mxu0 %v2903
    %3313 = vmatprep.subr.mxu0 %v2908
    %3314 = vmatpush1.msra.mxu0 %v2907
    %3315 = vmatprep.subr.mxu0 %v2912
    %3316 = vmatpush1.msra.mxu0 %v2911
    %3317 = vmatprep.subr.mxu0 %v2916
    %3318 = vmatpush1.msra.mxu0 %v2915
    %3319 = vmatprep.subr.mxu0 %v2920
    %3320 = vmatpush1.msra.mxu0 %v2919
    %3321 = vmatprep.subr.mxu0 %v2924
    %3322 = vmatpush1.msra.mxu0 %v2923
    %3323 = vmatprep.subr.mxu0 0.0
    %3324 = vmatpush1.msra.mxu0 0.0
    %3325 = vmatprep.subr.mxu0 0.0
    %3326 = vmatpush1.msra.mxu0 0.0
    %3327 = vmatprep.subr.mxu0 0.0
    %3328 = vmatpush1.msra.mxu0 0.0
    %3329 = vmatprep.subr.mxu0 0.0
    %3330 = vmatpush1.msra.mxu0 0.0
    %3331 = vmatprep.subr.mxu0 0.0
    %3332 = vmatpush1.msra.mxu0 0.0
    %3333 = vmatprep.subr.mxu0 0.0
    %3334 = vmatpush1.msra.mxu0 0.0
    %3335 = vmatprep.subr.mxu0 0.0
    %3336 = vmatpush1.msra.mxu0 0.0
    %3337 = vmatprep.subr.mxu0 0.0
    %3338 = vmatpush1.msra.mxu0 0.0
    %3339 = vmatprep.subr.mxu0 0.0
    %3340 = vmatpush1.msra.mxu0 0.0
    %3341 = vmatprep.subr.mxu0 0.0
    %3342 = vmatpush1.msra.mxu0 0.0
    %3343 = vmatprep.subr.mxu0 0.0
    %3344 = vmatpush1.msra.mxu0 0.0
    %3345 = vmatprep.subr.mxu0 0.0
    %3346 = vmatpush1.msra.mxu0 0.0
    %3347 = vmatprep.subr.mxu0 0.0
    %3348 = vmatpush1.msra.mxu0 0.0
    %3349 = vmatprep.subr.mxu0 0.0
    %3350 = vmatpush1.msra.mxu0 0.0
    %3351 = vmatprep.subr.mxu0 0.0
    %3352 = vmatpush1.msra.mxu0 0.0
    %3353 = vmatprep.subr.mxu0 0.0
    %3354 = vmatpush1.msra.mxu0 0.0
    %3355 = vmatprep.mubr.f32.mxu0 0.0
    %3356 = vmatmul.mubr.f32.gmra.mrb[0].mxu0 %v3282
    %v3357 = vpop.f32.mrb[0].mxu0
    %v3358 = vadd.f32 %v3283, %v3357
    %v3359 = vpop.f32.mrb[0].mxu0
    %v3360 = vadd.f32 %v3284, %v3359
    %3361 = vdwg.mxu0
    %3362 = vmatprep.subr.mxu0 %v2866
    %3363 = vmatpush1.msra.mxu0 %v2865
    %3364 = vmatprep.subr.mxu0 %v2870
    %3365 = vmatpush1.msra.mxu0 %v2869
    %3366 = vmatprep.subr.mxu0 %v2874
    %3367 = vmatpush1.msra.mxu0 %v2873
    %3368 = vmatprep.subr.mxu0 %v2878
    %3369 = vmatpush1.msra.mxu0 %v2877
    %3370 = vmatprep.subr.mxu0 %v2882
    %3371 = vmatpush1.msra.mxu0 %v2881
    %3372 = vmatprep.subr.mxu0 %v2886
    %3373 = vmatpush1.msra.mxu0 %v2885
    %3374 = vmatprep.subr.mxu0 %v2890
    %3375 = vmatpush1.msra.mxu0 %v2889
    %3376 = vmatprep.subr.mxu0 %v2894
    %3377 = vmatpush1.msra.mxu0 %v2893
    %3378 = vmatprep.subr.mxu0 %v2898
    %3379 = vmatpush1.msra.mxu0 %v2897
    %3380 = vmatprep.subr.mxu0 %v2902
    %3381 = vmatpush1.msra.mxu0 %v2901
    %3382 = vmatprep.subr.mxu0 %v2906
    %3383 = vmatpush1.msra.mxu0 %v2905
    %3384 = vmatprep.subr.mxu0 %v2910
    %3385 = vmatpush1.msra.mxu0 %v2909
    %3386 = vmatprep.subr.mxu0 %v2914
    %3387 = vmatpush1.msra.mxu0 %v2913
    %3388 = vmatprep.subr.mxu0 %v2918
    %3389 = vmatpush1.msra.mxu0 %v2917
    %3390 = vmatprep.subr.mxu0 %v2922
    %3391 = vmatpush1.msra.mxu0 %v2921
    %3392 = vmatprep.subr.mxu0 %v2926
    %3393 = vmatpush1.msra.mxu0 %v2925
    %3394 = vmatprep.subr.mxu0 0.0
    %3395 = vmatpush1.msra.mxu0 0.0
    %3396 = vmatprep.subr.mxu0 0.0
    %3397 = vmatpush1.msra.mxu0 0.0
    %3398 = vmatprep.subr.mxu0 0.0
    %3399 = vmatpush1.msra.mxu0 0.0
    %3400 = vmatprep.subr.mxu0 0.0
    %3401 = vmatpush1.msra.mxu0 0.0
    %3402 = vmatprep.subr.mxu0 0.0
    %3403 = vmatpush1.msra.mxu0 0.0
    %3404 = vmatprep.subr.mxu0 0.0
    %3405 = vmatpush1.msra.mxu0 0.0
    %3406 = vmatprep.subr.mxu0 0.0
    %3407 = vmatpush1.msra.mxu0 0.0
    %3408 = vmatprep.subr.mxu0 0.0
    %3409 = vmatpush1.msra.mxu0 0.0
    %3410 = vmatprep.subr.mxu0 0.0
    %3411 = vmatpush1.msra.mxu0 0.0
    %3412 = vmatprep.subr.mxu0 0.0
    %3413 = vmatpush1.msra.mxu0 0.0
    %3414 = vmatprep.subr.mxu0 0.0
    %3415 = vmatpush1.msra.mxu0 0.0
    %3416 = vmatprep.subr.mxu0 0.0
    %3417 = vmatpush1.msra.mxu0 0.0
    %3418 = vmatprep.subr.mxu0 0.0
    %3419 = vmatpush1.msra.mxu0 0.0
    %3420 = vmatprep.subr.mxu0 0.0
    %3421 = vmatpush1.msra.mxu0 0.0
    %3422 = vmatprep.subr.mxu0 0.0
    %3423 = vmatpush1.msra.mxu0 0.0
    %3424 = vmatprep.subr.mxu0 0.0
    %3425 = vmatpush1.msra.mxu0 0.0
    %3426 = vmatprep.mubr.f32.mxu0 0.0
    %3427 = vmatmul.mubr.f32.gmra.mrb[0].mxu0 %v3282
    %v3428 = vpop.f32.mrb[0].mxu0
    %v3429 = vadd.f32 %v3285, %v3428
    %v3430 = vpop.f32.mrb[0].mxu0
    %v3431 = vadd.f32 %v3286, %v3430
    %3432 = vdwg.mxu0
    %v3433 = vadd.f32 %v3358, %v3287
    %v3434 = vadd.f32 %v3360, %v3288
    %v3435 = vadd.f32 %v3429, %v3289
    %v3436 = vadd.f32 %v3431, %v3290
    %v3437 = vxor.u32 %v3433, 2147483648
    %v3438 = vxor.u32 %v3434, 2147483648
    %v3439 = vxor.u32 %v3435, 2147483648
    %v3440 = vmul.f32 %v3437, 1.442695
    %v3441 = vpow.pop %v3440
    %v3442 = vmul.f32 %v3438, 1.442695
    %v3443 = vpow.pop %v3442
    %v3444 = vmul.f32 %v3439, 1.442695
    %v3445 = vpow.pop %v3444
    %v3446 = vadd.f32 %v3441, 1.0
    %v3447 = vadd.f32 %v3443, 1.0
    %v3448 = vadd.f32 %v3445, 1.0
    %v3449 = vrcp.pop %v3446
    %v3450 = vmul.f32 1.0, %v3449
    %v3451 = vrcp.pop %v3447
    %v3452 = vmul.f32 1.0, %v3451
    %v3453 = vrcp.pop %v3448
    %v3454 = vmul.f32 1.0, %v3453
    %v3455 = vtanh.pop %v3436
    %v3456 = vmul.f32 %v3452, %v3280
    %v3457 = vmul.f32 %v3450, %v3455
    %v3458 = vadd.f32 %v3456, %v3457
    %v3459 = vtanh.pop %v3458
    %v3460 = vmul.f32 %v3454, %v3459
    %v3461 = vld [vmem:[#allocation2 + $0xc0] sm:$0xff]
    %v3462 = vld [vmem:[#allocation2 + $0xc8] sm:$0xff]
    %v3463 = vld [vmem:[#allocation2 + $0xd0] sm:$0xff]
    %v3464 = vld [vmem:[#allocation2 + $0xd8] sm:$0xff]
    %v3465 = vld [vmem:[#allocation2 + $0x120] sm:$0xff]
    %v3466 = vld [vmem:[#allocation2 + $0x128] sm:$0xff]
    %v3467 = vld [vmem:[#allocation2 + $0x130] sm:$0xff]
    %v3468 = vld [vmem:[#allocation2 + $0x138] sm:$0xff]
    %3469 = vmatprep.subr.mxu0 %v2864
    %3470 = vmatpush1.msra.mxu0 %v2863
    %3471 = vmatprep.subr.mxu0 %v2868
    %3472 = vmatpush1.msra.mxu0 %v2867
    %3473 = vmatprep.subr.mxu0 %v2872
    %3474 = vmatpush1.msra.mxu0 %v2871
    %3475 = vmatprep.subr.mxu0 %v2876
    %3476 = vmatpush1.msra.mxu0 %v2875
    %3477 = vmatprep.subr.mxu0 %v2880
    %3478 = vmatpush1.msra.mxu0 %v2879
    %3479 = vmatprep.subr.mxu0 %v2884
    %3480 = vmatpush1.msra.mxu0 %v2883
    %3481 = vmatprep.subr.mxu0 %v2888
    %3482 = vmatpush1.msra.mxu0 %v2887
    %3483 = vmatprep.subr.mxu0 %v2892
    %3484 = vmatpush1.msra.mxu0 %v2891
    %3485 = vmatprep.subr.mxu0 %v2896
    %3486 = vmatpush1.msra.mxu0 %v2895
    %3487 = vmatprep.subr.mxu0 %v2900
    %3488 = vmatpush1.msra.mxu0 %v2899
    %3489 = vmatprep.subr.mxu0 %v2904
    %3490 = vmatpush1.msra.mxu0 %v2903
    %3491 = vmatprep.subr.mxu0 %v2908
    %3492 = vmatpush1.msra.mxu0 %v2907
    %3493 = vmatprep.subr.mxu0 %v2912
    %3494 = vmatpush1.msra.mxu0 %v2911
    %3495 = vmatprep.subr.mxu0 %v2916
    %3496 = vmatpush1.msra.mxu0 %v2915
    %3497 = vmatprep.subr.mxu0 %v2920
    %3498 = vmatpush1.msra.mxu0 %v2919
    %3499 = vmatprep.subr.mxu0 %v2924
    %3500 = vmatpush1.msra.mxu0 %v2923
    %3501 = vmatprep.subr.mxu0 0.0
    %3502 = vmatpush1.msra.mxu0 0.0
    %3503 = vmatprep.subr.mxu0 0.0
    %3504 = vmatpush1.msra.mxu0 0.0
    %3505 = vmatprep.subr.mxu0 0.0
    %3506 = vmatpush1.msra.mxu0 0.0
    %3507 = vmatprep.subr.mxu0 0.0
    %3508 = vmatpush1.msra.mxu0 0.0
    %3509 = vmatprep.subr.mxu0 0.0
    %3510 = vmatpush1.msra.mxu0 0.0
    %3511 = vmatprep.subr.mxu0 0.0
    %3512 = vmatpush1.msra.mxu0 0.0
    %3513 = vmatprep.subr.mxu0 0.0
    %3514 = vmatpush1.msra.mxu0 0.0
    %3515 = vmatprep.subr.mxu0 0.0
    %3516 = vmatpush1.msra.mxu0 0.0
    %3517 = vmatprep.subr.mxu0 0.0
    %3518 = vmatpush1.msra.mxu0 0.0
    %3519 = vmatprep.subr.mxu0 0.0
    %3520 = vmatpush1.msra.mxu0 0.0
    %3521 = vmatprep.subr.mxu0 0.0
    %3522 = vmatpush1.msra.mxu0 0.0
    %3523 = vmatprep.subr.mxu0 0.0
    %3524 = vmatpush1.msra.mxu0 0.0
    %3525 = vmatprep.subr.mxu0 0.0
    %3526 = vmatpush1.msra.mxu0 0.0
    %3527 = vmatprep.subr.mxu0 0.0
    %3528 = vmatpush1.msra.mxu0 0.0
    %3529 = vmatprep.subr.mxu0 0.0
    %3530 = vmatpush1.msra.mxu0 0.0
    %3531 = vmatprep.subr.mxu0 0.0
    %3532 = vmatpush1.msra.mxu0 0.0
    %3533 = vmatprep.mubr.f32.mxu0 0.0
    %3534 = vmatmul.mubr.f32.gmra.mrb[0].mxu0 %v3460
    %v3535 = vpop.f32.mrb[0].mxu0
    %v3536 = vadd.f32 %v3461, %v3535
    %v3537 = vpop.f32.mrb[0].mxu0
    %v3538 = vadd.f32 %v3462, %v3537
    %3539 = vdwg.mxu0
    %3540 = vmatprep.subr.mxu0 %v2866
    %3541 = vmatpush1.msra.mxu0 %v2865
    %3542 = vmatprep.subr.mxu0 %v2870
    %3543 = vmatpush1.msra.mxu0 %v2869
    %3544 = vmatprep.subr.mxu0 %v2874
    %3545 = vmatpush1.msra.mxu0 %v2873
    %3546 = vmatprep.subr.mxu0 %v2878
    %3547 = vmatpush1.msra.mxu0 %v2877
    %3548 = vmatprep.subr.mxu0 %v2882
    %3549 = vmatpush1.msra.mxu0 %v2881
    %3550 = vmatprep.subr.mxu0 %v2886
    %3551 = vmatpush1.msra.mxu0 %v2885
    %3552 = vmatprep.subr.mxu0 %v2890
    %3553 = vmatpush1.msra.mxu0 %v2889
    %3554 = vmatprep.subr.mxu0 %v2894
    %3555 = vmatpush1.msra.mxu0 %v2893
    %3556 = vmatprep.subr.mxu0 %v2898
    %3557 = vmatpush1.msra.mxu0 %v2897
    %3558 = vmatprep.subr.mxu0 %v2902
    %3559 = vmatpush1.msra.mxu0 %v2901
    %3560 = vmatprep.subr.mxu0 %v2906
    %3561 = vmatpush1.msra.mxu0 %v2905
    %3562 = vmatprep.subr.mxu0 %v2910
    %3563 = vmatpush1.msra.mxu0 %v2909
    %3564 = vmatprep.subr.mxu0 %v2914
    %3565 = vmatpush1.msra.mxu0 %v2913
    %3566 = vmatprep.subr.mxu0 %v2918
    %3567 = vmatpush1.msra.mxu0 %v2917
    %3568 = vmatprep.subr.mxu0 %v2922
    %3569 = vmatpush1.msra.mxu0 %v2921
    %3570 = vmatprep.subr.mxu0 %v2926
    %3571 = vmatpush1.msra.mxu0 %v2925
    %3572 = vmatprep.subr.mxu0 0.0
    %3573 = vmatpush1.msra.mxu0 0.0
    %3574 = vmatprep.subr.mxu0 0.0
    %3575 = vmatpush1.msra.mxu0 0.0
    %3576 = vmatprep.subr.mxu0 0.0
    %3577 = vmatpush1.msra.mxu0 0.0
    %3578 = vmatprep.subr.mxu0 0.0
    %3579 = vmatpush1.msra.mxu0 0.0
    %3580 = vmatprep.subr.mxu0 0.0
    %3581 = vmatpush1.msra.mxu0 0.0
    %3582 = vmatprep.subr.mxu0 0.0
    %3583 = vmatpush1.msra.mxu0 0.0
    %3584 = vmatprep.subr.mxu0 0.0
    %3585 = vmatpush1.msra.mxu0 0.0
    %3586 = vmatprep.subr.mxu0 0.0
    %3587 = vmatpush1.msra.mxu0 0.0
    %3588 = vmatprep.subr.mxu0 0.0
    %3589 = vmatpush1.msra.mxu0 0.0
    %3590 = vmatprep.subr.mxu0 0.0
    %3591 = vmatpush1.msra.mxu0 0.0
    %3592 = vmatprep.subr.mxu0 0.0
    %3593 = vmatpush1.msra.mxu0 0.0
    %3594 = vmatprep.subr.mxu0 0.0
    %3595 = vmatpush1.msra.mxu0 0.0
    %3596 = vmatprep.subr.mxu0 0.0
    %3597 = vmatpush1.msra.mxu0 0.0
    %3598 = vmatprep.subr.mxu0 0.0
    %3599 = vmatpush1.msra.mxu0 0.0
    %3600 = vmatprep.subr.mxu0 0.0
    %3601 = vmatpush1.msra.mxu0 0.0
    %3602 = vmatprep.subr.mxu0 0.0
    %3603 = vmatpush1.msra.mxu0 0.0
    %3604 = vmatprep.mubr.f32.mxu0 0.0
    %3605 = vmatmul.mubr.f32.gmra.mrb[0].mxu0 %v3460
    %v3606 = vpop.f32.mrb[0].mxu0
    %v3607 = vadd.f32 %v3463, %v3606
    %v3608 = vpop.f32.mrb[0].mxu0
    %v3609 = vadd.f32 %v3464, %v3608
    %3610 = vdwg.mxu0
    %v3611 = vadd.f32 %v3536, %v3465
    %v3612 = vadd.f32 %v3538, %v3466
    %v3613 = vadd.f32 %v3607, %v3467
    %v3614 = vadd.f32 %v3609, %v3468
    %v3615 = vxor.u32 %v3611, 2147483648
    %v3616 = vxor.u32 %v3612, 2147483648
    %v3617 = vxor.u32 %v3613, 2147483648
    %v3618 = vmul.f32 %v3615, 1.442695
    %v3619 = vpow.pop %v3618
    %v3620 = vmul.f32 %v3616, 1.442695
    %v3621 = vpow.pop %v3620
    %v3622 = vmul.f32 %v3617, 1.442695
    %v3623 = vpow.pop %v3622
    %v3624 = vadd.f32 %v3619, 1.0
    %v3625 = vadd.f32 %v3621, 1.0
    %v3626 = vadd.f32 %v3623, 1.0
    %v3627 = vrcp.pop %v3624
    %v3628 = vmul.f32 1.0, %v3627
    %v3629 = vrcp.pop %v3625
    %v3630 = vmul.f32 1.0, %v3629
    %v3631 = vrcp.pop %v3626
    %v3632 = vmul.f32 1.0, %v3631
    %v3633 = vtanh.pop %v3614
    %v3634 = vmul.f32 %v3630, %v3458
    %v3635 = vmul.f32 %v3628, %v3633
    %v3636 = vadd.f32 %v3634, %v3635
    %v3637 = vtanh.pop %v3636
    %v3638 = vmul.f32 %v3632, %v3637
    %v3639 = vld [vmem:[#allocation2 + $0x100] sm:$0xff]
    %v3640 = vld [vmem:[#allocation2 + $0x108] sm:$0xff]
    %v3641 = vld [vmem:[#allocation2 + $0x110] sm:$0xff]
    %v3642 = vld [vmem:[#allocation2 + $0x118] sm:$0xff]
    %v3643 = vld [vmem:[#allocation2 + $0xe0] sm:$0xff]
    %v3644 = vld [vmem:[#allocation2 + $0xe8] sm:$0xff]
    %v3645 = vld [vmem:[#allocation2 + $0xf0] sm:$0xff]
    %v3646 = vld [vmem:[#allocation2 + $0xf8] sm:$0xff]
    %3647 = vmatprep.subr.mxu0 %v2864
    %3648 = vmatpush1.msra.mxu0 %v2863
    %3649 = vmatprep.subr.mxu0 %v2868
    %3650 = vmatpush1.msra.mxu0 %v2867
    %3651 = vmatprep.subr.mxu0 %v2872
    %3652 = vmatpush1.msra.mxu0 %v2871
    %3653 = vmatprep.subr.mxu0 %v2876
    %3654 = vmatpush1.msra.mxu0 %v2875
    %3655 = vmatprep.subr.mxu0 %v2880
    %3656 = vmatpush1.msra.mxu0 %v2879
    %3657 = vmatprep.subr.mxu0 %v2884
    %3658 = vmatpush1.msra.mxu0 %v2883
    %3659 = vmatprep.subr.mxu0 %v2888
    %3660 = vmatpush1.msra.mxu0 %v2887
    %3661 = vmatprep.subr.mxu0 %v2892
    %3662 = vmatpush1.msra.mxu0 %v2891
    %3663 = vmatprep.subr.mxu0 %v2896
    %3664 = vmatpush1.msra.mxu0 %v2895
    %3665 = vmatprep.subr.mxu0 %v2900
    %3666 = vmatpush1.msra.mxu0 %v2899
    %3667 = vmatprep.subr.mxu0 %v2904
    %3668 = vmatpush1.msra.mxu0 %v2903
    %3669 = vmatprep.subr.mxu0 %v2908
    %3670 = vmatpush1.msra.mxu0 %v2907
    %3671 = vmatprep.subr.mxu0 %v2912
    %3672 = vmatpush1.msra.mxu0 %v2911
    %3673 = vmatprep.subr.mxu0 %v2916
    %3674 = vmatpush1.msra.mxu0 %v2915
    %3675 = vmatprep.subr.mxu0 %v2920
    %3676 = vmatpush1.msra.mxu0 %v2919
    %3677 = vmatprep.subr.mxu0 %v2924
    %3678 = vmatpush1.msra.mxu0 %v2923
    %3679 = vmatprep.subr.mxu0 0.0
    %3680 = vmatpush1.msra.mxu0 0.0
    %3681 = vmatprep.subr.mxu0 0.0
    %3682 = vmatpush1.msra.mxu0 0.0
    %3683 = vmatprep.subr.mxu0 0.0
    %3684 = vmatpush1.msra.mxu0 0.0
    %3685 = vmatprep.subr.mxu0 0.0
    %3686 = vmatpush1.msra.mxu0 0.0
    %3687 = vmatprep.subr.mxu0 0.0
    %3688 = vmatpush1.msra.mxu0 0.0
    %3689 = vmatprep.subr.mxu0 0.0
    %3690 = vmatpush1.msra.mxu0 0.0
    %3691 = vmatprep.subr.mxu0 0.0
    %3692 = vmatpush1.msra.mxu0 0.0
    %3693 = vmatprep.subr.mxu0 0.0
    %3694 = vmatpush1.msra.mxu0 0.0
    %3695 = vmatprep.subr.mxu0 0.0
    %3696 = vmatpush1.msra.mxu0 0.0
    %3697 = vmatprep.subr.mxu0 0.0
    %3698 = vmatpush1.msra.mxu0 0.0
    %3699 = vmatprep.subr.mxu0 0.0
    %3700 = vmatpush1.msra.mxu0 0.0
    %3701 = vmatprep.subr.mxu0 0.0
    %3702 = vmatpush1.msra.mxu0 0.0
    %3703 = vmatprep.subr.mxu0 0.0
    %3704 = vmatpush1.msra.mxu0 0.0
    %3705 = vmatprep.subr.mxu0 0.0
    %3706 = vmatpush1.msra.mxu0 0.0
    %3707 = vmatprep.subr.mxu0 0.0
    %3708 = vmatpush1.msra.mxu0 0.0
    %3709 = vmatprep.subr.mxu0 0.0
    %3710 = vmatpush1.msra.mxu0 0.0
    %3711 = vmatprep.mubr.f32.mxu0 0.0
    %3712 = vmatmul.mubr.f32.gmra.mrb[0].mxu0 %v3638
    %v3713 = vpop.f32.mrb[0].mxu0
    %v3714 = vadd.f32 %v3639, %v3713
    %v3715 = vpop.f32.mrb[0].mxu0
    %v3716 = vadd.f32 %v3640, %v3715
    %3717 = vdwg.mxu0
    %3718 = vmatprep.subr.mxu0 %v2866
    %3719 = vmatpush1.msra.mxu0 %v2865
    %3720 = vmatprep.subr.mxu0 %v2870
    %3721 = vmatpush1.msra.mxu0 %v2869
    %3722 = vmatprep.subr.mxu0 %v2874
    %3723 = vmatpush1.msra.mxu0 %v2873
    %3724 = vmatprep.subr.mxu0 %v2878
    %3725 = vmatpush1.msra.mxu0 %v2877
    %3726 = vmatprep.subr.mxu0 %v2882
    %3727 = vmatpush1.msra.mxu0 %v2881
    %3728 = vmatprep.subr.mxu0 %v2886
    %3729 = vmatpush1.msra.mxu0 %v2885
    %3730 = vmatprep.subr.mxu0 %v2890
    %3731 = vmatpush1.msra.mxu0 %v2889
    %3732 = vmatprep.subr.mxu0 %v2894
    %3733 = vmatpush1.msra.mxu0 %v2893
    %3734 = vmatprep.subr.mxu0 %v2898
    %3735 = vmatpush1.msra.mxu0 %v2897
    %3736 = vmatprep.subr.mxu0 %v2902
    %3737 = vmatpush1.msra.mxu0 %v2901
    %3738 = vmatprep.subr.mxu0 %v2906
    %3739 = vmatpush1.msra.mxu0 %v2905
    %3740 = vmatprep.subr.mxu0 %v2910
    %3741 = vmatpush1.msra.mxu0 %v2909
    %3742 = vmatprep.subr.mxu0 %v2914
    %3743 = vmatpush1.msra.mxu0 %v2913
    %3744 = vmatprep.subr.mxu0 %v2918
    %3745 = vmatpush1.msra.mxu0 %v2917
    %3746 = vmatprep.subr.mxu0 %v2922
    %3747 = vmatpush1.msra.mxu0 %v2921
    %3748 = vmatprep.subr.mxu0 %v2926
    %3749 = vmatpush1.msra.mxu0 %v2925
    %3750 = vmatprep.subr.mxu0 0.0
    %3751 = vmatpush1.msra.mxu0 0.0
    %3752 = vmatprep.subr.mxu0 0.0
    %3753 = vmatpush1.msra.mxu0 0.0
    %3754 = vmatprep.subr.mxu0 0.0
    %3755 = vmatpush1.msra.mxu0 0.0
    %3756 = vmatprep.subr.mxu0 0.0
    %3757 = vmatpush1.msra.mxu0 0.0
    %3758 = vmatprep.subr.mxu0 0.0
    %3759 = vmatpush1.msra.mxu0 0.0
    %3760 = vmatprep.subr.mxu0 0.0
    %3761 = vmatpush1.msra.mxu0 0.0
    %3762 = vmatprep.subr.mxu0 0.0
    %3763 = vmatpush1.msra.mxu0 0.0
    %3764 = vmatprep.subr.mxu0 0.0
    %3765 = vmatpush1.msra.mxu0 0.0
    %3766 = vmatprep.subr.mxu0 0.0
    %3767 = vmatpush1.msra.mxu0 0.0
    %3768 = vmatprep.subr.mxu0 0.0
    %3769 = vmatpush1.msra.mxu0 0.0
    %3770 = vmatprep.subr.mxu0 0.0
    %3771 = vmatpush1.msra.mxu0 0.0
    %3772 = vmatprep.subr.mxu0 0.0
    %3773 = vmatpush1.msra.mxu0 0.0
    %3774 = vmatprep.subr.mxu0 0.0
    %3775 = vmatpush1.msra.mxu0 0.0
    %3776 = vmatprep.subr.mxu0 0.0
    %3777 = vmatpush1.msra.mxu0 0.0
    %3778 = vmatprep.subr.mxu0 0.0
    %3779 = vmatpush1.msra.mxu0 0.0
    %3780 = vmatprep.subr.mxu0 0.0
    %3781 = vmatpush1.msra.mxu0 0.0
    %3782 = vmatprep.mubr.f32.mxu0 0.0
    %3783 = vmatmul.mubr.f32.gmra.mrb[0].mxu0 %v3638
    %v3784 = vpop.f32.mrb[0].mxu0
    %v3785 = vadd.f32 %v3641, %v3784
    %v3786 = vpop.f32.mrb[0].mxu0
    %v3787 = vadd.f32 %v3642, %v3786
    %3788 = vdwg.mxu0
    %v3789 = vadd.f32 %v3714, %v3643
    %v3790 = vadd.f32 %v3716, %v3644
    %v3791 = vadd.f32 %v3785, %v3645
    %v3792 = vadd.f32 %v3787, %v3646
    %v3793 = vxor.u32 %v3789, 2147483648
    %v3794 = vxor.u32 %v3790, 2147483648
    %v3795 = vxor.u32 %v3791, 2147483648
    %v3796 = vmul.f32 %v3793, 1.442695
    %v3797 = vpow.pop %v3796
    %v3798 = vmul.f32 %v3794, 1.442695
    %v3799 = vpow.pop %v3798
    %v3800 = vmul.f32 %v3795, 1.442695
    %v3801 = vpow.pop %v3800
    %v3802 = vadd.f32 %v3797, 1.0
    %v3803 = vadd.f32 %v3799, 1.0
    %v3804 = vadd.f32 %v3801, 1.0
    %v3805 = vrcp.pop %v3802
    %v3806 = vmul.f32 1.0, %v3805
    %v3807 = vrcp.pop %v3803
    %v3808 = vmul.f32 1.0, %v3807
    %v3809 = vrcp.pop %v3804
    %v3810 = vmul.f32 1.0, %v3809
    %v3811 = vtanh.pop %v3792
    %v3812 = vmul.f32 %v3808, %v3636
    %v3813 = vmul.f32 %v3806, %v3811
    %v3814 = vadd.f32 %v3812, %v3813
    %v3815 = vtanh.pop %v3814
    %v3816 = vmul.f32 %v3810, %v3815
    %v3817 = vld [vmem:[#allocation2 + $0x140] sm:$0xff]
    %v3818 = vld [vmem:[#allocation2 + $0x148] sm:$0xff]
    %v3819 = vld [vmem:[#allocation2 + $0x150] sm:$0xff]
    %v3820 = vld [vmem:[#allocation2 + $0x158] sm:$0xff]
    %v3821 = vld [vmem:[#allocation2 + $0xa0] sm:$0xff]
    %v3822 = vld [vmem:[#allocation2 + $0xa8] sm:$0xff]
    %v3823 = vld [vmem:[#allocation2 + $0xb0] sm:$0xff]
    %v3824 = vld [vmem:[#allocation2 + $0xb8] sm:$0xff]
    %3825 = vmatprep.subr.mxu0 %v2864
    %3826 = vmatpush1.msra.mxu0 %v2863
    %3827 = vmatprep.subr.mxu0 %v2868
    %3828 = vmatpush1.msra.mxu0 %v2867
    %3829 = vmatprep.subr.mxu0 %v2872
    %3830 = vmatpush1.msra.mxu0 %v2871
    %3831 = vmatprep.subr.mxu0 %v2876
    %3832 = vmatpush1.msra.mxu0 %v2875
    %3833 = vmatprep.subr.mxu0 %v2880
    %3834 = vmatpush1.msra.mxu0 %v2879
    %3835 = vmatprep.subr.mxu0 %v2884
    %3836 = vmatpush1.msra.mxu0 %v2883
    %3837 = vmatprep.subr.mxu0 %v2888
    %3838 = vmatpush1.msra.mxu0 %v2887
    %3839 = vmatprep.subr.mxu0 %v2892
    %3840 = vmatpush1.msra.mxu0 %v2891
    %3841 = vmatprep.subr.mxu0 %v2896
    %3842 = vmatpush1.msra.mxu0 %v2895
    %3843 = vmatprep.subr.mxu0 %v2900
    %3844 = vmatpush1.msra.mxu0 %v2899
    %3845 = vmatprep.subr.mxu0 %v2904
    %3846 = vmatpush1.msra.mxu0 %v2903
    %3847 = vmatprep.subr.mxu0 %v2908
    %3848 = vmatpush1.msra.mxu0 %v2907
    %3849 = vmatprep.subr.mxu0 %v2912
    %3850 = vmatpush1.msra.mxu0 %v2911
    %3851 = vmatprep.subr.mxu0 %v2916
    %3852 = vmatpush1.msra.mxu0 %v2915
    %3853 = vmatprep.subr.mxu0 %v2920
    %3854 = vmatpush1.msra.mxu0 %v2919
    %3855 = vmatprep.subr.mxu0 %v2924
    %3856 = vmatpush1.msra.mxu0 %v2923
    %3857 = vmatprep.subr.mxu0 0.0
    %3858 = vmatpush1.msra.mxu0 0.0
    %3859 = vmatprep.subr.mxu0 0.0
    %3860 = vmatpush1.msra.mxu0 0.0
    %3861 = vmatprep.subr.mxu0 0.0
    %3862 = vmatpush1.msra.mxu0 0.0
    %3863 = vmatprep.subr.mxu0 0.0
    %3864 = vmatpush1.msra.mxu0 0.0
    %3865 = vmatprep.subr.mxu0 0.0
    %3866 = vmatpush1.msra.mxu0 0.0
    %3867 = vmatprep.subr.mxu0 0.0
    %3868 = vmatpush1.msra.mxu0 0.0
    %3869 = vmatprep.subr.mxu0 0.0
    %3870 = vmatpush1.msra.mxu0 0.0
    %3871 = vmatprep.subr.mxu0 0.0
    %3872 = vmatpush1.msra.mxu0 0.0
    %3873 = vmatprep.subr.mxu0 0.0
    %3874 = vmatpush1.msra.mxu0 0.0
    %3875 = vmatprep.subr.mxu0 0.0
    %3876 = vmatpush1.msra.mxu0 0.0
    %3877 = vmatprep.subr.mxu0 0.0
    %3878 = vmatpush1.msra.mxu0 0.0
    %3879 = vmatprep.subr.mxu0 0.0
    %3880 = vmatpush1.msra.mxu0 0.0
    %3881 = vmatprep.subr.mxu0 0.0
    %3882 = vmatpush1.msra.mxu0 0.0
    %3883 = vmatprep.subr.mxu0 0.0
    %3884 = vmatpush1.msra.mxu0 0.0
    %3885 = vmatprep.subr.mxu0 0.0
    %3886 = vmatpush1.msra.mxu0 0.0
    %3887 = vmatprep.subr.mxu0 0.0
    %3888 = vmatpush1.msra.mxu0 0.0
    %3889 = vmatprep.mubr.f32.mxu0 0.0
    %3890 = vmatmul.mubr.f32.gmra.mrb[0].mxu0 %v3816
    %v3891 = vpop.f32.mrb[0].mxu0
    %v3892 = vadd.f32 %v3817, %v3891
    %v3893 = vpop.f32.mrb[0].mxu0
    %v3894 = vadd.f32 %v3818, %v3893
    %3895 = vdwg.mxu0
    %3896 = vmatprep.subr.mxu0 %v2866
    %3897 = vmatpush1.msra.mxu0 %v2865
    %3898 = vmatprep.subr.mxu0 %v2870
    %3899 = vmatpush1.msra.mxu0 %v2869
    %3900 = vmatprep.subr.mxu0 %v2874
    %3901 = vmatpush1.msra.mxu0 %v2873
    %3902 = vmatprep.subr.mxu0 %v2878
    %3903 = vmatpush1.msra.mxu0 %v2877
    %3904 = vmatprep.subr.mxu0 %v2882
    %3905 = vmatpush1.msra.mxu0 %v2881
    %3906 = vmatprep.subr.mxu0 %v2886
    %3907 = vmatpush1.msra.mxu0 %v2885
    %3908 = vmatprep.subr.mxu0 %v2890
    %3909 = vmatpush1.msra.mxu0 %v2889
    %3910 = vmatprep.subr.mxu0 %v2894
    %3911 = vmatpush1.msra.mxu0 %v2893
    %3912 = vmatprep.subr.mxu0 %v2898
    %3913 = vmatpush1.msra.mxu0 %v2897
    %3914 = vmatprep.subr.mxu0 %v2902
    %3915 = vmatpush1.msra.mxu0 %v2901
    %3916 = vmatprep.subr.mxu0 %v2906
    %3917 = vmatpush1.msra.mxu0 %v2905
    %3918 = vmatprep.subr.mxu0 %v2910
    %3919 = vmatpush1.msra.mxu0 %v2909
    %3920 = vmatprep.subr.mxu0 %v2914
    %3921 = vmatpush1.msra.mxu0 %v2913
    %3922 = vmatprep.subr.mxu0 %v2918
    %3923 = vmatpush1.msra.mxu0 %v2917
    %3924 = vmatprep.subr.mxu0 %v2922
    %3925 = vmatpush1.msra.mxu0 %v2921
    %3926 = vmatprep.subr.mxu0 %v2926
    %3927 = vmatpush1.msra.mxu0 %v2925
    %3928 = vmatprep.subr.mxu0 0.0
    %3929 = vmatpush1.msra.mxu0 0.0
    %3930 = vmatprep.subr.mxu0 0.0
    %3931 = vmatpush1.msra.mxu0 0.0
    %3932 = vmatprep.subr.mxu0 0.0
    %3933 = vmatpush1.msra.mxu0 0.0
    %3934 = vmatprep.subr.mxu0 0.0
    %3935 = vmatpush1.msra.mxu0 0.0
    %3936 = vmatprep.subr.mxu0 0.0
    %3937 = vmatpush1.msra.mxu0 0.0
    %3938 = vmatprep.subr.mxu0 0.0
    %3939 = vmatpush1.msra.mxu0 0.0
    %3940 = vmatprep.subr.mxu0 0.0
    %3941 = vmatpush1.msra.mxu0 0.0
    %3942 = vmatprep.subr.mxu0 0.0
    %3943 = vmatpush1.msra.mxu0 0.0
    %3944 = vmatprep.subr.mxu0 0.0
    %3945 = vmatpush1.msra.mxu0 0.0
    %3946 = vmatprep.subr.mxu0 0.0
    %3947 = vmatpush1.msra.mxu0 0.0
    %3948 = vmatprep.subr.mxu0 0.0
    %3949 = vmatpush1.msra.mxu0 0.0
    %3950 = vmatprep.subr.mxu0 0.0
    %3951 = vmatpush1.msra.mxu0 0.0
    %3952 = vmatprep.subr.mxu0 0.0
    %3953 = vmatpush1.msra.mxu0 0.0
    %3954 = vmatprep.subr.mxu0 0.0
    %3955 = vmatpush1.msra.mxu0 0.0
    %3956 = vmatprep.subr.mxu0 0.0
    %3957 = vmatpush1.msra.mxu0 0.0
    %3958 = vmatprep.subr.mxu0 0.0
    %3959 = vmatpush1.msra.mxu0 0.0
    %3960 = vmatprep.mubr.f32.mxu0 0.0
    %3961 = vmatmul.mubr.f32.gmra.mrb[0].mxu0 %v3816
    %v3962 = vpop.f32.mrb[0].mxu0
    %v3963 = vadd.f32 %v3819, %v3962
    %v3964 = vpop.f32.mrb[0].mxu0
    %v3965 = vadd.f32 %v3820, %v3964
    %3966 = vdwg.mxu0
    %v3967 = vadd.f32 %v3892, %v3821
    %v3968 = vadd.f32 %v3894, %v3822
    %v3969 = vadd.f32 %v3963, %v3823
    %v3970 = vadd.f32 %v3965, %v3824
    %v3971 = vxor.u32 %v3967, 2147483648
    %v3972 = vxor.u32 %v3968, 2147483648
    %v3973 = vxor.u32 %v3969, 2147483648
    %v3974 = vmul.f32 %v3971, 1.442695
    %v3975 = vpow.pop %v3974
    %v3976 = vmul.f32 %v3972, 1.442695
    %v3977 = vpow.pop %v3976
    %v3978 = vmul.f32 %v3973, 1.442695
    %v3979 = vpow.pop %v3978
    %v3980 = vadd.f32 %v3975, 1.0
    %v3981 = vadd.f32 %v3977, 1.0
    %v3982 = vadd.f32 %v3979, 1.0
    %v3983 = vrcp.pop %v3980
    %v3984 = vmul.f32 1.0, %v3983
    %v3985 = vrcp.pop %v3981
    %v3986 = vmul.f32 1.0, %v3985
    %v3987 = vrcp.pop %v3982
    %v3988 = vmul.f32 1.0, %v3987
    %v3989 = vtanh.pop %v3970
    %v3990 = vmul.f32 %v3986, %v3814
    %v3991 = vmul.f32 %v3984, %v3989
    %v3992 = vadd.f32 %v3990, %v3991
    %v3993 = vtanh.pop %v3992
    %v3994 = vmul.f32 %v3988, %v3993
    %v3995 = vld [vmem:[#allocation2 + $0x180] sm:$0xff]
    %v3996 = vld [vmem:[#allocation2 + $0x188] sm:$0xff]
    %v3997 = vld [vmem:[#allocation2 + $0x190] sm:$0xff]
    %v3998 = vld [vmem:[#allocation2 + $0x198] sm:$0xff]
    %v3999 = vld [vmem:[#allocation2 + $0x60] sm:$0xff]
    %v4000 = vld [vmem:[#allocation2 + $0x68] sm:$0xff]
    %v4001 = vld [vmem:[#allocation2 + $0x70] sm:$0xff]
    %v4002 = vld [vmem:[#allocation2 + $0x78] sm:$0xff]
    %4003 = vmatprep.subr.mxu0 %v2864
    %4004 = vmatpush1.msra.mxu0 %v2863
    %4005 = vmatprep.subr.mxu0 %v2868
    %4006 = vmatpush1.msra.mxu0 %v2867
    %4007 = vmatprep.subr.mxu0 %v2872
    %4008 = vmatpush1.msra.mxu0 %v2871
    %4009 = vmatprep.subr.mxu0 %v2876
    %4010 = vmatpush1.msra.mxu0 %v2875
    %4011 = vmatprep.subr.mxu0 %v2880
    %4012 = vmatpush1.msra.mxu0 %v2879
    %4013 = vmatprep.subr.mxu0 %v2884
    %4014 = vmatpush1.msra.mxu0 %v2883
    %4015 = vmatprep.subr.mxu0 %v2888
    %4016 = vmatpush1.msra.mxu0 %v2887
    %4017 = vmatprep.subr.mxu0 %v2892
    %4018 = vmatpush1.msra.mxu0 %v2891
    %4019 = vmatprep.subr.mxu0 %v2896
    %4020 = vmatpush1.msra.mxu0 %v2895
    %4021 = vmatprep.subr.mxu0 %v2900
    %4022 = vmatpush1.msra.mxu0 %v2899
    %4023 = vmatprep.subr.mxu0 %v2904
    %4024 = vmatpush1.msra.mxu0 %v2903
    %4025 = vmatprep.subr.mxu0 %v2908
    %4026 = vmatpush1.msra.mxu0 %v2907
    %4027 = vmatprep.subr.mxu0 %v2912
    %4028 = vmatpush1.msra.mxu0 %v2911
    %4029 = vmatprep.subr.mxu0 %v2916
    %4030 = vmatpush1.msra.mxu0 %v2915
    %4031 = vmatprep.subr.mxu0 %v2920
    %4032 = vmatpush1.msra.mxu0 %v2919
    %4033 = vmatprep.subr.mxu0 %v2924
    %4034 = vmatpush1.msra.mxu0 %v2923
    %4035 = vmatprep.subr.mxu0 0.0
    %4036 = vmatpush1.msra.mxu0 0.0
    %4037 = vmatprep.subr.mxu0 0.0
    %4038 = vmatpush1.msra.mxu0 0.0
    %4039 = vmatprep.subr.mxu0 0.0
    %4040 = vmatpush1.msra.mxu0 0.0
    %4041 = vmatprep.subr.mxu0 0.0
    %4042 = vmatpush1.msra.mxu0 0.0
    %4043 = vmatprep.subr.mxu0 0.0
    %4044 = vmatpush1.msra.mxu0 0.0
    %4045 = vmatprep.subr.mxu0 0.0
    %4046 = vmatpush1.msra.mxu0 0.0
    %4047 = vmatprep.subr.mxu0 0.0
    %4048 = vmatpush1.msra.mxu0 0.0
    %4049 = vmatprep.subr.mxu0 0.0
    %4050 = vmatpush1.msra.mxu0 0.0
    %4051 = vmatprep.subr.mxu0 0.0
    %4052 = vmatpush1.msra.mxu0 0.0
    %4053 = vmatprep.subr.mxu0 0.0
    %4054 = vmatpush1.msra.mxu0 0.0
    %4055 = vmatprep.subr.mxu0 0.0
    %4056 = vmatpush1.msra.mxu0 0.0
    %4057 = vmatprep.subr.mxu0 0.0
    %4058 = vmatpush1.msra.mxu0 0.0
    %4059 = vmatprep.subr.mxu0 0.0
    %4060 = vmatpush1.msra.mxu0 0.0
    %4061 = vmatprep.subr.mxu0 0.0
    %4062 = vmatpush1.msra.mxu0 0.0
    %4063 = vmatprep.subr.mxu0 0.0
    %4064 = vmatpush1.msra.mxu0 0.0
    %4065 = vmatprep.subr.mxu0 0.0
    %4066 = vmatpush1.msra.mxu0 0.0
    %4067 = vmatprep.mubr.f32.mxu0 0.0
    %4068 = vmatmul.mubr.f32.gmra.mrb[0].mxu0 %v3994
    %v4069 = vpop.f32.mrb[0].mxu0
    %v4070 = vadd.f32 %v3995, %v4069
    %v4071 = vpop.f32.mrb[0].mxu0
    %v4072 = vadd.f32 %v3996, %v4071
    %4073 = vdwg.mxu0
    %4074 = vmatprep.subr.mxu0 %v2866
    %4075 = vmatpush1.msra.mxu0 %v2865
    %4076 = vmatprep.subr.mxu0 %v2870
    %4077 = vmatpush1.msra.mxu0 %v2869
    %4078 = vmatprep.subr.mxu0 %v2874
    %4079 = vmatpush1.msra.mxu0 %v2873
    %4080 = vmatprep.subr.mxu0 %v2878
    %4081 = vmatpush1.msra.mxu0 %v2877
    %4082 = vmatprep.subr.mxu0 %v2882
    %4083 = vmatpush1.msra.mxu0 %v2881
    %4084 = vmatprep.subr.mxu0 %v2886
    %4085 = vmatpush1.msra.mxu0 %v2885
    %4086 = vmatprep.subr.mxu0 %v2890
    %4087 = vmatpush1.msra.mxu0 %v2889
    %4088 = vmatprep.subr.mxu0 %v2894
    %4089 = vmatpush1.msra.mxu0 %v2893
    %4090 = vmatprep.subr.mxu0 %v2898
    %4091 = vmatpush1.msra.mxu0 %v2897
    %4092 = vmatprep.subr.mxu0 %v2902
    %4093 = vmatpush1.msra.mxu0 %v2901
    %4094 = vmatprep.subr.mxu0 %v2906
    %4095 = vmatpush1.msra.mxu0 %v2905
    %4096 = vmatprep.subr.mxu0 %v2910
    %4097 = vmatpush1.msra.mxu0 %v2909
    %4098 = vmatprep.subr.mxu0 %v2914
    %4099 = vmatpush1.msra.mxu0 %v2913
    %4100 = vmatprep.subr.mxu0 %v2918
    %4101 = vmatpush1.msra.mxu0 %v2917
    %4102 = vmatprep.subr.mxu0 %v2922
    %4103 = vmatpush1.msra.mxu0 %v2921
    %4104 = vmatprep.subr.mxu0 %v2926
    %4105 = vmatpush1.msra.mxu0 %v2925
    %4106 = vmatprep.subr.mxu0 0.0
    %4107 = vmatpush1.msra.mxu0 0.0
    %4108 = vmatprep.subr.mxu0 0.0
    %4109 = vmatpush1.msra.mxu0 0.0
    %4110 = vmatprep.subr.mxu0 0.0
    %4111 = vmatpush1.msra.mxu0 0.0
    %4112 = vmatprep.subr.mxu0 0.0
    %4113 = vmatpush1.msra.mxu0 0.0
    %4114 = vmatprep.subr.mxu0 0.0
    %4115 = vmatpush1.msra.mxu0 0.0
    %4116 = vmatprep.subr.mxu0 0.0
    %4117 = vmatpush1.msra.mxu0 0.0
    %4118 = vmatprep.subr.mxu0 0.0
    %4119 = vmatpush1.msra.mxu0 0.0
    %4120 = vmatprep.subr.mxu0 0.0
    %4121 = vmatpush1.msra.mxu0 0.0
    %4122 = vmatprep.subr.mxu0 0.0
    %4123 = vmatpush1.msra.mxu0 0.0
    %4124 = vmatprep.subr.mxu0 0.0
    %4125 = vmatpush1.msra.mxu0 0.0
    %4126 = vmatprep.subr.mxu0 0.0
    %4127 = vmatpush1.msra.mxu0 0.0
    %4128 = vmatprep.subr.mxu0 0.0
    %4129 = vmatpush1.msra.mxu0 0.0
    %4130 = vmatprep.subr.mxu0 0.0
    %4131 = vmatpush1.msra.mxu0 0.0
    %4132 = vmatprep.subr.mxu0 0.0
    %4133 = vmatpush1.msra.mxu0 0.0
    %4134 = vmatprep.subr.mxu0 0.0
    %4135 = vmatpush1.msra.mxu0 0.0
    %4136 = vmatprep.subr.mxu0 0.0
    %4137 = vmatpush1.msra.mxu0 0.0
    %4138 = vmatprep.mubr.f32.mxu0 0.0
    %4139 = vmatmul.mubr.f32.gmra.mrb[0].mxu0 %v3994
    %v4140 = vpop.f32.mrb[0].mxu0
    %v4141 = vadd.f32 %v3997, %v4140
    %v4142 = vpop.f32.mrb[0].mxu0
    %v4143 = vadd.f32 %v3998, %v4142
    %4144 = vdwg.mxu0
    %v4145 = vadd.f32 %v4070, %v3999
    %v4146 = vadd.f32 %v4072, %v4000
    %v4147 = vadd.f32 %v4141, %v4001
    %v4148 = vadd.f32 %v4143, %v4002
    %v4149 = vxor.u32 %v4145, 2147483648
    %v4150 = vxor.u32 %v4146, 2147483648
    %v4151 = vxor.u32 %v4147, 2147483648
    %v4152 = vmul.f32 %v4149, 1.442695
    %v4153 = vpow.pop %v4152
    %v4154 = vmul.f32 %v4150, 1.442695
    %v4155 = vpow.pop %v4154
    %v4156 = vmul.f32 %v4151, 1.442695
    %v4157 = vpow.pop %v4156
    %v4158 = vadd.f32 %v4153, 1.0
    %v4159 = vadd.f32 %v4155, 1.0
    %v4160 = vadd.f32 %v4157, 1.0
    %v4161 = vrcp.pop %v4158
    %v4162 = vmul.f32 1.0, %v4161
    %v4163 = vrcp.pop %v4159
    %v4164 = vmul.f32 1.0, %v4163
    %v4165 = vrcp.pop %v4160
    %v4166 = vmul.f32 1.0, %v4165
    %v4167 = vtanh.pop %v4148
    %v4168 = vmul.f32 %v4164, %v3992
    %v4169 = vmul.f32 %v4162, %v4167
    %v4170 = vadd.f32 %v4168, %v4169
    %v4171 = vtanh.pop %v4170
    %v4172 = vmul.f32 %v4166, %v4171
    %v4173 = vld [vmem:[#allocation2 + $0x1c0] sm:$0xff]
    %v4174 = vld [vmem:[#allocation2 + $0x1c8] sm:$0xff]
    %v4175 = vld [vmem:[#allocation2 + $0x1d0] sm:$0xff]
    %v4176 = vld [vmem:[#allocation2 + $0x1d8] sm:$0xff]
    %v4177 = vld [vmem:[#allocation2 + $0x20] sm:$0xff]
    %v4178 = vld [vmem:[#allocation2 + $0x28] sm:$0xff]
    %v4179 = vld [vmem:[#allocation2 + $0x30] sm:$0xff]
    %v4180 = vld [vmem:[#allocation2 + $0x38] sm:$0xff]
    %4181 = vmatprep.subr.mxu0 %v2864
    %4182 = vmatpush1.msra.mxu0 %v2863
    %4183 = vmatprep.subr.mxu0 %v2868
    %4184 = vmatpush1.msra.mxu0 %v2867
    %4185 = vmatprep.subr.mxu0 %v2872
    %4186 = vmatpush1.msra.mxu0 %v2871
    %4187 = vmatprep.subr.mxu0 %v2876
    %4188 = vmatpush1.msra.mxu0 %v2875
    %4189 = vmatprep.subr.mxu0 %v2880
    %4190 = vmatpush1.msra.mxu0 %v2879
    %4191 = vmatprep.subr.mxu0 %v2884
    %4192 = vmatpush1.msra.mxu0 %v2883
    %4193 = vmatprep.subr.mxu0 %v2888
    %4194 = vmatpush1.msra.mxu0 %v2887
    %4195 = vmatprep.subr.mxu0 %v2892
    %4196 = vmatpush1.msra.mxu0 %v2891
    %4197 = vmatprep.subr.mxu0 %v2896
    %4198 = vmatpush1.msra.mxu0 %v2895
    %4199 = vmatprep.subr.mxu0 %v2900
    %4200 = vmatpush1.msra.mxu0 %v2899
    %4201 = vmatprep.subr.mxu0 %v2904
    %4202 = vmatpush1.msra.mxu0 %v2903
    %4203 = vmatprep.subr.mxu0 %v2908
    %4204 = vmatpush1.msra.mxu0 %v2907
    %4205 = vmatprep.subr.mxu0 %v2912
    %4206 = vmatpush1.msra.mxu0 %v2911
    %4207 = vmatprep.subr.mxu0 %v2916
    %4208 = vmatpush1.msra.mxu0 %v2915
    %4209 = vmatprep.subr.mxu0 %v2920
    %4210 = vmatpush1.msra.mxu0 %v2919
    %4211 = vmatprep.subr.mxu0 %v2924
    %4212 = vmatpush1.msra.mxu0 %v2923
    %4213 = vmatprep.subr.mxu0 0.0
    %4214 = vmatpush1.msra.mxu0 0.0
    %4215 = vmatprep.subr.mxu0 0.0
    %4216 = vmatpush1.msra.mxu0 0.0
    %4217 = vmatprep.subr.mxu0 0.0
    %4218 = vmatpush1.msra.mxu0 0.0
    %4219 = vmatprep.subr.mxu0 0.0
    %4220 = vmatpush1.msra.mxu0 0.0
    %4221 = vmatprep.subr.mxu0 0.0
    %4222 = vmatpush1.msra.mxu0 0.0
    %4223 = vmatprep.subr.mxu0 0.0
    %4224 = vmatpush1.msra.mxu0 0.0
    %4225 = vmatprep.subr.mxu0 0.0
    %4226 = vmatpush1.msra.mxu0 0.0
    %4227 = vmatprep.subr.mxu0 0.0
    %4228 = vmatpush1.msra.mxu0 0.0
    %4229 = vmatprep.subr.mxu0 0.0
    %4230 = vmatpush1.msra.mxu0 0.0
    %4231 = vmatprep.subr.mxu0 0.0
    %4232 = vmatpush1.msra.mxu0 0.0
    %4233 = vmatprep.subr.mxu0 0.0
    %4234 = vmatpush1.msra.mxu0 0.0
    %4235 = vmatprep.subr.mxu0 0.0
    %4236 = vmatpush1.msra.mxu0 0.0
    %4237 = vmatprep.subr.mxu0 0.0
    %4238 = vmatpush1.msra.mxu0 0.0
    %4239 = vmatprep.subr.mxu0 0.0
    %4240 = vmatpush1.msra.mxu0 0.0
    %4241 = vmatprep.subr.mxu0 0.0
    %4242 = vmatpush1.msra.mxu0 0.0
    %4243 = vmatprep.subr.mxu0 0.0
    %4244 = vmatpush1.msra.mxu0 0.0
    %4245 = vmatprep.mubr.f32.mxu0 0.0
    %4246 = vmatmul.mubr.f32.gmra.mrb[0].mxu0 %v4172
    %v4247 = vpop.f32.mrb[0].mxu0
    %v4248 = vadd.f32 %v4173, %v4247
    %v4249 = vpop.f32.mrb[0].mxu0
    %v4250 = vadd.f32 %v4174, %v4249
    %4251 = vdwg.mxu0
    %4252 = vmatprep.subr.mxu0 %v2866
    %4253 = vmatpush1.msra.mxu0 %v2865
    %4254 = vmatprep.subr.mxu0 %v2870
    %4255 = vmatpush1.msra.mxu0 %v2869
    %4256 = vmatprep.subr.mxu0 %v2874
    %4257 = vmatpush1.msra.mxu0 %v2873
    %4258 = vmatprep.subr.mxu0 %v2878
    %4259 = vmatpush1.msra.mxu0 %v2877
    %4260 = vmatprep.subr.mxu0 %v2882
    %4261 = vmatpush1.msra.mxu0 %v2881
    %4262 = vmatprep.subr.mxu0 %v2886
    %4263 = vmatpush1.msra.mxu0 %v2885
    %4264 = vmatprep.subr.mxu0 %v2890
    %4265 = vmatpush1.msra.mxu0 %v2889
    %4266 = vmatprep.subr.mxu0 %v2894
    %4267 = vmatpush1.msra.mxu0 %v2893
    %4268 = vmatprep.subr.mxu0 %v2898
    %4269 = vmatpush1.msra.mxu0 %v2897
    %4270 = vmatprep.subr.mxu0 %v2902
    %4271 = vmatpush1.msra.mxu0 %v2901
    %4272 = vmatprep.subr.mxu0 %v2906
    %4273 = vmatpush1.msra.mxu0 %v2905
    %4274 = vmatprep.subr.mxu0 %v2910
    %4275 = vmatpush1.msra.mxu0 %v2909
    %4276 = vmatprep.subr.mxu0 %v2914
    %4277 = vmatpush1.msra.mxu0 %v2913
    %4278 = vmatprep.subr.mxu0 %v2918
    %4279 = vmatpush1.msra.mxu0 %v2917
    %4280 = vmatprep.subr.mxu0 %v2922
    %4281 = vmatpush1.msra.mxu0 %v2921
    %4282 = vmatprep.subr.mxu0 %v2926
    %4283 = vmatpush1.msra.mxu0 %v2925
    %4284 = vmatprep.subr.mxu0 0.0
    %4285 = vmatpush1.msra.mxu0 0.0
    %4286 = vmatprep.subr.mxu0 0.0
    %4287 = vmatpush1.msra.mxu0 0.0
    %4288 = vmatprep.subr.mxu0 0.0
    %4289 = vmatpush1.msra.mxu0 0.0
    %4290 = vmatprep.subr.mxu0 0.0
    %4291 = vmatpush1.msra.mxu0 0.0
    %4292 = vmatprep.subr.mxu0 0.0
    %4293 = vmatpush1.msra.mxu0 0.0
    %4294 = vmatprep.subr.mxu0 0.0
    %4295 = vmatpush1.msra.mxu0 0.0
    %4296 = vmatprep.subr.mxu0 0.0
    %4297 = vmatpush1.msra.mxu0 0.0
    %4298 = vmatprep.subr.mxu0 0.0
    %4299 = vmatpush1.msra.mxu0 0.0
    %4300 = vmatprep.subr.mxu0 0.0
    %4301 = vmatpush1.msra.mxu0 0.0
    %4302 = vmatprep.subr.mxu0 0.0
    %4303 = vmatpush1.msra.mxu0 0.0
    %4304 = vmatprep.subr.mxu0 0.0
    %4305 = vmatpush1.msra.mxu0 0.0
    %4306 = vmatprep.subr.mxu0 0.0
    %4307 = vmatpush1.msra.mxu0 0.0
    %4308 = vmatprep.subr.mxu0 0.0
    %4309 = vmatpush1.msra.mxu0 0.0
    %4310 = vmatprep.subr.mxu0 0.0
    %4311 = vmatpush1.msra.mxu0 0.0
    %4312 = vmatprep.subr.mxu0 0.0
    %4313 = vmatpush1.msra.mxu0 0.0
    %4314 = vmatprep.subr.mxu0 0.0
    %4315 = vmatpush1.msra.mxu0 0.0
    %4316 = vmatprep.mubr.f32.mxu0 0.0
    %4317 = vmatmul.mubr.f32.gmra.mrb[0].mxu0 %v4172
    %v4318 = vpop.f32.mrb[0].mxu0
    %v4319 = vadd.f32 %v4175, %v4318
    %v4320 = vpop.f32.mrb[0].mxu0
    %v4321 = vadd.f32 %v4176, %v4320
    %4322 = vdwg.mxu0
    %v4323 = vadd.f32 %v4248, %v4177
    %v4324 = vadd.f32 %v4250, %v4178
    %v4325 = vadd.f32 %v4319, %v4179
    %v4326 = vadd.f32 %v4321, %v4180
    %v4327 = vxor.u32 %v4323, 2147483648
    %v4328 = vxor.u32 %v4324, 2147483648
    %v4329 = vxor.u32 %v4325, 2147483648
    %v4330 = vmul.f32 %v4327, 1.442695
    %v4331 = vpow.pop %v4330
    %v4332 = vmul.f32 %v4328, 1.442695
    %v4333 = vpow.pop %v4332
    %v4334 = vmul.f32 %v4329, 1.442695
    %v4335 = vpow.pop %v4334
    %v4336 = vadd.f32 %v4331, 1.0
    %v4337 = vadd.f32 %v4333, 1.0
    %v4338 = vadd.f32 %v4335, 1.0
    %v4339 = vrcp.pop %v4336
    %v4340 = vmul.f32 1.0, %v4339
    %v4341 = vrcp.pop %v4337
    %v4342 = vmul.f32 1.0, %v4341
    %v4343 = vrcp.pop %v4338
    %v4344 = vmul.f32 1.0, %v4343
    %v4345 = vtanh.pop %v4326
    %v4346 = vmul.f32 %v4342, %v4170
    %v4347 = vmul.f32 %v4340, %v4345
    %v4348 = vadd.f32 %v4346, %v4347
    %v4349 = vtanh.pop %v4348
    %v4350 = vmul.f32 %v4344, %v4349
    %4351 = vst [vmem:[%s4] sm:$0xff] %v4350
    // Predicated region
    $region26: #{_lambda_.1} parent=1 // pred_check
      _
    $region27: #{_lambda_.1} parent=1 // pred_check_branch
      %4353 = sbr.rel (0) target = $region29
    $region28: #{_lambda_.1} parent=1 // pred_region
      _
    $region29: #{_lambda_.1} parent=1 // pred_fallthru
      _
    // Predicated region
    $region30: #{_lambda_.1} parent=1 // pred_check
      _
    $region31: #{_lambda_.1} parent=1 // pred_check_branch
      %4355 = sbr.rel (0) target = $region33
    $region32: #{_lambda_.1} parent=1 // pred_region
      _
    $region33: #{_lambda_.1} parent=1 // pred_fallthru
      _
    %4356 = vsyncpa [#allocation6], 1
    %4357 = vsyncpa [#allocation8], 1

</llo_original>
